<compile_context>
chip_gen: v7x
topology: tpu7x:2x2x1
jax: 0.10.0
libtpu: 0.0.40
codegen_flags: <defaults>
</compile_context>

<pallas_src>
import functools

import jax
import jax.numpy as jnp
from jax.experimental import pallas as pl
from jax.experimental.pallas import tpu as pltpu

INPUT_DIM = 18          # number of independent encoder/decoder heads
ENC_IN = 512
ENC_OUT = 32
PARAMS = 257
DEC_OUT = 512
HEADS_PER_STEP = 3      # grid = (18 // 3,) = (6,), even for v7x's 2 TensorCores


def rignet_kernel(w_ref, p_ref, we_ref, wde_ref, wdp_ref, bias_ref, out_ref):
    # Per grid step: H consecutive heads.
    #   w_ref    (H, B, 512)    head-major activations
    #   p_ref    (B, 257)       shared rig parameters (same block every step)
    #   we_ref   (H, 512, 32)   encoder weights, stored (in, out)
    #   wde_ref  (H, 32, 512)   decoder weights acting on the encoder output
    #   wdp_ref  (H, 257, 512)  decoder weights acting on p
    #   bias_ref (H, 1, 512)    folded decoder bias (be @ Wd_enc + bd)
    #   out_ref  (B, H*512)     lane-dense output slab for these H heads
    p = p_ref[...]
    for h in range(HEADS_PER_STEP):                         # static unroll
        enc = jnp.dot(w_ref[h], we_ref[h],
                      preferred_element_type=jnp.float32)               # (B, 32)
        dec = (jnp.dot(enc, wde_ref[h], preferred_element_type=jnp.float32)
               + jnp.dot(p, wdp_ref[h], preferred_element_type=jnp.float32)
               + bias_ref[h])                                            # (B, 512)
        out_ref[:, h * DEC_OUT:(h + 1) * DEC_OUT] = dec.astype(out_ref.dtype)


@functools.partial(jax.jit, static_argnames=("weight_dtype",))
def rignet_forward(w, p, We, be, Wd, bd, *, weight_dtype=jnp.float32):
    """w: (B, 18, 512), p: (B, 257).
    We: (18, 512, 32), be: (18, 32), Wd: (18, 289, 512), bd: (18, 512).

    weight_dtype=jnp.bfloat16 halves streamed weight bytes (this kernel is
    purely HBM-bound) at a small accuracy cost; default float32 is exact."""
    B = w.shape[0]
    H = HEADS_PER_STEP
    assert INPUT_DIM % H == 0
    grid = (INPUT_DIM // H,)

    # Head-major activations: block (H, B, 512) keeps the trailing (B, 512)
    # dims equal-to-full / 128-aligned. Tiny copy (18*B*512 floats).
    w_t = jnp.transpose(w, (1, 0, 2))                      # (18, B, 512)

    Wd_enc = Wd[:, :ENC_OUT, :]                            # (18, 32, 512)
    Wd_p = Wd[:, ENC_OUT:, :]                              # (18, 257, 512)
    # Exact fold: (l + be) @ Wd_enc + bd == l @ Wd_enc + (be @ Wd_enc + bd).
    bias = (jnp.einsum("ho,hod->hd",
                       be.astype(jnp.float32),
                       Wd_enc.astype(jnp.float32)) + bd
            ).reshape(INPUT_DIM, 1, DEC_OUT)               # (18, 1, 512), f32

    We_s = We.astype(weight_dtype)
    Wd_enc_s = Wd_enc.astype(weight_dtype)
    Wd_p_s = Wd_p.astype(weight_dtype)

    out_flat = pl.pallas_call(
        rignet_kernel,
        out_shape=jax.ShapeDtypeStruct((B, INPUT_DIM * DEC_OUT), w.dtype),
        grid_spec=pltpu.PrefetchScalarGridSpec(
            num_scalar_prefetch=0,
            grid=grid,
            in_specs=[
                pl.BlockSpec((H, B, ENC_IN), lambda i: (i, 0, 0)),         # w
                pl.BlockSpec((B, PARAMS), lambda i: (0, 0)),               # p
                pl.BlockSpec((H, ENC_IN, ENC_OUT), lambda i: (i, 0, 0)),   # We
                pl.BlockSpec((H, ENC_OUT, DEC_OUT), lambda i: (i, 0, 0)),  # Wd_enc
                pl.BlockSpec((H, PARAMS, DEC_OUT), lambda i: (i, 0, 0)),   # Wd_p
                pl.BlockSpec((H, 1, DEC_OUT), lambda i: (i, 0, 0)),        # bias
            ],
            out_specs=pl.BlockSpec((B, H * DEC_OUT), lambda i: (0, i)),
        ),
        compiler_params=pltpu.CompilerParams(
            dimension_semantics=("parallel",),
            vmem_limit_bytes=32 * 1024 * 1024),
    )(w_t, p, We_s, Wd_enc_s, Wd_p_s, bias)

    # (B, 18*512) -> (B, 18, 512) is a pure reshape (no data movement).
    return out_flat.reshape(B, INPUT_DIM, DEC_OUT)


def reference_forward(w, p, We, be, Wd, bd):
    # Pure-JAX reference replicating the PyTorch module exactly.
    outs = []
    for i in range(INPUT_DIM):
        l_i = w[:, i, :] @ We[i] + be[i]                   # (B, 32)
        x_i = jnp.concatenate([l_i, p], axis=1)            # (B, 289)
        outs.append(x_i @ Wd[i] + bd[i])                   # (B, 512)
    return jnp.stack(outs, axis=1)                         # (B, 18, 512)


if __name__ == "__main__":
    key = jax.random.PRNGKey(0)
    k_w, k_p, k_we, k_be, k_wd, k_bd = jax.random.split(key, 6)

    B = 2
    w = jax.random.normal(k_w, (B, INPUT_DIM, ENC_IN), dtype=jnp.float32)
    p = jax.random.normal(k_p, (B, PARAMS), dtype=jnp.float32)

    # Deterministic synthetic parameters (nn.Linear shapes, stored as (in, out)).
    We = jax.random.normal(k_we, (INPUT_DIM, ENC_IN, ENC_OUT), dtype=jnp.float32) * 0.02
    be = jax.random.normal(k_be, (INPUT_DIM, ENC_OUT), dtype=jnp.float32) * 0.02
    Wd = jax.random.normal(k_wd, (INPUT_DIM, ENC_OUT + PARAMS, DEC_OUT),
                           dtype=jnp.float32) * 0.02
    bd = jax.random.normal(k_bd, (INPUT_DIM, DEC_OUT), dtype=jnp.float32) * 0.02

    out = rignet_forward(w, p, We, be, Wd, bd)
    out = jax.block_until_ready(out)

    ref = reference_forward(w, p, We, be, Wd, bd)
    assert out.shape == (B, INPUT_DIM, DEC_OUT)
    assert jnp.allclose(out, ref, atol=1e-4, rtol=1e-4), "mismatch vs reference"

    print("KERNEL_OK")
</pallas_src>

<mosaic_0001>
module attributes {stable_mosaic.version = 11 : i64} {
  func.func @rignet_kernel(%arg0: i32, %arg1: memref<3x2x512xf32, #tpu.memory_space<vmem>>, %arg2: memref<2x257xf32, #tpu.memory_space<vmem>>, %arg3: memref<3x512x32xf32, #tpu.memory_space<vmem>>, %arg4: memref<3x32x512xf32, #tpu.memory_space<vmem>>, %arg5: memref<3x257x512xf32, #tpu.memory_space<vmem>>, %arg6: memref<3x1x512xf32, #tpu.memory_space<vmem>>, %arg7: memref<2x1536xf32, #tpu.memory_space<vmem>>) attributes {dimension_semantics = [#tpu.dimension_semantics<parallel>], iteration_bounds = array<i64: 6>, scalar_prefetch = 0 : i64, scratch_operands = 0 : i64, tpu.core_type = #tpu.core_type<tc>, window_params = [{transform_indices = @transform_0, window_bounds = array<i64: 3, 2, 512>}, {pipeline_mode = #tpu.pipeline_mode<synchronous>, transform_indices = @transform_1, window_bounds = array<i64: 2, 257>}, {transform_indices = @transform_2, window_bounds = array<i64: 3, 512, 32>}, {transform_indices = @transform_3, window_bounds = array<i64: 3, 32, 512>}, {transform_indices = @transform_4, window_bounds = array<i64: 3, 257, 512>}, {transform_indices = @transform_5, window_bounds = array<i64: 3, 1, 512>}, {transform_indices = @transform_6, window_bounds = array<i64: 2, 1536>}]} {
    %c0 = arith.constant 0 : index
    %c0_0 = arith.constant 0 : index
    %0 = vector.load %arg2[%c0, %c0_0] : memref<2x257xf32, #tpu.memory_space<vmem>>, vector<2x257xf32>
    %c0_1 = arith.constant 0 : index
    %c0_2 = arith.constant 0 : index
    %c0_3 = arith.constant 0 : index
    %1 = vector.load %arg1[%c0_1, %c0_2, %c0_3] : memref<3x2x512xf32, #tpu.memory_space<vmem>>, vector<1x2x512xf32>
    %2 = vector.shape_cast %1 : vector<1x2x512xf32> to vector<2x512xf32>
    %c0_4 = arith.constant 0 : index
    %c0_5 = arith.constant 0 : index
    %c0_6 = arith.constant 0 : index
    %3 = vector.load %arg3[%c0_4, %c0_5, %c0_6] : memref<3x512x32xf32, #tpu.memory_space<vmem>>, vector<1x512x32xf32>
    %4 = vector.shape_cast %3 : vector<1x512x32xf32> to vector<512x32xf32>
    %cst = arith.constant dense<0.000000e+00> : vector<2x32xf32>
    %5 = tpu.matmul %2, %4, %cst {dimension_numbers = #tpu.dot_dimension_numbers<[1], [0], [0], [1], [0, 0, 1, 1], [], []>} : vector<2x512xf32>, vector<512x32xf32>, vector<2x32xf32> -> vector<2x32xf32>
    %c0_7 = arith.constant 0 : index
    %c0_8 = arith.constant 0 : index
    %c0_9 = arith.constant 0 : index
    %6 = vector.load %arg4[%c0_7, %c0_8, %c0_9] : memref<3x32x512xf32, #tpu.memory_space<vmem>>, vector<1x32x512xf32>
    %7 = vector.shape_cast %6 : vector<1x32x512xf32> to vector<32x512xf32>
    %cst_10 = arith.constant dense<0.000000e+00> : vector<2x512xf32>
    %8 = tpu.matmul %5, %7, %cst_10 {dimension_numbers = #tpu.dot_dimension_numbers<[1], [0], [0], [1], [0, 0, 1, 1], [], []>} : vector<2x32xf32>, vector<32x512xf32>, vector<2x512xf32> -> vector<2x512xf32>
    %c0_11 = arith.constant 0 : index
    %c0_12 = arith.constant 0 : index
    %c0_13 = arith.constant 0 : index
    %9 = vector.load %arg5[%c0_11, %c0_12, %c0_13] : memref<3x257x512xf32, #tpu.memory_space<vmem>>, vector<1x257x512xf32>
    %10 = vector.shape_cast %9 : vector<1x257x512xf32> to vector<257x512xf32>
    %cst_14 = arith.constant dense<0.000000e+00> : vector<2x512xf32>
    %11 = tpu.matmul %0, %10, %cst_14 {dimension_numbers = #tpu.dot_dimension_numbers<[1], [0], [0], [1], [0, 0, 1, 1], [], []>} : vector<2x257xf32>, vector<257x512xf32>, vector<2x512xf32> -> vector<2x512xf32>
    %12 = arith.addf %8, %11 : vector<2x512xf32>
    %c0_15 = arith.constant 0 : index
    %c0_16 = arith.constant 0 : index
    %c0_17 = arith.constant 0 : index
    %13 = vector.load %arg6[%c0_15, %c0_16, %c0_17] : memref<3x1x512xf32, #tpu.memory_space<vmem>>, vector<1x1x512xf32>
    %14 = vector.shape_cast %13 : vector<1x1x512xf32> to vector<1x512xf32>
    %15 = vector.broadcast %14 : vector<1x512xf32> to vector<2x512xf32>
    %16 = arith.addf %12, %15 : vector<2x512xf32>
    %c0_18 = arith.constant 0 : index
    %c0_19 = arith.constant 0 : index
    %17 = vector.load %arg7[%c0_18, %c0_19] : memref<2x1536xf32, #tpu.memory_space<vmem>>, vector<2x512xf32>
    tpu.vector_store %arg7[%c0_18, %c0_19], %16 {strides = array<i32>} : memref<2x1536xf32, #tpu.memory_space<vmem>>, vector<2x512xf32>,
    %c1 = arith.constant 1 : index
    %c0_20 = arith.constant 0 : index
    %c0_21 = arith.constant 0 : index
    %18 = vector.load %arg1[%c1, %c0_20, %c0_21] : memref<3x2x512xf32, #tpu.memory_space<vmem>>, vector<1x2x512xf32>
    %19 = vector.shape_cast %18 : vector<1x2x512xf32> to vector<2x512xf32>
    %c1_22 = arith.constant 1 : index
    %c0_23 = arith.constant 0 : index
    %c0_24 = arith.constant 0 : index
    %20 = vector.load %arg3[%c1_22, %c0_23, %c0_24] : memref<3x512x32xf32, #tpu.memory_space<vmem>>, vector<1x512x32xf32>
    %21 = vector.shape_cast %20 : vector<1x512x32xf32> to vector<512x32xf32>
    %cst_25 = arith.constant dense<0.000000e+00> : vector<2x32xf32>
    %22 = tpu.matmul %19, %21, %cst_25 {dimension_numbers = #tpu.dot_dimension_numbers<[1], [0], [0], [1], [0, 0, 1, 1], [], []>} : vector<2x512xf32>, vector<512x32xf32>, vector<2x32xf32> -> vector<2x32xf32>
    %c1_26 = arith.constant 1 : index
    %c0_27 = arith.constant 0 : index
    %c0_28 = arith.constant 0 : index
    %23 = vector.load %arg4[%c1_26, %c0_27, %c0_28] : memref<3x32x512xf32, #tpu.memory_space<vmem>>, vector<1x32x512xf32>
    %24 = vector.shape_cast %23 : vector<1x32x512xf32> to vector<32x512xf32>
    %cst_29 = arith.constant dense<0.000000e+00> : vector<2x512xf32>
    %25 = tpu.matmul %22, %24, %cst_29 {dimension_numbers = #tpu.dot_dimension_numbers<[1], [0], [0], [1], [0, 0, 1, 1], [], []>} : vector<2x32xf32>, vector<32x512xf32>, vector<2x512xf32> -> vector<2x512xf32>
    %c1_30 = arith.constant 1 : index
    %c0_31 = arith.constant 0 : index
    %c0_32 = arith.constant 0 : index
    %26 = vector.load %arg5[%c1_30, %c0_31, %c0_32] : memref<3x257x512xf32, #tpu.memory_space<vmem>>, vector<1x257x512xf32>
    %27 = vector.shape_cast %26 : vector<1x257x512xf32> to vector<257x512xf32>
    %cst_33 = arith.constant dense<0.000000e+00> : vector<2x512xf32>
    %28 = tpu.matmul %0, %27, %cst_33 {dimension_numbers = #tpu.dot_dimension_numbers<[1], [0], [0], [1], [0, 0, 1, 1], [], []>} : vector<2x257xf32>, vector<257x512xf32>, vector<2x512xf32> -> vector<2x512xf32>
    %29 = arith.addf %25, %28 : vector<2x512xf32>
    %c1_34 = arith.constant 1 : index
    %c0_35 = arith.constant 0 : index
    %c0_36 = arith.constant 0 : index
    %30 = vector.load %arg6[%c1_34, %c0_35, %c0_36] : memref<3x1x512xf32, #tpu.memory_space<vmem>>, vector<1x1x512xf32>
    %31 = vector.shape_cast %30 : vector<1x1x512xf32> to vector<1x512xf32>
    %32 = vector.broadcast %31 : vector<1x512xf32> to vector<2x512xf32>
    %33 = arith.addf %29, %32 : vector<2x512xf32>
    %c0_37 = arith.constant 0 : index
    %c512 = arith.constant 512 : index
    %34 = vector.load %arg7[%c0_37, %c512] : memref<2x1536xf32, #tpu.memory_space<vmem>>, vector<2x512xf32>
    tpu.vector_store %arg7[%c0_37, %c512], %33 {strides = array<i32>} : memref<2x1536xf32, #tpu.memory_space<vmem>>, vector<2x512xf32>,
    %c2 = arith.constant 2 : index
    %c0_38 = arith.constant 0 : index
    %c0_39 = arith.constant 0 : index
    %35 = vector.load %arg1[%c2, %c0_38, %c0_39] : memref<3x2x512xf32, #tpu.memory_space<vmem>>, vector<1x2x512xf32>
    %36 = vector.shape_cast %35 : vector<1x2x512xf32> to vector<2x512xf32>
    %c2_40 = arith.constant 2 : index
    %c0_41 = arith.constant 0 : index
    %c0_42 = arith.constant 0 : index
    %37 = vector.load %arg3[%c2_40, %c0_41, %c0_42] : memref<3x512x32xf32, #tpu.memory_space<vmem>>, vector<1x512x32xf32>
    %38 = vector.shape_cast %37 : vector<1x512x32xf32> to vector<512x32xf32>
    %cst_43 = arith.constant dense<0.000000e+00> : vector<2x32xf32>
    %39 = tpu.matmul %36, %38, %cst_43 {dimension_numbers = #tpu.dot_dimension_numbers<[1], [0], [0], [1], [0, 0, 1, 1], [], []>} : vector<2x512xf32>, vector<512x32xf32>, vector<2x32xf32> -> vector<2x32xf32>
    %c2_44 = arith.constant 2 : index
    %c0_45 = arith.constant 0 : index
    %c0_46 = arith.constant 0 : index
    %40 = vector.load %arg4[%c2_44, %c0_45, %c0_46] : memref<3x32x512xf32, #tpu.memory_space<vmem>>, vector<1x32x512xf32>
    %41 = vector.shape_cast %40 : vector<1x32x512xf32> to vector<32x512xf32>
    %cst_47 = arith.constant dense<0.000000e+00> : vector<2x512xf32>
    %42 = tpu.matmul %39, %41, %cst_47 {dimension_numbers = #tpu.dot_dimension_numbers<[1], [0], [0], [1], [0, 0, 1, 1], [], []>} : vector<2x32xf32>, vector<32x512xf32>, vector<2x512xf32> -> vector<2x512xf32>
    %c2_48 = arith.constant 2 : index
    %c0_49 = arith.constant 0 : index
    %c0_50 = arith.constant 0 : index
    %43 = vector.load %arg5[%c2_48, %c0_49, %c0_50] : memref<3x257x512xf32, #tpu.memory_space<vmem>>, vector<1x257x512xf32>
    %44 = vector.shape_cast %43 : vector<1x257x512xf32> to vector<257x512xf32>
    %cst_51 = arith.constant dense<0.000000e+00> : vector<2x512xf32>
    %45 = tpu.matmul %0, %44, %cst_51 {dimension_numbers = #tpu.dot_dimension_numbers<[1], [0], [0], [1], [0, 0, 1, 1], [], []>} : vector<2x257xf32>, vector<257x512xf32>, vector<2x512xf32> -> vector<2x512xf32>
    %46 = arith.addf %42, %45 : vector<2x512xf32>
    %c2_52 = arith.constant 2 : index
    %c0_53 = arith.constant 0 : index
    %c0_54 = arith.constant 0 : index
    %47 = vector.load %arg6[%c2_52, %c0_53, %c0_54] : memref<3x1x512xf32, #tpu.memory_space<vmem>>, vector<1x1x512xf32>
    %48 = vector.shape_cast %47 : vector<1x1x512xf32> to vector<1x512xf32>
    %49 = vector.broadcast %48 : vector<1x512xf32> to vector<2x512xf32>
    %50 = arith.addf %46, %49 : vector<2x512xf32>
    %c0_55 = arith.constant 0 : index
    %c1024 = arith.constant 1024 : index
    %51 = vector.load %arg7[%c0_55, %c1024] : memref<2x1536xf32, #tpu.memory_space<vmem>>, vector<2x512xf32>
    tpu.vector_store %arg7[%c0_55, %c1024], %50 {strides = array<i32>} : memref<2x1536xf32, #tpu.memory_space<vmem>>, vector<2x512xf32>,
    return
  }
  func.func @transform_0(%arg0: i32) -> (i32, i32, i32) {
    %c0_i32 = arith.constant 0 : i32
    %c0_i32_0 = arith.constant 0 : i32
    %c0_i32_1 = arith.constant 0 : i32
    return %arg0, %c0_i32, %c0_i32_0 : i32, i32, i32
  }
  func.func @transform_1(%arg0: i32) -> (i32, i32) {
    %c0_i32 = arith.constant 0 : i32
    %c0_i32_0 = arith.constant 0 : i32
    %c0_i32_1 = arith.constant 0 : i32
    return %c0_i32, %c0_i32_0 : i32, i32
  }
  func.func @transform_2(%arg0: i32) -> (i32, i32, i32) {
    %c0_i32 = arith.constant 0 : i32
    %c0_i32_0 = arith.constant 0 : i32
    %c0_i32_1 = arith.constant 0 : i32
    return %arg0, %c0_i32, %c0_i32_0 : i32, i32, i32
  }
  func.func @transform_3(%arg0: i32) -> (i32, i32, i32) {
    %c0_i32 = arith.constant 0 : i32
    %c0_i32_0 = arith.constant 0 : i32
    %c0_i32_1 = arith.constant 0 : i32
    return %arg0, %c0_i32, %c0_i32_0 : i32, i32, i32
  }
  func.func @transform_4(%arg0: i32) -> (i32, i32, i32) {
    %c0_i32 = arith.constant 0 : i32
    %c0_i32_0 = arith.constant 0 : i32
    %c0_i32_1 = arith.constant 0 : i32
    return %arg0, %c0_i32, %c0_i32_0 : i32, i32, i32
  }
  func.func @transform_5(%arg0: i32) -> (i32, i32, i32) {
    %c0_i32 = arith.constant 0 : i32
    %c0_i32_0 = arith.constant 0 : i32
    %c0_i32_1 = arith.constant 0 : i32
    return %arg0, %c0_i32, %c0_i32_0 : i32, i32, i32
  }
  func.func @transform_6(%arg0: i32) -> (i32, i32) {
    %c0_i32 = arith.constant 0 : i32
    %c0_i32_0 = arith.constant 0 : i32
    return %c0_i32, %arg0 : i32, i32
  }
}

</mosaic_0001>

<llo_original>
// kernel: rignet_forward.1
$region0: #{rignet_forward.1}
  #allocation0 [shape = 'u32[]', space=smem, size = 0x4, offset = 0x4, fixed_abs, tag = 'smem constant byte address 0x4 - core index']
  #allocation1 [shape = 'u32[144,128]{1,0:T(1,128)}', space=vmem, size = 0x12000, scoped, tag = 'internal scratch']
  %s0 = inlined_call_operand.vmem [shape: f32[18,2,512], index: 0, kind: input, shape index: {}]
  %s1 = inlined_call_operand.vmem [shape: f32[2,257], index: 1, kind: input, shape index: {}]
  %s2 = inlined_call_operand.vmem [shape: f32[18,512,32], index: 2, kind: input, shape index: {}]
  %s3 = inlined_call_operand.vmem [shape: f32[18,32,512], index: 3, kind: input, shape index: {}]
  %s4 = inlined_call_operand.vmem [shape: f32[18,257,512], index: 4, kind: input, shape index: {}]
  %s5 = inlined_call_operand.vmem [shape: f32[18,1,512], index: 5, kind: input, shape index: {}]
  %s6 = inlined_call_operand.hbm [shape: f32[2,9216], index: 6, kind: output, shape index: {}]
  %s7 = sld [smem:[#allocation0]]
  $region57: #{rignet_forward.1} parent=0
    _
  %s9 = ssub.s32 1, %s7
  %s10 = scalar_select 0, %s9, %s7
  $region1: #{rignet_forward.1} parent=0
    #allocation2 [shape = 'u8[24576]{0}', space=vmem, size = 0x6000, scoped, tag = 'output window, operand 0']
    #allocation3 [shape = 's32[2]{0}', space=sflag, size = 0x8, scoped, tag = 'scoped memory for rignet_forward.1']
    %11 = vsyncpa [#allocation3], 0
    %s12 = scalar_lea.sflag [#allocation3], 1
    %13 = vsyncpa %s12, 0
    loop: start=0, step=1, limit=8
    $region2: #{rignet_forward.1} parent=1 // loop_pre_header
      _
    $region3: #{rignet_forward.1} parent=1 // loop_header
      %s15 = sphi 0, %s19
      %p16 = scmp.ge.s32.totalorder %s15, 8
      %s25 = sphi 0, %s27
      %s28 = sphi 0, %s25
      %s29 = sphi 0, %s28
      %s45 = sphi 0, %s29
      %s49 = sphi 0, %s49
      %s51 = sphi 0, %s49
      %s52 = sphi 0, %s51
      %s66 = sphi 0, %s52
      %s72 = sphi 0, %s74
      %s75 = sphi 0, %s72
      %s76 = sphi 0, %s75
      %s92 = sphi 0, %s76
      %s98 = sphi 0, %s100
      %s101 = sphi 0, %s98
      %s102 = sphi 0, %s101
      %s118 = sphi 0, %s102
      %s124 = sphi 0, %s126
      %s127 = sphi 0, %s124
      %s128 = sphi 0, %s127
      %s144 = sphi 0, %s128
      %s150 = sphi 0, %s152
      %s153 = sphi 0, %s150
      %s154 = sphi 0, %s153
      %s170 = sphi 0, %s154
      %s176 = sphi 0, %s178
      %s179 = sphi 0, %s176
      %s180 = sphi 0, %s179
      %s196 = sphi 0, %s180
    $region4: #{rignet_forward.1} parent=1 // loop_header_branch
      %18 = sbr.rel (%p16) target = $region8
    $region5: #{rignet_forward.1} parent=1 // loop_body
      %s20 = ssub.s32 %s15, 1
      %s21 = ssub.s32 %s15, 2
      %s22 = sadd.s32 %s15, 1
      %s23 = ssub.s32 %s15, %s22
      %p24 = scmp.eq.s32.totalorder %s23, 0
      %s26 = sadd.s32 %s25, 1
      %s27 = scalar_select %p24, %s25, %s26
      %p30 = pneg %p24
      %p31 = scmp.eq.s32.totalorder %s15, 5
      %p32 = por %p30, %p31
      %p33 = scmp.ne.s32.totalorder %s25, %s28
      %p34 = scmp.eq.s32.totalorder %s15, 0
      %p35 = por %p33, %p34
      %p36 = scmp.ne.s32.totalorder %s25, %s28
      %p37 = scmp.eq.s32.totalorder %s20, 5
      %p38 = por %p36, %p37
      %p39 = scmp.ne.s32.totalorder %s28, %s29
      %p40 = scmp.eq.s32.totalorder %s20, 0
      %p41 = por %p39, %p40
      %p42 = scmp.ne.s32.totalorder %s28, %s29
      %p43 = scmp.eq.s32.totalorder %s21, 5
      %p44 = por %p42, %p43
      %p46 = scmp.ne.s32.totalorder %s29, %s45
      %p47 = scmp.eq.s32.totalorder %s21, 0
      %p48 = por %p46, %p47
      %s50 = sadd.s32 %s49, 1
      %p53 = scmp.eq.s32.totalorder %s15, 5
      %p54 = scmp.ne.s32.totalorder %s49, %s51
      %p55 = scmp.eq.s32.totalorder %s15, 0
      %p56 = por %p54, %p55
      %p57 = scmp.ne.s32.totalorder %s49, %s51
      %p58 = scmp.eq.s32.totalorder %s20, 5
      %p59 = por %p57, %p58
      %p60 = scmp.ne.s32.totalorder %s51, %s52
      %p61 = scmp.eq.s32.totalorder %s20, 0
      %p62 = por %p60, %p61
      %p63 = scmp.ne.s32.totalorder %s51, %s52
      %p64 = scmp.eq.s32.totalorder %s21, 5
      %p65 = por %p63, %p64
      %p67 = scmp.ne.s32.totalorder %s52, %s66
      %p68 = scmp.eq.s32.totalorder %s21, 0
      %p69 = por %p67, %p68
      %s70 = ssub.s32 %s15, %s22
      %p71 = scmp.eq.s32.totalorder %s70, 0
      %s73 = sadd.s32 %s72, 1
      %s74 = scalar_select %p71, %s72, %s73
      %p77 = pneg %p71
      %p78 = scmp.eq.s32.totalorder %s15, 5
      %p79 = por %p77, %p78
      %p80 = scmp.ne.s32.totalorder %s72, %s75
      %p81 = scmp.eq.s32.totalorder %s15, 0
      %p82 = por %p80, %p81
      %p83 = scmp.ne.s32.totalorder %s72, %s75
      %p84 = scmp.eq.s32.totalorder %s20, 5
      %p85 = por %p83, %p84
      %p86 = scmp.ne.s32.totalorder %s75, %s76
      %p87 = scmp.eq.s32.totalorder %s20, 0
      %p88 = por %p86, %p87
      %p89 = scmp.ne.s32.totalorder %s75, %s76
      %p90 = scmp.eq.s32.totalorder %s21, 5
      %p91 = por %p89, %p90
      %p93 = scmp.ne.s32.totalorder %s76, %s92
      %p94 = scmp.eq.s32.totalorder %s21, 0
      %p95 = por %p93, %p94
      %s96 = ssub.s32 %s15, %s22
      %p97 = scmp.eq.s32.totalorder %s96, 0
      %s99 = sadd.s32 %s98, 1
      %s100 = scalar_select %p97, %s98, %s99
      %p103 = pneg %p97
      %p104 = scmp.eq.s32.totalorder %s15, 5
      %p105 = por %p103, %p104
      %p106 = scmp.ne.s32.totalorder %s98, %s101
      %p107 = scmp.eq.s32.totalorder %s15, 0
      %p108 = por %p106, %p107
      %p109 = scmp.ne.s32.totalorder %s98, %s101
      %p110 = scmp.eq.s32.totalorder %s20, 5
      %p111 = por %p109, %p110
      %p112 = scmp.ne.s32.totalorder %s101, %s102
      %p113 = scmp.eq.s32.totalorder %s20, 0
      %p114 = por %p112, %p113
      %p115 = scmp.ne.s32.totalorder %s101, %s102
      %p116 = scmp.eq.s32.totalorder %s21, 5
      %p117 = por %p115, %p116
      %p119 = scmp.ne.s32.totalorder %s102, %s118
      %p120 = scmp.eq.s32.totalorder %s21, 0
      %p121 = por %p119, %p120
      %s122 = ssub.s32 %s15, %s22
      %p123 = scmp.eq.s32.totalorder %s122, 0
      %s125 = sadd.s32 %s124, 1
      %s126 = scalar_select %p123, %s124, %s125
      %p129 = pneg %p123
      %p130 = scmp.eq.s32.totalorder %s15, 5
      %p131 = por %p129, %p130
      %p132 = scmp.ne.s32.totalorder %s124, %s127
      %p133 = scmp.eq.s32.totalorder %s15, 0
      %p134 = por %p132, %p133
      %p135 = scmp.ne.s32.totalorder %s124, %s127
      %p136 = scmp.eq.s32.totalorder %s20, 5
      %p137 = por %p135, %p136
      %p138 = scmp.ne.s32.totalorder %s127, %s128
      %p139 = scmp.eq.s32.totalorder %s20, 0
      %p140 = por %p138, %p139
      %p141 = scmp.ne.s32.totalorder %s127, %s128
      %p142 = scmp.eq.s32.totalorder %s21, 5
      %p143 = por %p141, %p142
      %p145 = scmp.ne.s32.totalorder %s128, %s144
      %p146 = scmp.eq.s32.totalorder %s21, 0
      %p147 = por %p145, %p146
      %s148 = ssub.s32 %s15, %s22
      %p149 = scmp.eq.s32.totalorder %s148, 0
      %s151 = sadd.s32 %s150, 1
      %s152 = scalar_select %p149, %s150, %s151
      %p155 = pneg %p149
      %p156 = scmp.eq.s32.totalorder %s15, 5
      %p157 = por %p155, %p156
      %p158 = scmp.ne.s32.totalorder %s150, %s153
      %p159 = scmp.eq.s32.totalorder %s15, 0
      %p160 = por %p158, %p159
      %p161 = scmp.ne.s32.totalorder %s150, %s153
      %p162 = scmp.eq.s32.totalorder %s20, 5
      %p163 = por %p161, %p162
      %p164 = scmp.ne.s32.totalorder %s153, %s154
      %p165 = scmp.eq.s32.totalorder %s20, 0
      %p166 = por %p164, %p165
      %p167 = scmp.ne.s32.totalorder %s153, %s154
      %p168 = scmp.eq.s32.totalorder %s21, 5
      %p169 = por %p167, %p168
      %p171 = scmp.ne.s32.totalorder %s154, %s170
      %p172 = scmp.eq.s32.totalorder %s21, 0
      %p173 = por %p171, %p172
      %s174 = ssub.s32 %s15, %s22
      %p175 = scmp.eq.s32.totalorder %s174, 0
      %s177 = sadd.s32 %s176, 1
      %s178 = scalar_select %p175, %s176, %s177
      %p181 = pneg %p175
      %p182 = scmp.eq.s32.totalorder %s15, 5
      %p183 = por %p181, %p182
      %p184 = scmp.ne.s32.totalorder %s176, %s179
      %p185 = scmp.eq.s32.totalorder %s15, 0
      %p186 = por %p184, %p185
      %p187 = scmp.ne.s32.totalorder %s176, %s179
      %p188 = scmp.eq.s32.totalorder %s20, 5
      %p189 = por %p187, %p188
      %p190 = scmp.ne.s32.totalorder %s179, %s180
      %p191 = scmp.eq.s32.totalorder %s20, 0
      %p192 = por %p190, %p191
      %p193 = scmp.ne.s32.totalorder %s179, %s180
      %p194 = scmp.eq.s32.totalorder %s21, 5
      %p195 = por %p193, %p194
      %p197 = scmp.ne.s32.totalorder %s180, %s196
      %p198 = scmp.eq.s32.totalorder %s21, 0
      %p199 = por %p197, %p198
      %p200 = scmp.le.s32.totalorder 1, %s15
      %p201 = scmp.lt.s32.totalorder %s15, 7
      %p202 = pnand %p200, %p201
      %p203 = pneg %p202
      // Predicated region
      $region9: #{rignet_forward.1} parent=5 // pred_check
        _
      $region10: #{rignet_forward.1} parent=5 // pred_check_branch
        %205 = sbr.rel (%p202) target = $region12
      $region11: #{rignet_forward.1} parent=5 // pred_region
        %s206 = ssub.s32 %s15, 1
        // Predicated region
        $region13: #{rignet_forward.1} parent=11 // pred_check
          %p207 = pneg %p62
        $region14: #{rignet_forward.1} parent=11 // pred_check_branch
          %209 = sbr.rel (%p207) target = $region16
        $region15: #{rignet_forward.1} parent=11 // pred_region
          _
        $region16: #{rignet_forward.1} parent=11 // pred_fallthru
          _
      $region12: #{rignet_forward.1} parent=5 // pred_fallthru
        _
      %p210 = scmp.lt.s32.totalorder %s15, 6
      // Predicated region
      $region17: #{rignet_forward.1} parent=5 // pred_check
        %p211 = pneg %p210
      $region18: #{rignet_forward.1} parent=5 // pred_check_branch
        %213 = sbr.rel (%p211) target = $region20
      $region19: #{rignet_forward.1} parent=5 // pred_region
        // Predicated region
        $region21: #{rignet_forward.1} parent=19 // pred_check
          %p214 = pneg %p35
        $region22: #{rignet_forward.1} parent=19 // pred_check_branch
          %216 = sbr.rel (%p214) target = $region24
        $region23: #{rignet_forward.1} parent=19 // pred_region
          %s217 = smul.u32 3, %s15
          %p218 = scmp.lt.s32.totalorder %s217, 17
          %s219 = scalar_select %p218, %s217, 17
          %s220 = smul.addr %s219, 4
          %s221 = smul.addr %s220, 2
          %s222 = scalar_lea.vmem %s0, %s221
          %s223 = smul.u32 3, %s15
        $region24: #{rignet_forward.1} parent=19 // pred_fallthru
          _
        // Predicated region
        $region25: #{rignet_forward.1} parent=19 // pred_check
          %p224 = pneg %p82
        $region26: #{rignet_forward.1} parent=19 // pred_check_branch
          %226 = sbr.rel (%p224) target = $region28
        $region27: #{rignet_forward.1} parent=19 // pred_region
          %s227 = smul.u32 3, %s15
          %p228 = scmp.lt.s32.totalorder %s227, 17
          %s229 = scalar_select %p228, %s227, 17
          %s230 = smul.addr %s229, 64
          %s231 = smul.addr %s230, 8
          %s232 = scalar_lea.vmem %s2, %s231
          %s233 = smul.u32 3, %s15
        $region28: #{rignet_forward.1} parent=19 // pred_fallthru
          _
        // Predicated region
        $region29: #{rignet_forward.1} parent=19 // pred_check
          %p234 = pneg %p108
        $region30: #{rignet_forward.1} parent=19 // pred_check_branch
          %236 = sbr.rel (%p234) target = $region32
        $region31: #{rignet_forward.1} parent=19 // pred_region
          %s237 = smul.u32 3, %s15
          %p238 = scmp.lt.s32.totalorder %s237, 17
          %s239 = scalar_select %p238, %s237, 17
          %s240 = smul.addr %s239, 16
          %s241 = smul.addr %s240, 8
          %s242 = scalar_lea.vmem %s3, %s241
          %s243 = smul.u32 3, %s15
        $region32: #{rignet_forward.1} parent=19 // pred_fallthru
          _
        // Predicated region
        $region33: #{rignet_forward.1} parent=19 // pred_check
          %p244 = pneg %p134
        $region34: #{rignet_forward.1} parent=19 // pred_check_branch
          %246 = sbr.rel (%p244) target = $region36
        $region35: #{rignet_forward.1} parent=19 // pred_region
          %s247 = smul.u32 3, %s15
          %p248 = scmp.lt.s32.totalorder %s247, 17
          %s249 = scalar_select %p248, %s247, 17
          %s250 = smul.addr %s249, 132
          %s251 = smul.addr %s250, 8
          %s252 = scalar_lea.vmem %s4, %s251
          %s253 = smul.u32 3, %s15
        $region36: #{rignet_forward.1} parent=19 // pred_fallthru
          _
        // Predicated region
        $region37: #{rignet_forward.1} parent=19 // pred_check
          %p254 = pneg %p160
        $region38: #{rignet_forward.1} parent=19 // pred_check_branch
          %256 = sbr.rel (%p254) target = $region40
        $region39: #{rignet_forward.1} parent=19 // pred_region
          %s257 = smul.u32 3, %s15
          %p258 = scmp.lt.s32.totalorder %s257, 17
          %s259 = scalar_select %p258, %s257, 17
          %s260 = smul.addr %s259, 4
          %s261 = scalar_lea.vmem %s5, %s260
          %s262 = smul.u32 3, %s15
        $region40: #{rignet_forward.1} parent=19 // pred_fallthru
          _
      $region20: #{rignet_forward.1} parent=5 // pred_fallthru
        _
      %p263 = scmp.le.s32.totalorder 1, %s15
      %p264 = scmp.lt.s32.totalorder %s15, 7
      %p265 = pnand %p263, %p264
      %p266 = pneg %p265
      // Predicated region
      $region41: #{rignet_forward.1} parent=5 // pred_check
        _
      $region42: #{rignet_forward.1} parent=5 // pred_check_branch
        %268 = sbr.rel (%p265) target = $region44
      $region43: #{rignet_forward.1} parent=5 // pred_region
        %s269 = ssub.s32 %s15, 1
        %s270 = smul.u32 3, %s20
        %p271 = scmp.lt.s32.totalorder %s270, 17
        %s272 = scalar_select %p271, %s270, 17
        %s273 = smul.addr %s272, 4
        %s274 = smul.addr %s273, 2
        %s275 = scalar_lea.vmem %s0, %s274
        %p276 = pneg %p41
        %p277 = pneg %p38
        %p278 = pneg %p62
        %p279 = pneg %p59
        %s280 = smul.u32 3, %s20
        %p281 = scmp.lt.s32.totalorder %s280, 17
        %s282 = scalar_select %p281, %s280, 17
        %s283 = smul.addr %s282, 64
        %s284 = smul.addr %s283, 8
        %s285 = scalar_lea.vmem %s2, %s284
        %p286 = pneg %p88
        %p287 = pneg %p85
        %s288 = smul.u32 3, %s20
        %p289 = scmp.lt.s32.totalorder %s288, 17
        %s290 = scalar_select %p289, %s288, 17
        %s291 = smul.addr %s290, 16
        %s292 = smul.addr %s291, 8
        %s293 = scalar_lea.vmem %s3, %s292
        %p294 = pneg %p114
        %p295 = pneg %p111
        %s296 = smul.u32 3, %s20
        %p297 = scmp.lt.s32.totalorder %s296, 17
        %s298 = scalar_select %p297, %s296, 17
        %s299 = smul.addr %s298, 132
        %s300 = smul.addr %s299, 8
        %s301 = scalar_lea.vmem %s4, %s300
        %p302 = pneg %p140
        %p303 = pneg %p137
        %s304 = smul.u32 3, %s20
        %p305 = scmp.lt.s32.totalorder %s304, 17
        %s306 = scalar_select %p305, %s304, 17
        %s307 = smul.addr %s306, 4
        %s308 = scalar_lea.vmem %s5, %s307
        %p309 = pneg %p166
        %p310 = pneg %p163
        %p311 = pneg %p192
        %p312 = pneg %p189
        %s313 = sand.u32 %s179, 1
        %s314 = scalar_lea.sflag [#allocation3], %s313
        %s315 = sand.u32 %s179, 1
        %s316 = smul.addr %s315, 24
        %s317 = scalar_lea.vmem [#allocation2], %s316
        %s318 = smul.u32 3, %s20
        %p319 = scmp.lt.s32.totalorder %s318, 17
        %s320 = scalar_select %p319, %s318, 17
        %s321 = smul.addr %s320, 4
        %s322 = smul.addr %s321, 2
        %s323 = scalar_lea.vmem %s0, %s322
        %s324 = smul.u32 3, %s20
        %s325 = smul.u32 3, %s20
        %p326 = scmp.lt.s32.totalorder %s325, 17
        %s327 = scalar_select %p326, %s325, 17
        %s328 = smul.addr %s327, 64
        %s329 = smul.addr %s328, 8
        %s330 = scalar_lea.vmem %s2, %s329
        %s331 = smul.u32 3, %s20
        %s332 = smul.u32 3, %s20
        %p333 = scmp.lt.s32.totalorder %s332, 17
        %s334 = scalar_select %p333, %s332, 17
        %s335 = smul.addr %s334, 16
        %s336 = smul.addr %s335, 8
        %s337 = scalar_lea.vmem %s3, %s336
        %s338 = smul.u32 3, %s20
        %s339 = smul.u32 3, %s20
        %p340 = scmp.lt.s32.totalorder %s339, 17
        %s341 = scalar_select %p340, %s339, 17
        %s342 = smul.addr %s341, 132
        %s343 = smul.addr %s342, 8
        %s344 = scalar_lea.vmem %s4, %s343
        %s345 = smul.u32 3, %s20
        %s346 = smul.u32 3, %s20
        %p347 = scmp.lt.s32.totalorder %s346, 17
        %s348 = scalar_select %p347, %s346, 17
        %s349 = smul.addr %s348, 4
        %s350 = scalar_lea.vmem %s5, %s349
        %s351 = smul.u32 3, %s20
        %s352 = smul.u32 12, %s20
        %v353 = vld [vmem:[%s1] sm:$0x3f]
        %v354 = vld [vmem:[%s323] sm:$0xff]
        %v355 = vld [vmem:[%s330] sm:$0xff]
        %v356 = vld [vmem:[%s330 + $0x8] sm:$0xff]
        %v357 = vld [vmem:[%s330 + $0x10] sm:$0xff]
        %v358 = vld [vmem:[%s330 + $0x18] sm:$0xff]
        %v359 = vld [vmem:[%s330 + $0x20] sm:$0xff]
        %v360 = vld [vmem:[%s330 + $0x28] sm:$0xff]
        %v361 = vld [vmem:[%s330 + $0x30] sm:$0xff]
        %v362 = vld [vmem:[%s330 + $0x38] sm:$0xff]
        %v363 = vld [vmem:[%s330 + $0x40] sm:$0xff]
        %v364 = vld [vmem:[%s330 + $0x48] sm:$0xff]
        %v365 = vld [vmem:[%s330 + $0x50] sm:$0xff]
        %v366 = vld [vmem:[%s330 + $0x58] sm:$0xff]
        %v367 = vld [vmem:[%s330 + $0x60] sm:$0xff]
        %v368 = vld [vmem:[%s330 + $0x68] sm:$0xff]
        %v369 = vld [vmem:[%s330 + $0x70] sm:$0xff]
        %v370 = vld [vmem:[%s330 + $0x78] sm:$0xff]
        %v371 = vld [vmem:[%s330 + $0x80] sm:$0xff]
        %v372 = vld [vmem:[%s330 + $0x88] sm:$0xff]
        %v373 = vld [vmem:[%s330 + $0x90] sm:$0xff]
        %v374 = vld [vmem:[%s330 + $0x98] sm:$0xff]
        %v375 = vld [vmem:[%s330 + $0xa0] sm:$0xff]
        %v376 = vld [vmem:[%s330 + $0xa8] sm:$0xff]
        %v377 = vld [vmem:[%s330 + $0xb0] sm:$0xff]
        %v378 = vld [vmem:[%s330 + $0xb8] sm:$0xff]
        %v379 = vld [vmem:[%s330 + $0xc0] sm:$0xff]
        %v380 = vld [vmem:[%s330 + $0xc8] sm:$0xff]
        %v381 = vld [vmem:[%s330 + $0xd0] sm:$0xff]
        %v382 = vld [vmem:[%s330 + $0xd8] sm:$0xff]
        %v383 = vld [vmem:[%s330 + $0xe0] sm:$0xff]
        %v384 = vld [vmem:[%s330 + $0xe8] sm:$0xff]
        %v385 = vld [vmem:[%s330 + $0xf0] sm:$0xff]
        %v386 = vld [vmem:[%s330 + $0xf8] sm:$0xff]
        %v387 = vld [vmem:[%s330 + $0x100] sm:$0xff]
        %v388 = vld [vmem:[%s330 + $0x108] sm:$0xff]
        %v389 = vld [vmem:[%s330 + $0x110] sm:$0xff]
        %v390 = vld [vmem:[%s330 + $0x118] sm:$0xff]
        %v391 = vld [vmem:[%s330 + $0x120] sm:$0xff]
        %v392 = vld [vmem:[%s330 + $0x128] sm:$0xff]
        %v393 = vld [vmem:[%s330 + $0x130] sm:$0xff]
        %v394 = vld [vmem:[%s330 + $0x138] sm:$0xff]
        %v395 = vld [vmem:[%s330 + $0x140] sm:$0xff]
        %v396 = vld [vmem:[%s330 + $0x148] sm:$0xff]
        %v397 = vld [vmem:[%s330 + $0x150] sm:$0xff]
        %v398 = vld [vmem:[%s330 + $0x158] sm:$0xff]
        %v399 = vld [vmem:[%s330 + $0x160] sm:$0xff]
        %v400 = vld [vmem:[%s330 + $0x168] sm:$0xff]
        %v401 = vld [vmem:[%s330 + $0x170] sm:$0xff]
        %v402 = vld [vmem:[%s330 + $0x178] sm:$0xff]
        %v403 = vld [vmem:[%s330 + $0x180] sm:$0xff]
        %v404 = vld [vmem:[%s330 + $0x188] sm:$0xff]
        %v405 = vld [vmem:[%s330 + $0x190] sm:$0xff]
        %v406 = vld [vmem:[%s330 + $0x198] sm:$0xff]
        %v407 = vld [vmem:[%s330 + $0x1a0] sm:$0xff]
        %v408 = vld [vmem:[%s330 + $0x1a8] sm:$0xff]
        %v409 = vld [vmem:[%s330 + $0x1b0] sm:$0xff]
        %v410 = vld [vmem:[%s330 + $0x1b8] sm:$0xff]
        %v411 = vld [vmem:[%s330 + $0x1c0] sm:$0xff]
        %v412 = vld [vmem:[%s330 + $0x1c8] sm:$0xff]
        %v413 = vld [vmem:[%s330 + $0x1d0] sm:$0xff]
        %v414 = vld [vmem:[%s330 + $0x1d8] sm:$0xff]
        %v415 = vld [vmem:[%s330 + $0x1e0] sm:$0xff]
        %v416 = vld [vmem:[%s330 + $0x1e8] sm:$0xff]
        %v417 = vld [vmem:[%s330 + $0x1f0] sm:$0xff]
        %v418 = vld [vmem:[%s330 + $0x1f8] sm:$0xff]
        %v420 = vcombine.high %v354, %v354
        %v422 = vunpack.c.l.s4 1983009808
        %v423 = vunpack.c.0.s8 %v422
        %v424 = vlaneseq
        %v425 = vshrl.u32 %v424, 7
        %v426 = vsub.s32 %v423, %v425
        %v427 = vrot.slane %v354, %v426
        %v429 = vunpack.c.l.s4 1983009808
        %v430 = vunpack.c.0.s8 %v429
        %v431 = vlaneseq
        %v432 = vshrl.u32 %v431, 7
        %v433 = vsub.s32 %v430, %v432
        %v434 = vrot.slane %v420, %v433
        %v435 = vcombine.high %v427, %v427
        %v436 = vcombine.high %v434, %v434
        %441 = vmatprep.subr.mxu0 0.0
        %442 = vmatpush1.msra.mxu0 %v355
        %443 = vmatprep.subr.mxu0 0.0
        %444 = vmatpush1.msra.mxu0 %v356
        %445 = vmatprep.subr.mxu0 0.0
        %446 = vmatpush1.msra.mxu0 %v357
        %447 = vmatprep.subr.mxu0 0.0
        %448 = vmatpush1.msra.mxu0 %v358
        %449 = vmatprep.subr.mxu0 0.0
        %450 = vmatpush1.msra.mxu0 %v359
        %451 = vmatprep.subr.mxu0 0.0
        %452 = vmatpush1.msra.mxu0 %v360
        %453 = vmatprep.subr.mxu0 0.0
        %454 = vmatpush1.msra.mxu0 %v361
        %455 = vmatprep.subr.mxu0 0.0
        %456 = vmatpush1.msra.mxu0 %v362
        %457 = vmatprep.subr.mxu0 0.0
        %458 = vmatpush1.msra.mxu0 %v363
        %459 = vmatprep.subr.mxu0 0.0
        %460 = vmatpush1.msra.mxu0 %v364
        %461 = vmatprep.subr.mxu0 0.0
        %462 = vmatpush1.msra.mxu0 %v365
        %463 = vmatprep.subr.mxu0 0.0
        %464 = vmatpush1.msra.mxu0 %v366
        %465 = vmatprep.subr.mxu0 0.0
        %466 = vmatpush1.msra.mxu0 %v367
        %467 = vmatprep.subr.mxu0 0.0
        %468 = vmatpush1.msra.mxu0 %v368
        %469 = vmatprep.subr.mxu0 0.0
        %470 = vmatpush1.msra.mxu0 %v369
        %471 = vmatprep.subr.mxu0 0.0
        %472 = vmatpush1.msra.mxu0 %v370
        %473 = vmatprep.subr.mxu0 0.0
        %474 = vmatpush1.msra.mxu0 %v371
        %475 = vmatprep.subr.mxu0 0.0
        %476 = vmatpush1.msra.mxu0 %v372
        %477 = vmatprep.subr.mxu0 0.0
        %478 = vmatpush1.msra.mxu0 %v373
        %479 = vmatprep.subr.mxu0 0.0
        %480 = vmatpush1.msra.mxu0 %v374
        %481 = vmatprep.subr.mxu0 0.0
        %482 = vmatpush1.msra.mxu0 %v375
        %483 = vmatprep.subr.mxu0 0.0
        %484 = vmatpush1.msra.mxu0 %v376
        %485 = vmatprep.subr.mxu0 0.0
        %486 = vmatpush1.msra.mxu0 %v377
        %487 = vmatprep.subr.mxu0 0.0
        %488 = vmatpush1.msra.mxu0 %v378
        %489 = vmatprep.subr.mxu0 0.0
        %490 = vmatpush1.msra.mxu0 %v379
        %491 = vmatprep.subr.mxu0 0.0
        %492 = vmatpush1.msra.mxu0 %v380
        %493 = vmatprep.subr.mxu0 0.0
        %494 = vmatpush1.msra.mxu0 %v381
        %495 = vmatprep.subr.mxu0 0.0
        %496 = vmatpush1.msra.mxu0 %v382
        %497 = vmatprep.subr.mxu0 0.0
        %498 = vmatpush1.msra.mxu0 %v383
        %499 = vmatprep.subr.mxu0 0.0
        %500 = vmatpush1.msra.mxu0 %v384
        %501 = vmatprep.subr.mxu0 0.0
        %502 = vmatpush1.msra.mxu0 %v385
        %503 = vmatprep.subr.mxu0 0.0
        %504 = vmatpush1.msra.mxu0 %v386
        %505 = vmatprep.mubr.f32.mxu0 %v435
        %506 = vmatmul.mubr.f32.gmra.mrb[0].mxu0 %v427
        %v507 = vpop.f32.mrb[0].mxu0
        %v508 = vadd.f32 0.0, %v507
        %v509 = vpop.f32.mrb[0].mxu0
        %510 = vdwg.mxu0
        %511 = vmatprep.subr.mxu0 0.0
        %512 = vmatpush1.msra.mxu0 %v387
        %513 = vmatprep.subr.mxu0 0.0
        %514 = vmatpush1.msra.mxu0 %v388
        %515 = vmatprep.subr.mxu0 0.0
        %516 = vmatpush1.msra.mxu0 %v389
        %517 = vmatprep.subr.mxu0 0.0
        %518 = vmatpush1.msra.mxu0 %v390
        %519 = vmatprep.subr.mxu0 0.0
        %520 = vmatpush1.msra.mxu0 %v391
        %521 = vmatprep.subr.mxu0 0.0
        %522 = vmatpush1.msra.mxu0 %v392
        %523 = vmatprep.subr.mxu0 0.0
        %524 = vmatpush1.msra.mxu0 %v393
        %525 = vmatprep.subr.mxu0 0.0
        %526 = vmatpush1.msra.mxu0 %v394
        %527 = vmatprep.subr.mxu0 0.0
        %528 = vmatpush1.msra.mxu0 %v395
        %529 = vmatprep.subr.mxu0 0.0
        %530 = vmatpush1.msra.mxu0 %v396
        %531 = vmatprep.subr.mxu0 0.0
        %532 = vmatpush1.msra.mxu0 %v397
        %533 = vmatprep.subr.mxu0 0.0
        %534 = vmatpush1.msra.mxu0 %v398
        %535 = vmatprep.subr.mxu0 0.0
        %536 = vmatpush1.msra.mxu0 %v399
        %537 = vmatprep.subr.mxu0 0.0
        %538 = vmatpush1.msra.mxu0 %v400
        %539 = vmatprep.subr.mxu0 0.0
        %540 = vmatpush1.msra.mxu0 %v401
        %541 = vmatprep.subr.mxu0 0.0
        %542 = vmatpush1.msra.mxu0 %v402
        %543 = vmatprep.subr.mxu0 0.0
        %544 = vmatpush1.msra.mxu0 %v403
        %545 = vmatprep.subr.mxu0 0.0
        %546 = vmatpush1.msra.mxu0 %v404
        %547 = vmatprep.subr.mxu0 0.0
        %548 = vmatpush1.msra.mxu0 %v405
        %549 = vmatprep.subr.mxu0 0.0
        %550 = vmatpush1.msra.mxu0 %v406
        %551 = vmatprep.subr.mxu0 0.0
        %552 = vmatpush1.msra.mxu0 %v407
        %553 = vmatprep.subr.mxu0 0.0
        %554 = vmatpush1.msra.mxu0 %v408
        %555 = vmatprep.subr.mxu0 0.0
        %556 = vmatpush1.msra.mxu0 %v409
        %557 = vmatprep.subr.mxu0 0.0
        %558 = vmatpush1.msra.mxu0 %v410
        %559 = vmatprep.subr.mxu0 0.0
        %560 = vmatpush1.msra.mxu0 %v411
        %561 = vmatprep.subr.mxu0 0.0
        %562 = vmatpush1.msra.mxu0 %v412
        %563 = vmatprep.subr.mxu0 0.0
        %564 = vmatpush1.msra.mxu0 %v413
        %565 = vmatprep.subr.mxu0 0.0
        %566 = vmatpush1.msra.mxu0 %v414
        %567 = vmatprep.subr.mxu0 0.0
        %568 = vmatpush1.msra.mxu0 %v415
        %569 = vmatprep.subr.mxu0 0.0
        %570 = vmatpush1.msra.mxu0 %v416
        %571 = vmatprep.subr.mxu0 0.0
        %572 = vmatpush1.msra.mxu0 %v417
        %573 = vmatprep.subr.mxu0 0.0
        %574 = vmatpush1.msra.mxu0 %v418
        %575 = vmatprep.mubr.f32.mxu0 %v436
        %576 = vmatmul.mubr.f32.gmra.mrb[0].mxu0 %v434
        %v577 = vpop.f32.mrb[0].mxu0
        %v578 = vadd.f32 %v508, %v577
        %v579 = vpop.f32.mrb[0].mxu0
        %580 = vdwg.mxu0
        %v581 = vld [vmem:[%s337] sm:$0xff]
        %v582 = vld [vmem:[%s337 + $0x8] sm:$0xff]
        %v583 = vld [vmem:[%s337 + $0x10] sm:$0xff]
        %v584 = vld [vmem:[%s337 + $0x18] sm:$0xff]
        %v585 = vld [vmem:[%s337 + $0x20] sm:$0xff]
        %v586 = vld [vmem:[%s337 + $0x28] sm:$0xff]
        %v587 = vld [vmem:[%s337 + $0x30] sm:$0xff]
        %v588 = vld [vmem:[%s337 + $0x38] sm:$0xff]
        %v589 = vld [vmem:[%s337 + $0x40] sm:$0xff]
        %v590 = vld [vmem:[%s337 + $0x48] sm:$0xff]
        %v591 = vld [vmem:[%s337 + $0x50] sm:$0xff]
        %v592 = vld [vmem:[%s337 + $0x58] sm:$0xff]
        %v593 = vld [vmem:[%s337 + $0x60] sm:$0xff]
        %v594 = vld [vmem:[%s337 + $0x68] sm:$0xff]
        %v595 = vld [vmem:[%s337 + $0x70] sm:$0xff]
        %v596 = vld [vmem:[%s337 + $0x78] sm:$0xff]
        %v597 = vld [vmem:[%s344] sm:$0xff]
        %v598 = vld [vmem:[%s344 + $0x8] sm:$0xff]
        %v599 = vld [vmem:[%s344 + $0x10] sm:$0xff]
        %v600 = vld [vmem:[%s344 + $0x18] sm:$0xff]
        %v601 = vld [vmem:[%s344 + $0x20] sm:$0xff]
        %v602 = vld [vmem:[%s344 + $0x28] sm:$0xff]
        %v603 = vld [vmem:[%s344 + $0x30] sm:$0xff]
        %v604 = vld [vmem:[%s344 + $0x38] sm:$0xff]
        %v605 = vld [vmem:[%s344 + $0x40] sm:$0xff]
        %v606 = vld [vmem:[%s344 + $0x48] sm:$0xff]
        %v607 = vld [vmem:[%s344 + $0x50] sm:$0xff]
        %v608 = vld [vmem:[%s344 + $0x58] sm:$0xff]
        %v609 = vld [vmem:[%s344 + $0x60] sm:$0xff]
        %v610 = vld [vmem:[%s344 + $0x68] sm:$0xff]
        %v611 = vld [vmem:[%s344 + $0x70] sm:$0xff]
        %v612 = vld [vmem:[%s344 + $0x78] sm:$0xff]
        %v613 = vld [vmem:[%s344 + $0x80] sm:$0xff]
        %v614 = vld [vmem:[%s344 + $0x88] sm:$0xff]
        %v615 = vld [vmem:[%s344 + $0x90] sm:$0xff]
        %v616 = vld [vmem:[%s344 + $0x98] sm:$0xff]
        %v617 = vld [vmem:[%s344 + $0xa0] sm:$0xff]
        %v618 = vld [vmem:[%s344 + $0xa8] sm:$0xff]
        %v619 = vld [vmem:[%s344 + $0xb0] sm:$0xff]
        %v620 = vld [vmem:[%s344 + $0xb8] sm:$0xff]
        %v621 = vld [vmem:[%s344 + $0xc0] sm:$0xff]
        %v622 = vld [vmem:[%s344 + $0xc8] sm:$0xff]
        %v623 = vld [vmem:[%s344 + $0xd0] sm:$0xff]
        %v624 = vld [vmem:[%s344 + $0xd8] sm:$0xff]
        %v625 = vld [vmem:[%s344 + $0xe0] sm:$0xff]
        %v626 = vld [vmem:[%s344 + $0xe8] sm:$0xff]
        %v627 = vld [vmem:[%s344 + $0xf0] sm:$0xff]
        %v628 = vld [vmem:[%s344 + $0xf8] sm:$0xff]
        %v629 = vld [vmem:[%s344 + $0x100] sm:$0xff]
        %v630 = vld [vmem:[%s344 + $0x108] sm:$0xff]
        %v631 = vld [vmem:[%s344 + $0x110] sm:$0xff]
        %v632 = vld [vmem:[%s344 + $0x118] sm:$0xff]
        %v633 = vld [vmem:[%s344 + $0x120] sm:$0xff]
        %v634 = vld [vmem:[%s344 + $0x128] sm:$0xff]
        %v635 = vld [vmem:[%s344 + $0x130] sm:$0xff]
        %v636 = vld [vmem:[%s344 + $0x138] sm:$0xff]
        %v637 = vld [vmem:[%s344 + $0x140] sm:$0xff]
        %v638 = vld [vmem:[%s344 + $0x148] sm:$0xff]
        %v639 = vld [vmem:[%s344 + $0x150] sm:$0xff]
        %v640 = vld [vmem:[%s344 + $0x158] sm:$0xff]
        %v641 = vld [vmem:[%s344 + $0x160] sm:$0xff]
        %v642 = vld [vmem:[%s344 + $0x168] sm:$0xff]
        %v643 = vld [vmem:[%s344 + $0x170] sm:$0xff]
        %v644 = vld [vmem:[%s344 + $0x178] sm:$0xff]
        %v645 = vld [vmem:[%s344 + $0x180] sm:$0xff]
        %v646 = vld [vmem:[%s344 + $0x188] sm:$0xff]
        %v647 = vld [vmem:[%s344 + $0x190] sm:$0xff]
        %v648 = vld [vmem:[%s344 + $0x198] sm:$0xff]
        %v649 = vld [vmem:[%s344 + $0x1a0] sm:$0xff]
        %v650 = vld [vmem:[%s344 + $0x1a8] sm:$0xff]
        %v651 = vld [vmem:[%s344 + $0x1b0] sm:$0xff]
        %v652 = vld [vmem:[%s344 + $0x1b8] sm:$0xff]
        %v653 = vld [vmem:[%s344 + $0x1c0] sm:$0xff]
        %v654 = vld [vmem:[%s344 + $0x1c8] sm:$0xff]
        %v655 = vld [vmem:[%s344 + $0x1d0] sm:$0xff]
        %v656 = vld [vmem:[%s344 + $0x1d8] sm:$0xff]
        %v657 = vld [vmem:[%s344 + $0x1e0] sm:$0xff]
        %v658 = vld [vmem:[%s344 + $0x1e8] sm:$0xff]
        %v659 = vld [vmem:[%s344 + $0x1f0] sm:$0xff]
        %v660 = vld [vmem:[%s344 + $0x1f8] sm:$0xff]
        %v661 = vld [vmem:[%s344 + $0x200] sm:$0xff]
        %v662 = vld [vmem:[%s344 + $0x208] sm:$0xff]
        %v663 = vld [vmem:[%s344 + $0x210] sm:$0xff]
        %v664 = vld [vmem:[%s344 + $0x218] sm:$0xff]
        %v665 = vld [vmem:[%s344 + $0x220] sm:$0xff]
        %v666 = vld [vmem:[%s344 + $0x228] sm:$0xff]
        %v667 = vld [vmem:[%s344 + $0x230] sm:$0xff]
        %v668 = vld [vmem:[%s344 + $0x238] sm:$0xff]
        %v669 = vld [vmem:[%s344 + $0x240] sm:$0xff]
        %v670 = vld [vmem:[%s344 + $0x248] sm:$0xff]
        %v671 = vld [vmem:[%s344 + $0x250] sm:$0xff]
        %v672 = vld [vmem:[%s344 + $0x258] sm:$0xff]
        %v673 = vld [vmem:[%s344 + $0x260] sm:$0xff]
        %v674 = vld [vmem:[%s344 + $0x268] sm:$0xff]
        %v675 = vld [vmem:[%s344 + $0x270] sm:$0xff]
        %v676 = vld [vmem:[%s344 + $0x278] sm:$0xff]
        %v677 = vld [vmem:[%s344 + $0x280] sm:$0xff]
        %v678 = vld [vmem:[%s344 + $0x288] sm:$0xff]
        %v679 = vld [vmem:[%s344 + $0x290] sm:$0xff]
        %v680 = vld [vmem:[%s344 + $0x298] sm:$0xff]
        %v681 = vld [vmem:[%s344 + $0x2a0] sm:$0xff]
        %v682 = vld [vmem:[%s344 + $0x2a8] sm:$0xff]
        %v683 = vld [vmem:[%s344 + $0x2b0] sm:$0xff]
        %v684 = vld [vmem:[%s344 + $0x2b8] sm:$0xff]
        %v685 = vld [vmem:[%s344 + $0x2c0] sm:$0xff]
        %v686 = vld [vmem:[%s344 + $0x2c8] sm:$0xff]
        %v687 = vld [vmem:[%s344 + $0x2d0] sm:$0xff]
        %v688 = vld [vmem:[%s344 + $0x2d8] sm:$0xff]
        %v689 = vld [vmem:[%s344 + $0x2e0] sm:$0xff]
        %v690 = vld [vmem:[%s344 + $0x2e8] sm:$0xff]
        %v691 = vld [vmem:[%s344 + $0x2f0] sm:$0xff]
        %v692 = vld [vmem:[%s344 + $0x2f8] sm:$0xff]
        %v693 = vld [vmem:[%s344 + $0x300] sm:$0xff]
        %v694 = vld [vmem:[%s344 + $0x308] sm:$0xff]
        %v695 = vld [vmem:[%s344 + $0x310] sm:$0xff]
        %v696 = vld [vmem:[%s344 + $0x318] sm:$0xff]
        %v697 = vld [vmem:[%s344 + $0x320] sm:$0xff]
        %v698 = vld [vmem:[%s344 + $0x328] sm:$0xff]
        %v699 = vld [vmem:[%s344 + $0x330] sm:$0xff]
        %v700 = vld [vmem:[%s344 + $0x338] sm:$0xff]
        %v701 = vld [vmem:[%s344 + $0x340] sm:$0xff]
        %v702 = vld [vmem:[%s344 + $0x348] sm:$0xff]
        %v703 = vld [vmem:[%s344 + $0x350] sm:$0xff]
        %v704 = vld [vmem:[%s344 + $0x358] sm:$0xff]
        %v705 = vld [vmem:[%s344 + $0x360] sm:$0xff]
        %v706 = vld [vmem:[%s344 + $0x368] sm:$0xff]
        %v707 = vld [vmem:[%s344 + $0x370] sm:$0xff]
        %v708 = vld [vmem:[%s344 + $0x378] sm:$0xff]
        %v709 = vld [vmem:[%s344 + $0x380] sm:$0xff]
        %v710 = vld [vmem:[%s344 + $0x388] sm:$0xff]
        %v711 = vld [vmem:[%s344 + $0x390] sm:$0xff]
        %v712 = vld [vmem:[%s344 + $0x398] sm:$0xff]
        %v713 = vld [vmem:[%s344 + $0x3a0] sm:$0xff]
        %v714 = vld [vmem:[%s344 + $0x3a8] sm:$0xff]
        %v715 = vld [vmem:[%s344 + $0x3b0] sm:$0xff]
        %v716 = vld [vmem:[%s344 + $0x3b8] sm:$0xff]
        %v717 = vld [vmem:[%s344 + $0x3c0] sm:$0xff]
        %v718 = vld [vmem:[%s344 + $0x3c8] sm:$0xff]
        %v719 = vld [vmem:[%s344 + $0x3d0] sm:$0xff]
        %v720 = vld [vmem:[%s344 + $0x3d8] sm:$0xff]
        %v721 = vld [vmem:[%s344 + $0x3e0] sm:$0xff]
        %v722 = vld [vmem:[%s344 + $0x3e8] sm:$0xff]
        %v723 = vld [vmem:[%s344 + $0x3f0] sm:$0xff]
        %v724 = vld [vmem:[%s344 + $0x3f8] sm:$0xff]
        %v725 = vld [vmem:[%s344 + $0x400] sm:$0x1]
        %v726 = vld [vmem:[%s344 + $0x408] sm:$0x1]
        %v727 = vld [vmem:[%s344 + $0x410] sm:$0x1]
        %v728 = vld [vmem:[%s344 + $0x418] sm:$0x1]
        %v730 = vcombine.high %v353, %v353
        %v732 = vunpack.c.l.s4 1983009808
        %v733 = vunpack.c.0.s8 %v732
        %v734 = vlaneseq
        %v735 = vshrl.u32 %v734, 7
        %v736 = vsub.s32 %v733, %v735
        %v737 = vrot.slane %v353, %v736
        %v739 = vunpack.c.l.s4 1983009808
        %v740 = vunpack.c.0.s8 %v739
        %v741 = vlaneseq
        %v742 = vshrl.u32 %v741, 7
        %v743 = vsub.s32 %v740, %v742
        %v744 = vrot.slane %v730, %v743
        %v745 = vcombine.high %v737, %v737
        %vm748 = vcmask 7168
        %v749 = vsel %vm748, %v744, 0
        %vm751 = vcmask 1040384
        %v753 = vsel %vm751, %v725, 0
        %v756 = vsel %vm751, %v726, 0
        %v759 = vsel %vm751, %v727, 0
        %v762 = vsel %vm751, %v728, 0
        %764 = vmatprep.subr.mxu0 %v598
        %765 = vmatpush1.msra.mxu0 %v597
        %766 = vmatprep.subr.mxu0 %v602
        %767 = vmatpush1.msra.mxu0 %v601
        %768 = vmatprep.subr.mxu0 %v606
        %769 = vmatpush1.msra.mxu0 %v605
        %770 = vmatprep.subr.mxu0 %v610
        %771 = vmatpush1.msra.mxu0 %v609
        %772 = vmatprep.subr.mxu0 %v614
        %773 = vmatpush1.msra.mxu0 %v613
        %774 = vmatprep.subr.mxu0 %v618
        %775 = vmatpush1.msra.mxu0 %v617
        %776 = vmatprep.subr.mxu0 %v622
        %777 = vmatpush1.msra.mxu0 %v621
        %778 = vmatprep.subr.mxu0 %v626
        %779 = vmatpush1.msra.mxu0 %v625
        %780 = vmatprep.subr.mxu0 %v630
        %781 = vmatpush1.msra.mxu0 %v629
        %782 = vmatprep.subr.mxu0 %v634
        %783 = vmatpush1.msra.mxu0 %v633
        %784 = vmatprep.subr.mxu0 %v638
        %785 = vmatpush1.msra.mxu0 %v637
        %786 = vmatprep.subr.mxu0 %v642
        %787 = vmatpush1.msra.mxu0 %v641
        %788 = vmatprep.subr.mxu0 %v646
        %789 = vmatpush1.msra.mxu0 %v645
        %790 = vmatprep.subr.mxu0 %v650
        %791 = vmatpush1.msra.mxu0 %v649
        %792 = vmatprep.subr.mxu0 %v654
        %793 = vmatpush1.msra.mxu0 %v653
        %794 = vmatprep.subr.mxu0 %v658
        %795 = vmatpush1.msra.mxu0 %v657
        %796 = vmatprep.subr.mxu0 %v662
        %797 = vmatpush1.msra.mxu0 %v661
        %798 = vmatprep.subr.mxu0 %v666
        %799 = vmatpush1.msra.mxu0 %v665
        %800 = vmatprep.subr.mxu0 %v670
        %801 = vmatpush1.msra.mxu0 %v669
        %802 = vmatprep.subr.mxu0 %v674
        %803 = vmatpush1.msra.mxu0 %v673
        %804 = vmatprep.subr.mxu0 %v678
        %805 = vmatpush1.msra.mxu0 %v677
        %806 = vmatprep.subr.mxu0 %v682
        %807 = vmatpush1.msra.mxu0 %v681
        %808 = vmatprep.subr.mxu0 %v686
        %809 = vmatpush1.msra.mxu0 %v685
        %810 = vmatprep.subr.mxu0 %v690
        %811 = vmatpush1.msra.mxu0 %v689
        %812 = vmatprep.subr.mxu0 %v694
        %813 = vmatpush1.msra.mxu0 %v693
        %814 = vmatprep.subr.mxu0 %v698
        %815 = vmatpush1.msra.mxu0 %v697
        %816 = vmatprep.subr.mxu0 %v702
        %817 = vmatpush1.msra.mxu0 %v701
        %818 = vmatprep.subr.mxu0 %v706
        %819 = vmatpush1.msra.mxu0 %v705
        %820 = vmatprep.subr.mxu0 %v710
        %821 = vmatpush1.msra.mxu0 %v709
        %822 = vmatprep.subr.mxu0 %v714
        %823 = vmatpush1.msra.mxu0 %v713
        %824 = vmatprep.subr.mxu0 %v718
        %825 = vmatpush1.msra.mxu0 %v717
        %826 = vmatprep.subr.mxu0 %v722
        %827 = vmatpush1.msra.mxu0 %v721
        %828 = vmatprep.mubr.f32.mxu0 %v745
        %829 = vmatmul.mubr.f32.gmra.mrb[0].mxu0 %v737
        %v830 = vpop.f32.mrb[0].mxu0
        %v831 = vadd.f32 0.0, %v830
        %v832 = vpop.f32.mrb[0].mxu0
        %v833 = vadd.f32 0.0, %v832
        %834 = vdwg.mxu0
        %835 = vmatprep.subr.mxu0 %v756
        %836 = vmatpush1.msra.mxu0 %v753
        %837 = vmatprep.subr.mxu0 0.0
        %838 = vmatpush1.msra.mxu0 0.0
        %839 = vmatprep.subr.mxu0 0.0
        %840 = vmatpush1.msra.mxu0 0.0
        %841 = vmatprep.subr.mxu0 0.0
        %842 = vmatpush1.msra.mxu0 0.0
        %843 = vmatprep.subr.mxu0 0.0
        %844 = vmatpush1.msra.mxu0 0.0
        %845 = vmatprep.subr.mxu0 0.0
        %846 = vmatpush1.msra.mxu0 0.0
        %847 = vmatprep.subr.mxu0 0.0
        %848 = vmatpush1.msra.mxu0 0.0
        %849 = vmatprep.subr.mxu0 0.0
        %850 = vmatpush1.msra.mxu0 0.0
        %851 = vmatprep.subr.mxu0 0.0
        %852 = vmatpush1.msra.mxu0 0.0
        %853 = vmatprep.subr.mxu0 0.0
        %854 = vmatpush1.msra.mxu0 0.0
        %855 = vmatprep.subr.mxu0 0.0
        %856 = vmatpush1.msra.mxu0 0.0
        %857 = vmatprep.subr.mxu0 0.0
        %858 = vmatpush1.msra.mxu0 0.0
        %859 = vmatprep.subr.mxu0 0.0
        %860 = vmatpush1.msra.mxu0 0.0
        %861 = vmatprep.subr.mxu0 0.0
        %862 = vmatpush1.msra.mxu0 0.0
        %863 = vmatprep.subr.mxu0 0.0
        %864 = vmatpush1.msra.mxu0 0.0
        %865 = vmatprep.subr.mxu0 0.0
        %866 = vmatpush1.msra.mxu0 0.0
        %867 = vmatprep.subr.mxu0 0.0
        %868 = vmatpush1.msra.mxu0 0.0
        %869 = vmatprep.subr.mxu0 0.0
        %870 = vmatpush1.msra.mxu0 0.0
        %871 = vmatprep.subr.mxu0 0.0
        %872 = vmatpush1.msra.mxu0 0.0
        %873 = vmatprep.subr.mxu0 0.0
        %874 = vmatpush1.msra.mxu0 0.0
        %875 = vmatprep.subr.mxu0 0.0
        %876 = vmatpush1.msra.mxu0 0.0
        %877 = vmatprep.subr.mxu0 0.0
        %878 = vmatpush1.msra.mxu0 0.0
        %879 = vmatprep.subr.mxu0 0.0
        %880 = vmatpush1.msra.mxu0 0.0
        %881 = vmatprep.subr.mxu0 0.0
        %882 = vmatpush1.msra.mxu0 0.0
        %883 = vmatprep.subr.mxu0 0.0
        %884 = vmatpush1.msra.mxu0 0.0
        %885 = vmatprep.subr.mxu0 0.0
        %886 = vmatpush1.msra.mxu0 0.0
        %887 = vmatprep.subr.mxu0 0.0
        %888 = vmatpush1.msra.mxu0 0.0
        %889 = vmatprep.subr.mxu0 0.0
        %890 = vmatpush1.msra.mxu0 0.0
        %891 = vmatprep.subr.mxu0 0.0
        %892 = vmatpush1.msra.mxu0 0.0
        %893 = vmatprep.subr.mxu0 0.0
        %894 = vmatpush1.msra.mxu0 0.0
        %895 = vmatprep.subr.mxu0 0.0
        %896 = vmatpush1.msra.mxu0 0.0
        %897 = vmatprep.subr.mxu0 0.0
        %898 = vmatpush1.msra.mxu0 0.0
        %899 = vmatprep.mubr.f32.mxu0 0.0
        %900 = vmatmul.mubr.f32.gmra.mrb[0].mxu0 %v749
        %v901 = vpop.f32.mrb[0].mxu0
        %v902 = vadd.f32 %v831, %v901
        %v903 = vpop.f32.mrb[0].mxu0
        %v904 = vadd.f32 %v833, %v903
        %905 = vdwg.mxu0
        %906 = vmatprep.subr.mxu0 %v600
        %907 = vmatpush1.msra.mxu0 %v599
        %908 = vmatprep.subr.mxu0 %v604
        %909 = vmatpush1.msra.mxu0 %v603
        %910 = vmatprep.subr.mxu0 %v608
        %911 = vmatpush1.msra.mxu0 %v607
        %912 = vmatprep.subr.mxu0 %v612
        %913 = vmatpush1.msra.mxu0 %v611
        %914 = vmatprep.subr.mxu0 %v616
        %915 = vmatpush1.msra.mxu0 %v615
        %916 = vmatprep.subr.mxu0 %v620
        %917 = vmatpush1.msra.mxu0 %v619
        %918 = vmatprep.subr.mxu0 %v624
        %919 = vmatpush1.msra.mxu0 %v623
        %920 = vmatprep.subr.mxu0 %v628
        %921 = vmatpush1.msra.mxu0 %v627
        %922 = vmatprep.subr.mxu0 %v632
        %923 = vmatpush1.msra.mxu0 %v631
        %924 = vmatprep.subr.mxu0 %v636
        %925 = vmatpush1.msra.mxu0 %v635
        %926 = vmatprep.subr.mxu0 %v640
        %927 = vmatpush1.msra.mxu0 %v639
        %928 = vmatprep.subr.mxu0 %v644
        %929 = vmatpush1.msra.mxu0 %v643
        %930 = vmatprep.subr.mxu0 %v648
        %931 = vmatpush1.msra.mxu0 %v647
        %932 = vmatprep.subr.mxu0 %v652
        %933 = vmatpush1.msra.mxu0 %v651
        %934 = vmatprep.subr.mxu0 %v656
        %935 = vmatpush1.msra.mxu0 %v655
        %936 = vmatprep.subr.mxu0 %v660
        %937 = vmatpush1.msra.mxu0 %v659
        %938 = vmatprep.subr.mxu0 %v664
        %939 = vmatpush1.msra.mxu0 %v663
        %940 = vmatprep.subr.mxu0 %v668
        %941 = vmatpush1.msra.mxu0 %v667
        %942 = vmatprep.subr.mxu0 %v672
        %943 = vmatpush1.msra.mxu0 %v671
        %944 = vmatprep.subr.mxu0 %v676
        %945 = vmatpush1.msra.mxu0 %v675
        %946 = vmatprep.subr.mxu0 %v680
        %947 = vmatpush1.msra.mxu0 %v679
        %948 = vmatprep.subr.mxu0 %v684
        %949 = vmatpush1.msra.mxu0 %v683
        %950 = vmatprep.subr.mxu0 %v688
        %951 = vmatpush1.msra.mxu0 %v687
        %952 = vmatprep.subr.mxu0 %v692
        %953 = vmatpush1.msra.mxu0 %v691
        %954 = vmatprep.subr.mxu0 %v696
        %955 = vmatpush1.msra.mxu0 %v695
        %956 = vmatprep.subr.mxu0 %v700
        %957 = vmatpush1.msra.mxu0 %v699
        %958 = vmatprep.subr.mxu0 %v704
        %959 = vmatpush1.msra.mxu0 %v703
        %960 = vmatprep.subr.mxu0 %v708
        %961 = vmatpush1.msra.mxu0 %v707
        %962 = vmatprep.subr.mxu0 %v712
        %963 = vmatpush1.msra.mxu0 %v711
        %964 = vmatprep.subr.mxu0 %v716
        %965 = vmatpush1.msra.mxu0 %v715
        %966 = vmatprep.subr.mxu0 %v720
        %967 = vmatpush1.msra.mxu0 %v719
        %968 = vmatprep.subr.mxu0 %v724
        %969 = vmatpush1.msra.mxu0 %v723
        %970 = vmatprep.mubr.f32.mxu0 %v745
        %971 = vmatmul.mubr.f32.gmra.mrb[0].mxu0 %v737
        %v972 = vpop.f32.mrb[0].mxu0
        %v973 = vadd.f32 0.0, %v972
        %v974 = vpop.f32.mrb[0].mxu0
        %v975 = vadd.f32 0.0, %v974
        %976 = vdwg.mxu0
        %977 = vmatprep.subr.mxu0 %v762
        %978 = vmatpush1.msra.mxu0 %v759
        %979 = vmatprep.subr.mxu0 0.0
        %980 = vmatpush1.msra.mxu0 0.0
        %981 = vmatprep.subr.mxu0 0.0
        %982 = vmatpush1.msra.mxu0 0.0
        %983 = vmatprep.subr.mxu0 0.0
        %984 = vmatpush1.msra.mxu0 0.0
        %985 = vmatprep.subr.mxu0 0.0
        %986 = vmatpush1.msra.mxu0 0.0
        %987 = vmatprep.subr.mxu0 0.0
        %988 = vmatpush1.msra.mxu0 0.0
        %989 = vmatprep.subr.mxu0 0.0
        %990 = vmatpush1.msra.mxu0 0.0
        %991 = vmatprep.subr.mxu0 0.0
        %992 = vmatpush1.msra.mxu0 0.0
        %993 = vmatprep.subr.mxu0 0.0
        %994 = vmatpush1.msra.mxu0 0.0
        %995 = vmatprep.subr.mxu0 0.0
        %996 = vmatpush1.msra.mxu0 0.0
        %997 = vmatprep.subr.mxu0 0.0
        %998 = vmatpush1.msra.mxu0 0.0
        %999 = vmatprep.subr.mxu0 0.0
        %1000 = vmatpush1.msra.mxu0 0.0
        %1001 = vmatprep.subr.mxu0 0.0
        %1002 = vmatpush1.msra.mxu0 0.0
        %1003 = vmatprep.subr.mxu0 0.0
        %1004 = vmatpush1.msra.mxu0 0.0
        %1005 = vmatprep.subr.mxu0 0.0
        %1006 = vmatpush1.msra.mxu0 0.0
        %1007 = vmatprep.subr.mxu0 0.0
        %1008 = vmatpush1.msra.mxu0 0.0
        %1009 = vmatprep.subr.mxu0 0.0
        %1010 = vmatpush1.msra.mxu0 0.0
        %1011 = vmatprep.subr.mxu0 0.0
        %1012 = vmatpush1.msra.mxu0 0.0
        %1013 = vmatprep.subr.mxu0 0.0
        %1014 = vmatpush1.msra.mxu0 0.0
        %1015 = vmatprep.subr.mxu0 0.0
        %1016 = vmatpush1.msra.mxu0 0.0
        %1017 = vmatprep.subr.mxu0 0.0
        %1018 = vmatpush1.msra.mxu0 0.0
        %1019 = vmatprep.subr.mxu0 0.0
        %1020 = vmatpush1.msra.mxu0 0.0
        %1021 = vmatprep.subr.mxu0 0.0
        %1022 = vmatpush1.msra.mxu0 0.0
        %1023 = vmatprep.subr.mxu0 0.0
        %1024 = vmatpush1.msra.mxu0 0.0
        %1025 = vmatprep.subr.mxu0 0.0
        %1026 = vmatpush1.msra.mxu0 0.0
        %1027 = vmatprep.subr.mxu0 0.0
        %1028 = vmatpush1.msra.mxu0 0.0
        %1029 = vmatprep.subr.mxu0 0.0
        %1030 = vmatpush1.msra.mxu0 0.0
        %1031 = vmatprep.subr.mxu0 0.0
        %1032 = vmatpush1.msra.mxu0 0.0
        %1033 = vmatprep.subr.mxu0 0.0
        %1034 = vmatpush1.msra.mxu0 0.0
        %1035 = vmatprep.subr.mxu0 0.0
        %1036 = vmatpush1.msra.mxu0 0.0
        %1037 = vmatprep.subr.mxu0 0.0
        %1038 = vmatpush1.msra.mxu0 0.0
        %1039 = vmatprep.subr.mxu0 0.0
        %1040 = vmatpush1.msra.mxu0 0.0
        %1041 = vmatprep.mubr.f32.mxu0 0.0
        %1042 = vmatmul.mubr.f32.gmra.mrb[0].mxu0 %v749
        %v1043 = vpop.f32.mrb[0].mxu0
        %v1044 = vadd.f32 %v973, %v1043
        %v1045 = vpop.f32.mrb[0].mxu0
        %v1046 = vadd.f32 %v975, %v1045
        %1047 = vdwg.mxu0
        %vm1048 = vcmask 261120
        %v1050 = vsel %vm1048, %v578, 0
        %1052 = vmatprep.subr.mxu0 %v582
        %1053 = vmatpush1.msra.mxu0 %v581
        %1054 = vmatprep.subr.mxu0 %v586
        %1055 = vmatpush1.msra.mxu0 %v585
        %1056 = vmatprep.subr.mxu0 %v590
        %1057 = vmatpush1.msra.mxu0 %v589
        %1058 = vmatprep.subr.mxu0 %v594
        %1059 = vmatpush1.msra.mxu0 %v593
        %1060 = vmatprep.subr.mxu0 0.0
        %1061 = vmatpush1.msra.mxu0 0.0
        %1062 = vmatprep.subr.mxu0 0.0
        %1063 = vmatpush1.msra.mxu0 0.0
        %1064 = vmatprep.subr.mxu0 0.0
        %1065 = vmatpush1.msra.mxu0 0.0
        %1066 = vmatprep.subr.mxu0 0.0
        %1067 = vmatpush1.msra.mxu0 0.0
        %1068 = vmatprep.subr.mxu0 0.0
        %1069 = vmatpush1.msra.mxu0 0.0
        %1070 = vmatprep.subr.mxu0 0.0
        %1071 = vmatpush1.msra.mxu0 0.0
        %1072 = vmatprep.subr.mxu0 0.0
        %1073 = vmatpush1.msra.mxu0 0.0
        %1074 = vmatprep.subr.mxu0 0.0
        %1075 = vmatpush1.msra.mxu0 0.0
        %1076 = vmatprep.subr.mxu0 0.0
        %1077 = vmatpush1.msra.mxu0 0.0
        %1078 = vmatprep.subr.mxu0 0.0
        %1079 = vmatpush1.msra.mxu0 0.0
        %1080 = vmatprep.subr.mxu0 0.0
        %1081 = vmatpush1.msra.mxu0 0.0
        %1082 = vmatprep.subr.mxu0 0.0
        %1083 = vmatpush1.msra.mxu0 0.0
        %1084 = vmatprep.subr.mxu0 0.0
        %1085 = vmatpush1.msra.mxu0 0.0
        %1086 = vmatprep.subr.mxu0 0.0
        %1087 = vmatpush1.msra.mxu0 0.0
        %1088 = vmatprep.subr.mxu0 0.0
        %1089 = vmatpush1.msra.mxu0 0.0
        %1090 = vmatprep.subr.mxu0 0.0
        %1091 = vmatpush1.msra.mxu0 0.0
        %1092 = vmatprep.subr.mxu0 0.0
        %1093 = vmatpush1.msra.mxu0 0.0
        %1094 = vmatprep.subr.mxu0 0.0
        %1095 = vmatpush1.msra.mxu0 0.0
        %1096 = vmatprep.subr.mxu0 0.0
        %1097 = vmatpush1.msra.mxu0 0.0
        %1098 = vmatprep.subr.mxu0 0.0
        %1099 = vmatpush1.msra.mxu0 0.0
        %1100 = vmatprep.subr.mxu0 0.0
        %1101 = vmatpush1.msra.mxu0 0.0
        %1102 = vmatprep.subr.mxu0 0.0
        %1103 = vmatpush1.msra.mxu0 0.0
        %1104 = vmatprep.subr.mxu0 0.0
        %1105 = vmatpush1.msra.mxu0 0.0
        %1106 = vmatprep.subr.mxu0 0.0
        %1107 = vmatpush1.msra.mxu0 0.0
        %1108 = vmatprep.subr.mxu0 0.0
        %1109 = vmatpush1.msra.mxu0 0.0
        %1110 = vmatprep.subr.mxu0 0.0
        %1111 = vmatpush1.msra.mxu0 0.0
        %1112 = vmatprep.subr.mxu0 0.0
        %1113 = vmatpush1.msra.mxu0 0.0
        %1114 = vmatprep.subr.mxu0 0.0
        %1115 = vmatpush1.msra.mxu0 0.0
        %1116 = vmatprep.mubr.f32.mxu0 0.0
        %1117 = vmatmul.mubr.f32.gmra.mrb[0].mxu0 %v1050
        %v1118 = vpop.f32.mrb[0].mxu0
        %v1119 = vadd.f32 %v902, %v1118
        %v1120 = vpop.f32.mrb[0].mxu0
        %v1121 = vadd.f32 %v904, %v1120
        %1122 = vdwg.mxu0
        %1123 = vmatprep.subr.mxu0 %v584
        %1124 = vmatpush1.msra.mxu0 %v583
        %1125 = vmatprep.subr.mxu0 %v588
        %1126 = vmatpush1.msra.mxu0 %v587
        %1127 = vmatprep.subr.mxu0 %v592
        %1128 = vmatpush1.msra.mxu0 %v591
        %1129 = vmatprep.subr.mxu0 %v596
        %1130 = vmatpush1.msra.mxu0 %v595
        %1131 = vmatprep.subr.mxu0 0.0
        %1132 = vmatpush1.msra.mxu0 0.0
        %1133 = vmatprep.subr.mxu0 0.0
        %1134 = vmatpush1.msra.mxu0 0.0
        %1135 = vmatprep.subr.mxu0 0.0
        %1136 = vmatpush1.msra.mxu0 0.0
        %1137 = vmatprep.subr.mxu0 0.0
        %1138 = vmatpush1.msra.mxu0 0.0
        %1139 = vmatprep.subr.mxu0 0.0
        %1140 = vmatpush1.msra.mxu0 0.0
        %1141 = vmatprep.subr.mxu0 0.0
        %1142 = vmatpush1.msra.mxu0 0.0
        %1143 = vmatprep.subr.mxu0 0.0
        %1144 = vmatpush1.msra.mxu0 0.0
        %1145 = vmatprep.subr.mxu0 0.0
        %1146 = vmatpush1.msra.mxu0 0.0
        %1147 = vmatprep.subr.mxu0 0.0
        %1148 = vmatpush1.msra.mxu0 0.0
        %1149 = vmatprep.subr.mxu0 0.0
        %1150 = vmatpush1.msra.mxu0 0.0
        %1151 = vmatprep.subr.mxu0 0.0
        %1152 = vmatpush1.msra.mxu0 0.0
        %1153 = vmatprep.subr.mxu0 0.0
        %1154 = vmatpush1.msra.mxu0 0.0
        %1155 = vmatprep.subr.mxu0 0.0
        %1156 = vmatpush1.msra.mxu0 0.0
        %1157 = vmatprep.subr.mxu0 0.0
        %1158 = vmatpush1.msra.mxu0 0.0
        %1159 = vmatprep.subr.mxu0 0.0
        %1160 = vmatpush1.msra.mxu0 0.0
        %1161 = vmatprep.subr.mxu0 0.0
        %1162 = vmatpush1.msra.mxu0 0.0
        %1163 = vmatprep.subr.mxu0 0.0
        %1164 = vmatpush1.msra.mxu0 0.0
        %1165 = vmatprep.subr.mxu0 0.0
        %1166 = vmatpush1.msra.mxu0 0.0
        %1167 = vmatprep.subr.mxu0 0.0
        %1168 = vmatpush1.msra.mxu0 0.0
        %1169 = vmatprep.subr.mxu0 0.0
        %1170 = vmatpush1.msra.mxu0 0.0
        %1171 = vmatprep.subr.mxu0 0.0
        %1172 = vmatpush1.msra.mxu0 0.0
        %1173 = vmatprep.subr.mxu0 0.0
        %1174 = vmatpush1.msra.mxu0 0.0
        %1175 = vmatprep.subr.mxu0 0.0
        %1176 = vmatpush1.msra.mxu0 0.0
        %1177 = vmatprep.subr.mxu0 0.0
        %1178 = vmatpush1.msra.mxu0 0.0
        %1179 = vmatprep.subr.mxu0 0.0
        %1180 = vmatpush1.msra.mxu0 0.0
        %1181 = vmatprep.subr.mxu0 0.0
        %1182 = vmatpush1.msra.mxu0 0.0
        %1183 = vmatprep.subr.mxu0 0.0
        %1184 = vmatpush1.msra.mxu0 0.0
        %1185 = vmatprep.subr.mxu0 0.0
        %1186 = vmatpush1.msra.mxu0 0.0
        %1187 = vmatprep.mubr.f32.mxu0 0.0
        %1188 = vmatmul.mubr.f32.gmra.mrb[0].mxu0 %v1050
        %v1189 = vpop.f32.mrb[0].mxu0
        %v1190 = vadd.f32 %v1044, %v1189
        %v1191 = vpop.f32.mrb[0].mxu0
        %v1192 = vadd.f32 %v1046, %v1191
        %1193 = vdwg.mxu0
        %v1194 = vld [vmem:[%s350] sm:$0xf]
        %v1196 = vlaneseq
        %v1197 = vshrl.u32 %v1196, 7
        %v1198 = vsub.s32 0, %v1197
        %v1199 = vrot.slane %v1194, %v1198
        %v1200 = vlaneseq
        %v1201 = vshrl.u32 %v1200, 7
        %v1202 = vsub.s32 1, %v1201
        %v1203 = vrot.slane %v1194, %v1202
        %v1204 = vlaneseq
        %v1205 = vshrl.u32 %v1204, 7
        %v1206 = vsub.s32 2, %v1205
        %v1207 = vrot.slane %v1194, %v1206
        %v1208 = vlaneseq
        %v1209 = vshrl.u32 %v1208, 7
        %v1210 = vsub.s32 3, %v1209
        %v1211 = vrot.slane %v1194, %v1210
        %v1216 = vadd.f32 %v1119, %v1199
        %v1217 = vadd.f32 %v1121, %v1203
        %v1218 = vadd.f32 %v1190, %v1207
        %v1219 = vadd.f32 %v1192, %v1211
        %v1224 = vcombine.low %v1216, %v1217
        %v1225 = vcombine.low %v1218, %v1219
        %v1227 = vunpack.c.l.s4 1983009808
        %v1228 = vunpack.c.0.s8 %v1227
        %v1229 = vlaneseq
        %v1230 = vshrl.u32 %v1229, 7
        %v1231 = vsub.s32 %v1228, %v1230
        %v1232 = vrot.slane %v1224, %v1231
        %v1234 = vunpack.c.l.s4 1983009808
        %v1235 = vunpack.c.0.s8 %v1234
        %v1236 = vlaneseq
        %v1237 = vshrl.u32 %v1236, 7
        %v1238 = vsub.s32 %v1235, %v1237
        %v1239 = vrot.slane %v1225, %v1238
        %v1240 = vcombine.low %v1232, %v1239
        %1242 = vst [vmem:[%s317] sm:$0xff] %v1240
        %s1243 = scalar_lea.vmem %s323, 8
        %v1244 = vld [vmem:[%s1243] sm:$0xff]
        %s1245 = scalar_lea.vmem %s330, 512
        %v1246 = vld [vmem:[%s1245] sm:$0xff]
        %v1247 = vld [vmem:[%s1245 + $0x8] sm:$0xff]
        %v1248 = vld [vmem:[%s1245 + $0x10] sm:$0xff]
        %v1249 = vld [vmem:[%s1245 + $0x18] sm:$0xff]
        %v1250 = vld [vmem:[%s1245 + $0x20] sm:$0xff]
        %v1251 = vld [vmem:[%s1245 + $0x28] sm:$0xff]
        %v1252 = vld [vmem:[%s1245 + $0x30] sm:$0xff]
        %v1253 = vld [vmem:[%s1245 + $0x38] sm:$0xff]
        %v1254 = vld [vmem:[%s1245 + $0x40] sm:$0xff]
        %v1255 = vld [vmem:[%s1245 + $0x48] sm:$0xff]
        %v1256 = vld [vmem:[%s1245 + $0x50] sm:$0xff]
        %v1257 = vld [vmem:[%s1245 + $0x58] sm:$0xff]
        %v1258 = vld [vmem:[%s1245 + $0x60] sm:$0xff]
        %v1259 = vld [vmem:[%s1245 + $0x68] sm:$0xff]
        %v1260 = vld [vmem:[%s1245 + $0x70] sm:$0xff]
        %v1261 = vld [vmem:[%s1245 + $0x78] sm:$0xff]
        %v1262 = vld [vmem:[%s1245 + $0x80] sm:$0xff]
        %v1263 = vld [vmem:[%s1245 + $0x88] sm:$0xff]
        %v1264 = vld [vmem:[%s1245 + $0x90] sm:$0xff]
        %v1265 = vld [vmem:[%s1245 + $0x98] sm:$0xff]
        %v1266 = vld [vmem:[%s1245 + $0xa0] sm:$0xff]
        %v1267 = vld [vmem:[%s1245 + $0xa8] sm:$0xff]
        %v1268 = vld [vmem:[%s1245 + $0xb0] sm:$0xff]
        %v1269 = vld [vmem:[%s1245 + $0xb8] sm:$0xff]
        %v1270 = vld [vmem:[%s1245 + $0xc0] sm:$0xff]
        %v1271 = vld [vmem:[%s1245 + $0xc8] sm:$0xff]
        %v1272 = vld [vmem:[%s1245 + $0xd0] sm:$0xff]
        %v1273 = vld [vmem:[%s1245 + $0xd8] sm:$0xff]
        %v1274 = vld [vmem:[%s1245 + $0xe0] sm:$0xff]
        %v1275 = vld [vmem:[%s1245 + $0xe8] sm:$0xff]
        %v1276 = vld [vmem:[%s1245 + $0xf0] sm:$0xff]
        %v1277 = vld [vmem:[%s1245 + $0xf8] sm:$0xff]
        %v1278 = vld [vmem:[%s1245 + $0x100] sm:$0xff]
        %v1279 = vld [vmem:[%s1245 + $0x108] sm:$0xff]
        %v1280 = vld [vmem:[%s1245 + $0x110] sm:$0xff]
        %v1281 = vld [vmem:[%s1245 + $0x118] sm:$0xff]
        %v1282 = vld [vmem:[%s1245 + $0x120] sm:$0xff]
        %v1283 = vld [vmem:[%s1245 + $0x128] sm:$0xff]
        %v1284 = vld [vmem:[%s1245 + $0x130] sm:$0xff]
        %v1285 = vld [vmem:[%s1245 + $0x138] sm:$0xff]
        %v1286 = vld [vmem:[%s1245 + $0x140] sm:$0xff]
        %v1287 = vld [vmem:[%s1245 + $0x148] sm:$0xff]
        %v1288 = vld [vmem:[%s1245 + $0x150] sm:$0xff]
        %v1289 = vld [vmem:[%s1245 + $0x158] sm:$0xff]
        %v1290 = vld [vmem:[%s1245 + $0x160] sm:$0xff]
        %v1291 = vld [vmem:[%s1245 + $0x168] sm:$0xff]
        %v1292 = vld [vmem:[%s1245 + $0x170] sm:$0xff]
        %v1293 = vld [vmem:[%s1245 + $0x178] sm:$0xff]
        %v1294 = vld [vmem:[%s1245 + $0x180] sm:$0xff]
        %v1295 = vld [vmem:[%s1245 + $0x188] sm:$0xff]
        %v1296 = vld [vmem:[%s1245 + $0x190] sm:$0xff]
        %v1297 = vld [vmem:[%s1245 + $0x198] sm:$0xff]
        %v1298 = vld [vmem:[%s1245 + $0x1a0] sm:$0xff]
        %v1299 = vld [vmem:[%s1245 + $0x1a8] sm:$0xff]
        %v1300 = vld [vmem:[%s1245 + $0x1b0] sm:$0xff]
        %v1301 = vld [vmem:[%s1245 + $0x1b8] sm:$0xff]
        %v1302 = vld [vmem:[%s1245 + $0x1c0] sm:$0xff]
        %v1303 = vld [vmem:[%s1245 + $0x1c8] sm:$0xff]
        %v1304 = vld [vmem:[%s1245 + $0x1d0] sm:$0xff]
        %v1305 = vld [vmem:[%s1245 + $0x1d8] sm:$0xff]
        %v1306 = vld [vmem:[%s1245 + $0x1e0] sm:$0xff]
        %v1307 = vld [vmem:[%s1245 + $0x1e8] sm:$0xff]
        %v1308 = vld [vmem:[%s1245 + $0x1f0] sm:$0xff]
        %v1309 = vld [vmem:[%s1245 + $0x1f8] sm:$0xff]
        %v1311 = vcombine.high %v1244, %v1244
        %v1313 = vunpack.c.l.s4 1983009808
        %v1314 = vunpack.c.0.s8 %v1313
        %v1315 = vlaneseq
        %v1316 = vshrl.u32 %v1315, 7
        %v1317 = vsub.s32 %v1314, %v1316
        %v1318 = vrot.slane %v1244, %v1317
        %v1320 = vunpack.c.l.s4 1983009808
        %v1321 = vunpack.c.0.s8 %v1320
        %v1322 = vlaneseq
        %v1323 = vshrl.u32 %v1322, 7
        %v1324 = vsub.s32 %v1321, %v1323
        %v1325 = vrot.slane %v1311, %v1324
        %v1326 = vcombine.high %v1318, %v1318
        %v1327 = vcombine.high %v1325, %v1325
        %1332 = vmatprep.subr.mxu0 0.0
        %1333 = vmatpush1.msra.mxu0 %v1246
        %1334 = vmatprep.subr.mxu0 0.0
        %1335 = vmatpush1.msra.mxu0 %v1247
        %1336 = vmatprep.subr.mxu0 0.0
        %1337 = vmatpush1.msra.mxu0 %v1248
        %1338 = vmatprep.subr.mxu0 0.0
        %1339 = vmatpush1.msra.mxu0 %v1249
        %1340 = vmatprep.subr.mxu0 0.0
        %1341 = vmatpush1.msra.mxu0 %v1250
        %1342 = vmatprep.subr.mxu0 0.0
        %1343 = vmatpush1.msra.mxu0 %v1251
        %1344 = vmatprep.subr.mxu0 0.0
        %1345 = vmatpush1.msra.mxu0 %v1252
        %1346 = vmatprep.subr.mxu0 0.0
        %1347 = vmatpush1.msra.mxu0 %v1253
        %1348 = vmatprep.subr.mxu0 0.0
        %1349 = vmatpush1.msra.mxu0 %v1254
        %1350 = vmatprep.subr.mxu0 0.0
        %1351 = vmatpush1.msra.mxu0 %v1255
        %1352 = vmatprep.subr.mxu0 0.0
        %1353 = vmatpush1.msra.mxu0 %v1256
        %1354 = vmatprep.subr.mxu0 0.0
        %1355 = vmatpush1.msra.mxu0 %v1257
        %1356 = vmatprep.subr.mxu0 0.0
        %1357 = vmatpush1.msra.mxu0 %v1258
        %1358 = vmatprep.subr.mxu0 0.0
        %1359 = vmatpush1.msra.mxu0 %v1259
        %1360 = vmatprep.subr.mxu0 0.0
        %1361 = vmatpush1.msra.mxu0 %v1260
        %1362 = vmatprep.subr.mxu0 0.0
        %1363 = vmatpush1.msra.mxu0 %v1261
        %1364 = vmatprep.subr.mxu0 0.0
        %1365 = vmatpush1.msra.mxu0 %v1262
        %1366 = vmatprep.subr.mxu0 0.0
        %1367 = vmatpush1.msra.mxu0 %v1263
        %1368 = vmatprep.subr.mxu0 0.0
        %1369 = vmatpush1.msra.mxu0 %v1264
        %1370 = vmatprep.subr.mxu0 0.0
        %1371 = vmatpush1.msra.mxu0 %v1265
        %1372 = vmatprep.subr.mxu0 0.0
        %1373 = vmatpush1.msra.mxu0 %v1266
        %1374 = vmatprep.subr.mxu0 0.0
        %1375 = vmatpush1.msra.mxu0 %v1267
        %1376 = vmatprep.subr.mxu0 0.0
        %1377 = vmatpush1.msra.mxu0 %v1268
        %1378 = vmatprep.subr.mxu0 0.0
        %1379 = vmatpush1.msra.mxu0 %v1269
        %1380 = vmatprep.subr.mxu0 0.0
        %1381 = vmatpush1.msra.mxu0 %v1270
        %1382 = vmatprep.subr.mxu0 0.0
        %1383 = vmatpush1.msra.mxu0 %v1271
        %1384 = vmatprep.subr.mxu0 0.0
        %1385 = vmatpush1.msra.mxu0 %v1272
        %1386 = vmatprep.subr.mxu0 0.0
        %1387 = vmatpush1.msra.mxu0 %v1273
        %1388 = vmatprep.subr.mxu0 0.0
        %1389 = vmatpush1.msra.mxu0 %v1274
        %1390 = vmatprep.subr.mxu0 0.0
        %1391 = vmatpush1.msra.mxu0 %v1275
        %1392 = vmatprep.subr.mxu0 0.0
        %1393 = vmatpush1.msra.mxu0 %v1276
        %1394 = vmatprep.subr.mxu0 0.0
        %1395 = vmatpush1.msra.mxu0 %v1277
        %1396 = vmatprep.mubr.f32.mxu0 %v1326
        %1397 = vmatmul.mubr.f32.gmra.mrb[0].mxu0 %v1318
        %v1398 = vpop.f32.mrb[0].mxu0
        %v1399 = vadd.f32 0.0, %v1398
        %v1400 = vpop.f32.mrb[0].mxu0
        %1401 = vdwg.mxu0
        %1402 = vmatprep.subr.mxu0 0.0
        %1403 = vmatpush1.msra.mxu0 %v1278
        %1404 = vmatprep.subr.mxu0 0.0
        %1405 = vmatpush1.msra.mxu0 %v1279
        %1406 = vmatprep.subr.mxu0 0.0
        %1407 = vmatpush1.msra.mxu0 %v1280
        %1408 = vmatprep.subr.mxu0 0.0
        %1409 = vmatpush1.msra.mxu0 %v1281
        %1410 = vmatprep.subr.mxu0 0.0
        %1411 = vmatpush1.msra.mxu0 %v1282
        %1412 = vmatprep.subr.mxu0 0.0
        %1413 = vmatpush1.msra.mxu0 %v1283
        %1414 = vmatprep.subr.mxu0 0.0
        %1415 = vmatpush1.msra.mxu0 %v1284
        %1416 = vmatprep.subr.mxu0 0.0
        %1417 = vmatpush1.msra.mxu0 %v1285
        %1418 = vmatprep.subr.mxu0 0.0
        %1419 = vmatpush1.msra.mxu0 %v1286
        %1420 = vmatprep.subr.mxu0 0.0
        %1421 = vmatpush1.msra.mxu0 %v1287
        %1422 = vmatprep.subr.mxu0 0.0
        %1423 = vmatpush1.msra.mxu0 %v1288
        %1424 = vmatprep.subr.mxu0 0.0
        %1425 = vmatpush1.msra.mxu0 %v1289
        %1426 = vmatprep.subr.mxu0 0.0
        %1427 = vmatpush1.msra.mxu0 %v1290
        %1428 = vmatprep.subr.mxu0 0.0
        %1429 = vmatpush1.msra.mxu0 %v1291
        %1430 = vmatprep.subr.mxu0 0.0
        %1431 = vmatpush1.msra.mxu0 %v1292
        %1432 = vmatprep.subr.mxu0 0.0
        %1433 = vmatpush1.msra.mxu0 %v1293
        %1434 = vmatprep.subr.mxu0 0.0
        %1435 = vmatpush1.msra.mxu0 %v1294
        %1436 = vmatprep.subr.mxu0 0.0
        %1437 = vmatpush1.msra.mxu0 %v1295
        %1438 = vmatprep.subr.mxu0 0.0
        %1439 = vmatpush1.msra.mxu0 %v1296
        %1440 = vmatprep.subr.mxu0 0.0
        %1441 = vmatpush1.msra.mxu0 %v1297
        %1442 = vmatprep.subr.mxu0 0.0
        %1443 = vmatpush1.msra.mxu0 %v1298
        %1444 = vmatprep.subr.mxu0 0.0
        %1445 = vmatpush1.msra.mxu0 %v1299
        %1446 = vmatprep.subr.mxu0 0.0
        %1447 = vmatpush1.msra.mxu0 %v1300
        %1448 = vmatprep.subr.mxu0 0.0
        %1449 = vmatpush1.msra.mxu0 %v1301
        %1450 = vmatprep.subr.mxu0 0.0
        %1451 = vmatpush1.msra.mxu0 %v1302
        %1452 = vmatprep.subr.mxu0 0.0
        %1453 = vmatpush1.msra.mxu0 %v1303
        %1454 = vmatprep.subr.mxu0 0.0
        %1455 = vmatpush1.msra.mxu0 %v1304
        %1456 = vmatprep.subr.mxu0 0.0
        %1457 = vmatpush1.msra.mxu0 %v1305
        %1458 = vmatprep.subr.mxu0 0.0
        %1459 = vmatpush1.msra.mxu0 %v1306
        %1460 = vmatprep.subr.mxu0 0.0
        %1461 = vmatpush1.msra.mxu0 %v1307
        %1462 = vmatprep.subr.mxu0 0.0
        %1463 = vmatpush1.msra.mxu0 %v1308
        %1464 = vmatprep.subr.mxu0 0.0
        %1465 = vmatpush1.msra.mxu0 %v1309
        %1466 = vmatprep.mubr.f32.mxu0 %v1327
        %1467 = vmatmul.mubr.f32.gmra.mrb[0].mxu0 %v1325
        %v1468 = vpop.f32.mrb[0].mxu0
        %v1469 = vadd.f32 %v1399, %v1468
        %v1470 = vpop.f32.mrb[0].mxu0
        %1471 = vdwg.mxu0
        %s1472 = scalar_lea.vmem %s337, 128
        %v1473 = vld [vmem:[%s1472] sm:$0xff]
        %v1474 = vld [vmem:[%s1472 + $0x8] sm:$0xff]
        %v1475 = vld [vmem:[%s1472 + $0x10] sm:$0xff]
        %v1476 = vld [vmem:[%s1472 + $0x18] sm:$0xff]
        %v1477 = vld [vmem:[%s1472 + $0x20] sm:$0xff]
        %v1478 = vld [vmem:[%s1472 + $0x28] sm:$0xff]
        %v1479 = vld [vmem:[%s1472 + $0x30] sm:$0xff]
        %v1480 = vld [vmem:[%s1472 + $0x38] sm:$0xff]
        %v1481 = vld [vmem:[%s1472 + $0x40] sm:$0xff]
        %v1482 = vld [vmem:[%s1472 + $0x48] sm:$0xff]
        %v1483 = vld [vmem:[%s1472 + $0x50] sm:$0xff]
        %v1484 = vld [vmem:[%s1472 + $0x58] sm:$0xff]
        %v1485 = vld [vmem:[%s1472 + $0x60] sm:$0xff]
        %v1486 = vld [vmem:[%s1472 + $0x68] sm:$0xff]
        %v1487 = vld [vmem:[%s1472 + $0x70] sm:$0xff]
        %v1488 = vld [vmem:[%s1472 + $0x78] sm:$0xff]
        %s1489 = scalar_lea.vmem %s344, 1056
        %v1490 = vld [vmem:[%s1489] sm:$0xff]
        %v1491 = vld [vmem:[%s1489 + $0x8] sm:$0xff]
        %v1492 = vld [vmem:[%s1489 + $0x10] sm:$0xff]
        %v1493 = vld [vmem:[%s1489 + $0x18] sm:$0xff]
        %v1494 = vld [vmem:[%s1489 + $0x20] sm:$0xff]
        %v1495 = vld [vmem:[%s1489 + $0x28] sm:$0xff]
        %v1496 = vld [vmem:[%s1489 + $0x30] sm:$0xff]
        %v1497 = vld [vmem:[%s1489 + $0x38] sm:$0xff]
        %v1498 = vld [vmem:[%s1489 + $0x40] sm:$0xff]
        %v1499 = vld [vmem:[%s1489 + $0x48] sm:$0xff]
        %v1500 = vld [vmem:[%s1489 + $0x50] sm:$0xff]
        %v1501 = vld [vmem:[%s1489 + $0x58] sm:$0xff]
        %v1502 = vld [vmem:[%s1489 + $0x60] sm:$0xff]
        %v1503 = vld [vmem:[%s1489 + $0x68] sm:$0xff]
        %v1504 = vld [vmem:[%s1489 + $0x70] sm:$0xff]
        %v1505 = vld [vmem:[%s1489 + $0x78] sm:$0xff]
        %v1506 = vld [vmem:[%s1489 + $0x80] sm:$0xff]
        %v1507 = vld [vmem:[%s1489 + $0x88] sm:$0xff]
        %v1508 = vld [vmem:[%s1489 + $0x90] sm:$0xff]
        %v1509 = vld [vmem:[%s1489 + $0x98] sm:$0xff]
        %v1510 = vld [vmem:[%s1489 + $0xa0] sm:$0xff]
        %v1511 = vld [vmem:[%s1489 + $0xa8] sm:$0xff]
        %v1512 = vld [vmem:[%s1489 + $0xb0] sm:$0xff]
        %v1513 = vld [vmem:[%s1489 + $0xb8] sm:$0xff]
        %v1514 = vld [vmem:[%s1489 + $0xc0] sm:$0xff]
        %v1515 = vld [vmem:[%s1489 + $0xc8] sm:$0xff]
        %v1516 = vld [vmem:[%s1489 + $0xd0] sm:$0xff]
        %v1517 = vld [vmem:[%s1489 + $0xd8] sm:$0xff]
        %v1518 = vld [vmem:[%s1489 + $0xe0] sm:$0xff]
        %v1519 = vld [vmem:[%s1489 + $0xe8] sm:$0xff]
        %v1520 = vld [vmem:[%s1489 + $0xf0] sm:$0xff]
        %v1521 = vld [vmem:[%s1489 + $0xf8] sm:$0xff]
        %v1522 = vld [vmem:[%s1489 + $0x100] sm:$0xff]
        %v1523 = vld [vmem:[%s1489 + $0x108] sm:$0xff]
        %v1524 = vld [vmem:[%s1489 + $0x110] sm:$0xff]
        %v1525 = vld [vmem:[%s1489 + $0x118] sm:$0xff]
        %v1526 = vld [vmem:[%s1489 + $0x120] sm:$0xff]
        %v1527 = vld [vmem:[%s1489 + $0x128] sm:$0xff]
        %v1528 = vld [vmem:[%s1489 + $0x130] sm:$0xff]
        %v1529 = vld [vmem:[%s1489 + $0x138] sm:$0xff]
        %v1530 = vld [vmem:[%s1489 + $0x140] sm:$0xff]
        %v1531 = vld [vmem:[%s1489 + $0x148] sm:$0xff]
        %v1532 = vld [vmem:[%s1489 + $0x150] sm:$0xff]
        %v1533 = vld [vmem:[%s1489 + $0x158] sm:$0xff]
        %v1534 = vld [vmem:[%s1489 + $0x160] sm:$0xff]
        %v1535 = vld [vmem:[%s1489 + $0x168] sm:$0xff]
        %v1536 = vld [vmem:[%s1489 + $0x170] sm:$0xff]
        %v1537 = vld [vmem:[%s1489 + $0x178] sm:$0xff]
        %v1538 = vld [vmem:[%s1489 + $0x180] sm:$0xff]
        %v1539 = vld [vmem:[%s1489 + $0x188] sm:$0xff]
        %v1540 = vld [vmem:[%s1489 + $0x190] sm:$0xff]
        %v1541 = vld [vmem:[%s1489 + $0x198] sm:$0xff]
        %v1542 = vld [vmem:[%s1489 + $0x1a0] sm:$0xff]
        %v1543 = vld [vmem:[%s1489 + $0x1a8] sm:$0xff]
        %v1544 = vld [vmem:[%s1489 + $0x1b0] sm:$0xff]
        %v1545 = vld [vmem:[%s1489 + $0x1b8] sm:$0xff]
        %v1546 = vld [vmem:[%s1489 + $0x1c0] sm:$0xff]
        %v1547 = vld [vmem:[%s1489 + $0x1c8] sm:$0xff]
        %v1548 = vld [vmem:[%s1489 + $0x1d0] sm:$0xff]
        %v1549 = vld [vmem:[%s1489 + $0x1d8] sm:$0xff]
        %v1550 = vld [vmem:[%s1489 + $0x1e0] sm:$0xff]
        %v1551 = vld [vmem:[%s1489 + $0x1e8] sm:$0xff]
        %v1552 = vld [vmem:[%s1489 + $0x1f0] sm:$0xff]
        %v1553 = vld [vmem:[%s1489 + $0x1f8] sm:$0xff]
        %v1554 = vld [vmem:[%s1489 + $0x200] sm:$0xff]
        %v1555 = vld [vmem:[%s1489 + $0x208] sm:$0xff]
        %v1556 = vld [vmem:[%s1489 + $0x210] sm:$0xff]
        %v1557 = vld [vmem:[%s1489 + $0x218] sm:$0xff]
        %v1558 = vld [vmem:[%s1489 + $0x220] sm:$0xff]
        %v1559 = vld [vmem:[%s1489 + $0x228] sm:$0xff]
        %v1560 = vld [vmem:[%s1489 + $0x230] sm:$0xff]
        %v1561 = vld [vmem:[%s1489 + $0x238] sm:$0xff]
        %v1562 = vld [vmem:[%s1489 + $0x240] sm:$0xff]
        %v1563 = vld [vmem:[%s1489 + $0x248] sm:$0xff]
        %v1564 = vld [vmem:[%s1489 + $0x250] sm:$0xff]
        %v1565 = vld [vmem:[%s1489 + $0x258] sm:$0xff]
        %v1566 = vld [vmem:[%s1489 + $0x260] sm:$0xff]
        %v1567 = vld [vmem:[%s1489 + $0x268] sm:$0xff]
        %v1568 = vld [vmem:[%s1489 + $0x270] sm:$0xff]
        %v1569 = vld [vmem:[%s1489 + $0x278] sm:$0xff]
        %v1570 = vld [vmem:[%s1489 + $0x280] sm:$0xff]
        %v1571 = vld [vmem:[%s1489 + $0x288] sm:$0xff]
        %v1572 = vld [vmem:[%s1489 + $0x290] sm:$0xff]
        %v1573 = vld [vmem:[%s1489 + $0x298] sm:$0xff]
        %v1574 = vld [vmem:[%s1489 + $0x2a0] sm:$0xff]
        %v1575 = vld [vmem:[%s1489 + $0x2a8] sm:$0xff]
        %v1576 = vld [vmem:[%s1489 + $0x2b0] sm:$0xff]
        %v1577 = vld [vmem:[%s1489 + $0x2b8] sm:$0xff]
        %v1578 = vld [vmem:[%s1489 + $0x2c0] sm:$0xff]
        %v1579 = vld [vmem:[%s1489 + $0x2c8] sm:$0xff]
        %v1580 = vld [vmem:[%s1489 + $0x2d0] sm:$0xff]
        %v1581 = vld [vmem:[%s1489 + $0x2d8] sm:$0xff]
        %v1582 = vld [vmem:[%s1489 + $0x2e0] sm:$0xff]
        %v1583 = vld [vmem:[%s1489 + $0x2e8] sm:$0xff]
        %v1584 = vld [vmem:[%s1489 + $0x2f0] sm:$0xff]
        %v1585 = vld [vmem:[%s1489 + $0x2f8] sm:$0xff]
        %v1586 = vld [vmem:[%s1489 + $0x300] sm:$0xff]
        %v1587 = vld [vmem:[%s1489 + $0x308] sm:$0xff]
        %v1588 = vld [vmem:[%s1489 + $0x310] sm:$0xff]
        %v1589 = vld [vmem:[%s1489 + $0x318] sm:$0xff]
        %v1590 = vld [vmem:[%s1489 + $0x320] sm:$0xff]
        %v1591 = vld [vmem:[%s1489 + $0x328] sm:$0xff]
        %v1592 = vld [vmem:[%s1489 + $0x330] sm:$0xff]
        %v1593 = vld [vmem:[%s1489 + $0x338] sm:$0xff]
        %v1594 = vld [vmem:[%s1489 + $0x340] sm:$0xff]
        %v1595 = vld [vmem:[%s1489 + $0x348] sm:$0xff]
        %v1596 = vld [vmem:[%s1489 + $0x350] sm:$0xff]
        %v1597 = vld [vmem:[%s1489 + $0x358] sm:$0xff]
        %v1598 = vld [vmem:[%s1489 + $0x360] sm:$0xff]
        %v1599 = vld [vmem:[%s1489 + $0x368] sm:$0xff]
        %v1600 = vld [vmem:[%s1489 + $0x370] sm:$0xff]
        %v1601 = vld [vmem:[%s1489 + $0x378] sm:$0xff]
        %v1602 = vld [vmem:[%s1489 + $0x380] sm:$0xff]
        %v1603 = vld [vmem:[%s1489 + $0x388] sm:$0xff]
        %v1604 = vld [vmem:[%s1489 + $0x390] sm:$0xff]
        %v1605 = vld [vmem:[%s1489 + $0x398] sm:$0xff]
        %v1606 = vld [vmem:[%s1489 + $0x3a0] sm:$0xff]
        %v1607 = vld [vmem:[%s1489 + $0x3a8] sm:$0xff]
        %v1608 = vld [vmem:[%s1489 + $0x3b0] sm:$0xff]
        %v1609 = vld [vmem:[%s1489 + $0x3b8] sm:$0xff]
        %v1610 = vld [vmem:[%s1489 + $0x3c0] sm:$0xff]
        %v1611 = vld [vmem:[%s1489 + $0x3c8] sm:$0xff]
        %v1612 = vld [vmem:[%s1489 + $0x3d0] sm:$0xff]
        %v1613 = vld [vmem:[%s1489 + $0x3d8] sm:$0xff]
        %v1614 = vld [vmem:[%s1489 + $0x3e0] sm:$0xff]
        %v1615 = vld [vmem:[%s1489 + $0x3e8] sm:$0xff]
        %v1616 = vld [vmem:[%s1489 + $0x3f0] sm:$0xff]
        %v1617 = vld [vmem:[%s1489 + $0x3f8] sm:$0xff]
        %v1618 = vld [vmem:[%s1489 + $0x400] sm:$0x1]
        %v1619 = vld [vmem:[%s1489 + $0x408] sm:$0x1]
        %v1620 = vld [vmem:[%s1489 + $0x410] sm:$0x1]
        %v1621 = vld [vmem:[%s1489 + $0x418] sm:$0x1]
        %v1623 = vsel %vm751, %v1618, 0
        %v1626 = vsel %vm751, %v1619, 0
        %v1629 = vsel %vm751, %v1620, 0
        %v1632 = vsel %vm751, %v1621, 0
        %1634 = vmatprep.subr.mxu0 %v1491
        %1635 = vmatpush1.msra.mxu0 %v1490
        %1636 = vmatprep.subr.mxu0 %v1495
        %1637 = vmatpush1.msra.mxu0 %v1494
        %1638 = vmatprep.subr.mxu0 %v1499
        %1639 = vmatpush1.msra.mxu0 %v1498
        %1640 = vmatprep.subr.mxu0 %v1503
        %1641 = vmatpush1.msra.mxu0 %v1502
        %1642 = vmatprep.subr.mxu0 %v1507
        %1643 = vmatpush1.msra.mxu0 %v1506
        %1644 = vmatprep.subr.mxu0 %v1511
        %1645 = vmatpush1.msra.mxu0 %v1510
        %1646 = vmatprep.subr.mxu0 %v1515
        %1647 = vmatpush1.msra.mxu0 %v1514
        %1648 = vmatprep.subr.mxu0 %v1519
        %1649 = vmatpush1.msra.mxu0 %v1518
        %1650 = vmatprep.subr.mxu0 %v1523
        %1651 = vmatpush1.msra.mxu0 %v1522
        %1652 = vmatprep.subr.mxu0 %v1527
        %1653 = vmatpush1.msra.mxu0 %v1526
        %1654 = vmatprep.subr.mxu0 %v1531
        %1655 = vmatpush1.msra.mxu0 %v1530
        %1656 = vmatprep.subr.mxu0 %v1535
        %1657 = vmatpush1.msra.mxu0 %v1534
        %1658 = vmatprep.subr.mxu0 %v1539
        %1659 = vmatpush1.msra.mxu0 %v1538
        %1660 = vmatprep.subr.mxu0 %v1543
        %1661 = vmatpush1.msra.mxu0 %v1542
        %1662 = vmatprep.subr.mxu0 %v1547
        %1663 = vmatpush1.msra.mxu0 %v1546
        %1664 = vmatprep.subr.mxu0 %v1551
        %1665 = vmatpush1.msra.mxu0 %v1550
        %1666 = vmatprep.subr.mxu0 %v1555
        %1667 = vmatpush1.msra.mxu0 %v1554
        %1668 = vmatprep.subr.mxu0 %v1559
        %1669 = vmatpush1.msra.mxu0 %v1558
        %1670 = vmatprep.subr.mxu0 %v1563
        %1671 = vmatpush1.msra.mxu0 %v1562
        %1672 = vmatprep.subr.mxu0 %v1567
        %1673 = vmatpush1.msra.mxu0 %v1566
        %1674 = vmatprep.subr.mxu0 %v1571
        %1675 = vmatpush1.msra.mxu0 %v1570
        %1676 = vmatprep.subr.mxu0 %v1575
        %1677 = vmatpush1.msra.mxu0 %v1574
        %1678 = vmatprep.subr.mxu0 %v1579
        %1679 = vmatpush1.msra.mxu0 %v1578
        %1680 = vmatprep.subr.mxu0 %v1583
        %1681 = vmatpush1.msra.mxu0 %v1582
        %1682 = vmatprep.subr.mxu0 %v1587
        %1683 = vmatpush1.msra.mxu0 %v1586
        %1684 = vmatprep.subr.mxu0 %v1591
        %1685 = vmatpush1.msra.mxu0 %v1590
        %1686 = vmatprep.subr.mxu0 %v1595
        %1687 = vmatpush1.msra.mxu0 %v1594
        %1688 = vmatprep.subr.mxu0 %v1599
        %1689 = vmatpush1.msra.mxu0 %v1598
        %1690 = vmatprep.subr.mxu0 %v1603
        %1691 = vmatpush1.msra.mxu0 %v1602
        %1692 = vmatprep.subr.mxu0 %v1607
        %1693 = vmatpush1.msra.mxu0 %v1606
        %1694 = vmatprep.subr.mxu0 %v1611
        %1695 = vmatpush1.msra.mxu0 %v1610
        %1696 = vmatprep.subr.mxu0 %v1615
        %1697 = vmatpush1.msra.mxu0 %v1614
        %1698 = vmatprep.mubr.f32.mxu0 %v745
        %1699 = vmatmul.mubr.f32.gmra.mrb[0].mxu0 %v737
        %v1700 = vpop.f32.mrb[0].mxu0
        %v1701 = vadd.f32 0.0, %v1700
        %v1702 = vpop.f32.mrb[0].mxu0
        %v1703 = vadd.f32 0.0, %v1702
        %1704 = vdwg.mxu0
        %1705 = vmatprep.subr.mxu0 %v1626
        %1706 = vmatpush1.msra.mxu0 %v1623
        %1707 = vmatprep.subr.mxu0 0.0
        %1708 = vmatpush1.msra.mxu0 0.0
        %1709 = vmatprep.subr.mxu0 0.0
        %1710 = vmatpush1.msra.mxu0 0.0
        %1711 = vmatprep.subr.mxu0 0.0
        %1712 = vmatpush1.msra.mxu0 0.0
        %1713 = vmatprep.subr.mxu0 0.0
        %1714 = vmatpush1.msra.mxu0 0.0
        %1715 = vmatprep.subr.mxu0 0.0
        %1716 = vmatpush1.msra.mxu0 0.0
        %1717 = vmatprep.subr.mxu0 0.0
        %1718 = vmatpush1.msra.mxu0 0.0
        %1719 = vmatprep.subr.mxu0 0.0
        %1720 = vmatpush1.msra.mxu0 0.0
        %1721 = vmatprep.subr.mxu0 0.0
        %1722 = vmatpush1.msra.mxu0 0.0
        %1723 = vmatprep.subr.mxu0 0.0
        %1724 = vmatpush1.msra.mxu0 0.0
        %1725 = vmatprep.subr.mxu0 0.0
        %1726 = vmatpush1.msra.mxu0 0.0
        %1727 = vmatprep.subr.mxu0 0.0
        %1728 = vmatpush1.msra.mxu0 0.0
        %1729 = vmatprep.subr.mxu0 0.0
        %1730 = vmatpush1.msra.mxu0 0.0
        %1731 = vmatprep.subr.mxu0 0.0
        %1732 = vmatpush1.msra.mxu0 0.0
        %1733 = vmatprep.subr.mxu0 0.0
        %1734 = vmatpush1.msra.mxu0 0.0
        %1735 = vmatprep.subr.mxu0 0.0
        %1736 = vmatpush1.msra.mxu0 0.0
        %1737 = vmatprep.subr.mxu0 0.0
        %1738 = vmatpush1.msra.mxu0 0.0
        %1739 = vmatprep.subr.mxu0 0.0
        %1740 = vmatpush1.msra.mxu0 0.0
        %1741 = vmatprep.subr.mxu0 0.0
        %1742 = vmatpush1.msra.mxu0 0.0
        %1743 = vmatprep.subr.mxu0 0.0
        %1744 = vmatpush1.msra.mxu0 0.0
        %1745 = vmatprep.subr.mxu0 0.0
        %1746 = vmatpush1.msra.mxu0 0.0
        %1747 = vmatprep.subr.mxu0 0.0
        %1748 = vmatpush1.msra.mxu0 0.0
        %1749 = vmatprep.subr.mxu0 0.0
        %1750 = vmatpush1.msra.mxu0 0.0
        %1751 = vmatprep.subr.mxu0 0.0
        %1752 = vmatpush1.msra.mxu0 0.0
        %1753 = vmatprep.subr.mxu0 0.0
        %1754 = vmatpush1.msra.mxu0 0.0
        %1755 = vmatprep.subr.mxu0 0.0
        %1756 = vmatpush1.msra.mxu0 0.0
        %1757 = vmatprep.subr.mxu0 0.0
        %1758 = vmatpush1.msra.mxu0 0.0
        %1759 = vmatprep.subr.mxu0 0.0
        %1760 = vmatpush1.msra.mxu0 0.0
        %1761 = vmatprep.subr.mxu0 0.0
        %1762 = vmatpush1.msra.mxu0 0.0
        %1763 = vmatprep.subr.mxu0 0.0
        %1764 = vmatpush1.msra.mxu0 0.0
        %1765 = vmatprep.subr.mxu0 0.0
        %1766 = vmatpush1.msra.mxu0 0.0
        %1767 = vmatprep.subr.mxu0 0.0
        %1768 = vmatpush1.msra.mxu0 0.0
        %1769 = vmatprep.mubr.f32.mxu0 0.0
        %1770 = vmatmul.mubr.f32.gmra.mrb[0].mxu0 %v749
        %v1771 = vpop.f32.mrb[0].mxu0
        %v1772 = vadd.f32 %v1701, %v1771
        %v1773 = vpop.f32.mrb[0].mxu0
        %v1774 = vadd.f32 %v1703, %v1773
        %1775 = vdwg.mxu0
        %1776 = vmatprep.subr.mxu0 %v1493
        %1777 = vmatpush1.msra.mxu0 %v1492
        %1778 = vmatprep.subr.mxu0 %v1497
        %1779 = vmatpush1.msra.mxu0 %v1496
        %1780 = vmatprep.subr.mxu0 %v1501
        %1781 = vmatpush1.msra.mxu0 %v1500
        %1782 = vmatprep.subr.mxu0 %v1505
        %1783 = vmatpush1.msra.mxu0 %v1504
        %1784 = vmatprep.subr.mxu0 %v1509
        %1785 = vmatpush1.msra.mxu0 %v1508
        %1786 = vmatprep.subr.mxu0 %v1513
        %1787 = vmatpush1.msra.mxu0 %v1512
        %1788 = vmatprep.subr.mxu0 %v1517
        %1789 = vmatpush1.msra.mxu0 %v1516
        %1790 = vmatprep.subr.mxu0 %v1521
        %1791 = vmatpush1.msra.mxu0 %v1520
        %1792 = vmatprep.subr.mxu0 %v1525
        %1793 = vmatpush1.msra.mxu0 %v1524
        %1794 = vmatprep.subr.mxu0 %v1529
        %1795 = vmatpush1.msra.mxu0 %v1528
        %1796 = vmatprep.subr.mxu0 %v1533
        %1797 = vmatpush1.msra.mxu0 %v1532
        %1798 = vmatprep.subr.mxu0 %v1537
        %1799 = vmatpush1.msra.mxu0 %v1536
        %1800 = vmatprep.subr.mxu0 %v1541
        %1801 = vmatpush1.msra.mxu0 %v1540
        %1802 = vmatprep.subr.mxu0 %v1545
        %1803 = vmatpush1.msra.mxu0 %v1544
        %1804 = vmatprep.subr.mxu0 %v1549
        %1805 = vmatpush1.msra.mxu0 %v1548
        %1806 = vmatprep.subr.mxu0 %v1553
        %1807 = vmatpush1.msra.mxu0 %v1552
        %1808 = vmatprep.subr.mxu0 %v1557
        %1809 = vmatpush1.msra.mxu0 %v1556
        %1810 = vmatprep.subr.mxu0 %v1561
        %1811 = vmatpush1.msra.mxu0 %v1560
        %1812 = vmatprep.subr.mxu0 %v1565
        %1813 = vmatpush1.msra.mxu0 %v1564
        %1814 = vmatprep.subr.mxu0 %v1569
        %1815 = vmatpush1.msra.mxu0 %v1568
        %1816 = vmatprep.subr.mxu0 %v1573
        %1817 = vmatpush1.msra.mxu0 %v1572
        %1818 = vmatprep.subr.mxu0 %v1577
        %1819 = vmatpush1.msra.mxu0 %v1576
        %1820 = vmatprep.subr.mxu0 %v1581
        %1821 = vmatpush1.msra.mxu0 %v1580
        %1822 = vmatprep.subr.mxu0 %v1585
        %1823 = vmatpush1.msra.mxu0 %v1584
        %1824 = vmatprep.subr.mxu0 %v1589
        %1825 = vmatpush1.msra.mxu0 %v1588
        %1826 = vmatprep.subr.mxu0 %v1593
        %1827 = vmatpush1.msra.mxu0 %v1592
        %1828 = vmatprep.subr.mxu0 %v1597
        %1829 = vmatpush1.msra.mxu0 %v1596
        %1830 = vmatprep.subr.mxu0 %v1601
        %1831 = vmatpush1.msra.mxu0 %v1600
        %1832 = vmatprep.subr.mxu0 %v1605
        %1833 = vmatpush1.msra.mxu0 %v1604
        %1834 = vmatprep.subr.mxu0 %v1609
        %1835 = vmatpush1.msra.mxu0 %v1608
        %1836 = vmatprep.subr.mxu0 %v1613
        %1837 = vmatpush1.msra.mxu0 %v1612
        %1838 = vmatprep.subr.mxu0 %v1617
        %1839 = vmatpush1.msra.mxu0 %v1616
        %1840 = vmatprep.mubr.f32.mxu0 %v745
        %1841 = vmatmul.mubr.f32.gmra.mrb[0].mxu0 %v737
        %v1842 = vpop.f32.mrb[0].mxu0
        %v1843 = vadd.f32 0.0, %v1842
        %v1844 = vpop.f32.mrb[0].mxu0
        %v1845 = vadd.f32 0.0, %v1844
        %1846 = vdwg.mxu0
        %1847 = vmatprep.subr.mxu0 %v1632
        %1848 = vmatpush1.msra.mxu0 %v1629
        %1849 = vmatprep.subr.mxu0 0.0
        %1850 = vmatpush1.msra.mxu0 0.0
        %1851 = vmatprep.subr.mxu0 0.0
        %1852 = vmatpush1.msra.mxu0 0.0
        %1853 = vmatprep.subr.mxu0 0.0
        %1854 = vmatpush1.msra.mxu0 0.0
        %1855 = vmatprep.subr.mxu0 0.0
        %1856 = vmatpush1.msra.mxu0 0.0
        %1857 = vmatprep.subr.mxu0 0.0
        %1858 = vmatpush1.msra.mxu0 0.0
        %1859 = vmatprep.subr.mxu0 0.0
        %1860 = vmatpush1.msra.mxu0 0.0
        %1861 = vmatprep.subr.mxu0 0.0
        %1862 = vmatpush1.msra.mxu0 0.0
        %1863 = vmatprep.subr.mxu0 0.0
        %1864 = vmatpush1.msra.mxu0 0.0
        %1865 = vmatprep.subr.mxu0 0.0
        %1866 = vmatpush1.msra.mxu0 0.0
        %1867 = vmatprep.subr.mxu0 0.0
        %1868 = vmatpush1.msra.mxu0 0.0
        %1869 = vmatprep.subr.mxu0 0.0
        %1870 = vmatpush1.msra.mxu0 0.0
        %1871 = vmatprep.subr.mxu0 0.0
        %1872 = vmatpush1.msra.mxu0 0.0
        %1873 = vmatprep.subr.mxu0 0.0
        %1874 = vmatpush1.msra.mxu0 0.0
        %1875 = vmatprep.subr.mxu0 0.0
        %1876 = vmatpush1.msra.mxu0 0.0
        %1877 = vmatprep.subr.mxu0 0.0
        %1878 = vmatpush1.msra.mxu0 0.0
        %1879 = vmatprep.subr.mxu0 0.0
        %1880 = vmatpush1.msra.mxu0 0.0
        %1881 = vmatprep.subr.mxu0 0.0
        %1882 = vmatpush1.msra.mxu0 0.0
        %1883 = vmatprep.subr.mxu0 0.0
        %1884 = vmatpush1.msra.mxu0 0.0
        %1885 = vmatprep.subr.mxu0 0.0
        %1886 = vmatpush1.msra.mxu0 0.0
        %1887 = vmatprep.subr.mxu0 0.0
        %1888 = vmatpush1.msra.mxu0 0.0
        %1889 = vmatprep.subr.mxu0 0.0
        %1890 = vmatpush1.msra.mxu0 0.0
        %1891 = vmatprep.subr.mxu0 0.0
        %1892 = vmatpush1.msra.mxu0 0.0
        %1893 = vmatprep.subr.mxu0 0.0
        %1894 = vmatpush1.msra.mxu0 0.0
        %1895 = vmatprep.subr.mxu0 0.0
        %1896 = vmatpush1.msra.mxu0 0.0
        %1897 = vmatprep.subr.mxu0 0.0
        %1898 = vmatpush1.msra.mxu0 0.0
        %1899 = vmatprep.subr.mxu0 0.0
        %1900 = vmatpush1.msra.mxu0 0.0
        %1901 = vmatprep.subr.mxu0 0.0
        %1902 = vmatpush1.msra.mxu0 0.0
        %1903 = vmatprep.subr.mxu0 0.0
        %1904 = vmatpush1.msra.mxu0 0.0
        %1905 = vmatprep.subr.mxu0 0.0
        %1906 = vmatpush1.msra.mxu0 0.0
        %1907 = vmatprep.subr.mxu0 0.0
        %1908 = vmatpush1.msra.mxu0 0.0
        %1909 = vmatprep.subr.mxu0 0.0
        %1910 = vmatpush1.msra.mxu0 0.0
        %1911 = vmatprep.mubr.f32.mxu0 0.0
        %1912 = vmatmul.mubr.f32.gmra.mrb[0].mxu0 %v749
        %v1913 = vpop.f32.mrb[0].mxu0
        %v1914 = vadd.f32 %v1843, %v1913
        %v1915 = vpop.f32.mrb[0].mxu0
        %v1916 = vadd.f32 %v1845, %v1915
        %1917 = vdwg.mxu0
        %v1919 = vsel %vm1048, %v1469, 0
        %1921 = vmatprep.subr.mxu0 %v1474
        %1922 = vmatpush1.msra.mxu0 %v1473
        %1923 = vmatprep.subr.mxu0 %v1478
        %1924 = vmatpush1.msra.mxu0 %v1477
        %1925 = vmatprep.subr.mxu0 %v1482
        %1926 = vmatpush1.msra.mxu0 %v1481
        %1927 = vmatprep.subr.mxu0 %v1486
        %1928 = vmatpush1.msra.mxu0 %v1485
        %1929 = vmatprep.subr.mxu0 0.0
        %1930 = vmatpush1.msra.mxu0 0.0
        %1931 = vmatprep.subr.mxu0 0.0
        %1932 = vmatpush1.msra.mxu0 0.0
        %1933 = vmatprep.subr.mxu0 0.0
        %1934 = vmatpush1.msra.mxu0 0.0
        %1935 = vmatprep.subr.mxu0 0.0
        %1936 = vmatpush1.msra.mxu0 0.0
        %1937 = vmatprep.subr.mxu0 0.0
        %1938 = vmatpush1.msra.mxu0 0.0
        %1939 = vmatprep.subr.mxu0 0.0
        %1940 = vmatpush1.msra.mxu0 0.0
        %1941 = vmatprep.subr.mxu0 0.0
        %1942 = vmatpush1.msra.mxu0 0.0
        %1943 = vmatprep.subr.mxu0 0.0
        %1944 = vmatpush1.msra.mxu0 0.0
        %1945 = vmatprep.subr.mxu0 0.0
        %1946 = vmatpush1.msra.mxu0 0.0
        %1947 = vmatprep.subr.mxu0 0.0
        %1948 = vmatpush1.msra.mxu0 0.0
        %1949 = vmatprep.subr.mxu0 0.0
        %1950 = vmatpush1.msra.mxu0 0.0
        %1951 = vmatprep.subr.mxu0 0.0
        %1952 = vmatpush1.msra.mxu0 0.0
        %1953 = vmatprep.subr.mxu0 0.0
        %1954 = vmatpush1.msra.mxu0 0.0
        %1955 = vmatprep.subr.mxu0 0.0
        %1956 = vmatpush1.msra.mxu0 0.0
        %1957 = vmatprep.subr.mxu0 0.0
        %1958 = vmatpush1.msra.mxu0 0.0
        %1959 = vmatprep.subr.mxu0 0.0
        %1960 = vmatpush1.msra.mxu0 0.0
        %1961 = vmatprep.subr.mxu0 0.0
        %1962 = vmatpush1.msra.mxu0 0.0
        %1963 = vmatprep.subr.mxu0 0.0
        %1964 = vmatpush1.msra.mxu0 0.0
        %1965 = vmatprep.subr.mxu0 0.0
        %1966 = vmatpush1.msra.mxu0 0.0
        %1967 = vmatprep.subr.mxu0 0.0
        %1968 = vmatpush1.msra.mxu0 0.0
        %1969 = vmatprep.subr.mxu0 0.0
        %1970 = vmatpush1.msra.mxu0 0.0
        %1971 = vmatprep.subr.mxu0 0.0
        %1972 = vmatpush1.msra.mxu0 0.0
        %1973 = vmatprep.subr.mxu0 0.0
        %1974 = vmatpush1.msra.mxu0 0.0
        %1975 = vmatprep.subr.mxu0 0.0
        %1976 = vmatpush1.msra.mxu0 0.0
        %1977 = vmatprep.subr.mxu0 0.0
        %1978 = vmatpush1.msra.mxu0 0.0
        %1979 = vmatprep.subr.mxu0 0.0
        %1980 = vmatpush1.msra.mxu0 0.0
        %1981 = vmatprep.subr.mxu0 0.0
        %1982 = vmatpush1.msra.mxu0 0.0
        %1983 = vmatprep.subr.mxu0 0.0
        %1984 = vmatpush1.msra.mxu0 0.0
        %1985 = vmatprep.mubr.f32.mxu0 0.0
        %1986 = vmatmul.mubr.f32.gmra.mrb[0].mxu0 %v1919
        %v1987 = vpop.f32.mrb[0].mxu0
        %v1988 = vadd.f32 %v1772, %v1987
        %v1989 = vpop.f32.mrb[0].mxu0
        %v1990 = vadd.f32 %v1774, %v1989
        %1991 = vdwg.mxu0
        %1992 = vmatprep.subr.mxu0 %v1476
        %1993 = vmatpush1.msra.mxu0 %v1475
        %1994 = vmatprep.subr.mxu0 %v1480
        %1995 = vmatpush1.msra.mxu0 %v1479
        %1996 = vmatprep.subr.mxu0 %v1484
        %1997 = vmatpush1.msra.mxu0 %v1483
        %1998 = vmatprep.subr.mxu0 %v1488
        %1999 = vmatpush1.msra.mxu0 %v1487
        %2000 = vmatprep.subr.mxu0 0.0
        %2001 = vmatpush1.msra.mxu0 0.0
        %2002 = vmatprep.subr.mxu0 0.0
        %2003 = vmatpush1.msra.mxu0 0.0
        %2004 = vmatprep.subr.mxu0 0.0
        %2005 = vmatpush1.msra.mxu0 0.0
        %2006 = vmatprep.subr.mxu0 0.0
        %2007 = vmatpush1.msra.mxu0 0.0
        %2008 = vmatprep.subr.mxu0 0.0
        %2009 = vmatpush1.msra.mxu0 0.0
        %2010 = vmatprep.subr.mxu0 0.0
        %2011 = vmatpush1.msra.mxu0 0.0
        %2012 = vmatprep.subr.mxu0 0.0
        %2013 = vmatpush1.msra.mxu0 0.0
        %2014 = vmatprep.subr.mxu0 0.0
        %2015 = vmatpush1.msra.mxu0 0.0
        %2016 = vmatprep.subr.mxu0 0.0
        %2017 = vmatpush1.msra.mxu0 0.0
        %2018 = vmatprep.subr.mxu0 0.0
        %2019 = vmatpush1.msra.mxu0 0.0
        %2020 = vmatprep.subr.mxu0 0.0
        %2021 = vmatpush1.msra.mxu0 0.0
        %2022 = vmatprep.subr.mxu0 0.0
        %2023 = vmatpush1.msra.mxu0 0.0
        %2024 = vmatprep.subr.mxu0 0.0
        %2025 = vmatpush1.msra.mxu0 0.0
        %2026 = vmatprep.subr.mxu0 0.0
        %2027 = vmatpush1.msra.mxu0 0.0
        %2028 = vmatprep.subr.mxu0 0.0
        %2029 = vmatpush1.msra.mxu0 0.0
        %2030 = vmatprep.subr.mxu0 0.0
        %2031 = vmatpush1.msra.mxu0 0.0
        %2032 = vmatprep.subr.mxu0 0.0
        %2033 = vmatpush1.msra.mxu0 0.0
        %2034 = vmatprep.subr.mxu0 0.0
        %2035 = vmatpush1.msra.mxu0 0.0
        %2036 = vmatprep.subr.mxu0 0.0
        %2037 = vmatpush1.msra.mxu0 0.0
        %2038 = vmatprep.subr.mxu0 0.0
        %2039 = vmatpush1.msra.mxu0 0.0
        %2040 = vmatprep.subr.mxu0 0.0
        %2041 = vmatpush1.msra.mxu0 0.0
        %2042 = vmatprep.subr.mxu0 0.0
        %2043 = vmatpush1.msra.mxu0 0.0
        %2044 = vmatprep.subr.mxu0 0.0
        %2045 = vmatpush1.msra.mxu0 0.0
        %2046 = vmatprep.subr.mxu0 0.0
        %2047 = vmatpush1.msra.mxu0 0.0
        %2048 = vmatprep.subr.mxu0 0.0
        %2049 = vmatpush1.msra.mxu0 0.0
        %2050 = vmatprep.subr.mxu0 0.0
        %2051 = vmatpush1.msra.mxu0 0.0
        %2052 = vmatprep.subr.mxu0 0.0
        %2053 = vmatpush1.msra.mxu0 0.0
        %2054 = vmatprep.subr.mxu0 0.0
        %2055 = vmatpush1.msra.mxu0 0.0
        %2056 = vmatprep.mubr.f32.mxu0 0.0
        %2057 = vmatmul.mubr.f32.gmra.mrb[0].mxu0 %v1919
        %v2058 = vpop.f32.mrb[0].mxu0
        %v2059 = vadd.f32 %v1914, %v2058
        %v2060 = vpop.f32.mrb[0].mxu0
        %v2061 = vadd.f32 %v1916, %v2060
        %2062 = vdwg.mxu0
        %s2063 = scalar_lea.vmem %s350, 4
        %v2064 = vld [vmem:[%s2063] sm:$0xf]
        %v2066 = vlaneseq
        %v2067 = vshrl.u32 %v2066, 7
        %v2068 = vsub.s32 0, %v2067
        %v2069 = vrot.slane %v2064, %v2068
        %v2070 = vlaneseq
        %v2071 = vshrl.u32 %v2070, 7
        %v2072 = vsub.s32 1, %v2071
        %v2073 = vrot.slane %v2064, %v2072
        %v2074 = vlaneseq
        %v2075 = vshrl.u32 %v2074, 7
        %v2076 = vsub.s32 2, %v2075
        %v2077 = vrot.slane %v2064, %v2076
        %v2078 = vlaneseq
        %v2079 = vshrl.u32 %v2078, 7
        %v2080 = vsub.s32 3, %v2079
        %v2081 = vrot.slane %v2064, %v2080
        %v2086 = vadd.f32 %v1988, %v2069
        %v2087 = vadd.f32 %v1990, %v2073
        %v2088 = vadd.f32 %v2059, %v2077
        %v2089 = vadd.f32 %v2061, %v2081
        %v2094 = vcombine.low %v2086, %v2087
        %v2095 = vcombine.low %v2088, %v2089
        %v2097 = vunpack.c.l.s4 1983009808
        %v2098 = vunpack.c.0.s8 %v2097
        %v2099 = vlaneseq
        %v2100 = vshrl.u32 %v2099, 7
        %v2101 = vsub.s32 %v2098, %v2100
        %v2102 = vrot.slane %v2094, %v2101
        %v2104 = vunpack.c.l.s4 1983009808
        %v2105 = vunpack.c.0.s8 %v2104
        %v2106 = vlaneseq
        %v2107 = vshrl.u32 %v2106, 7
        %v2108 = vsub.s32 %v2105, %v2107
        %v2109 = vrot.slane %v2095, %v2108
        %v2110 = vcombine.low %v2102, %v2109
        %2112 = vst [vmem:[%s317 + $0x8] sm:$0xff] %v2110
        %s2113 = scalar_lea.vmem %s323, 16
        %v2114 = vld [vmem:[%s2113] sm:$0xff]
        %s2115 = scalar_lea.vmem %s330, 1024
        %v2116 = vld [vmem:[%s2115] sm:$0xff]
        %v2117 = vld [vmem:[%s2115 + $0x8] sm:$0xff]
        %v2118 = vld [vmem:[%s2115 + $0x10] sm:$0xff]
        %v2119 = vld [vmem:[%s2115 + $0x18] sm:$0xff]
        %v2120 = vld [vmem:[%s2115 + $0x20] sm:$0xff]
        %v2121 = vld [vmem:[%s2115 + $0x28] sm:$0xff]
        %v2122 = vld [vmem:[%s2115 + $0x30] sm:$0xff]
        %v2123 = vld [vmem:[%s2115 + $0x38] sm:$0xff]
        %v2124 = vld [vmem:[%s2115 + $0x40] sm:$0xff]
        %v2125 = vld [vmem:[%s2115 + $0x48] sm:$0xff]
        %v2126 = vld [vmem:[%s2115 + $0x50] sm:$0xff]
        %v2127 = vld [vmem:[%s2115 + $0x58] sm:$0xff]
        %v2128 = vld [vmem:[%s2115 + $0x60] sm:$0xff]
        %v2129 = vld [vmem:[%s2115 + $0x68] sm:$0xff]
        %v2130 = vld [vmem:[%s2115 + $0x70] sm:$0xff]
        %v2131 = vld [vmem:[%s2115 + $0x78] sm:$0xff]
        %v2132 = vld [vmem:[%s2115 + $0x80] sm:$0xff]
        %v2133 = vld [vmem:[%s2115 + $0x88] sm:$0xff]
        %v2134 = vld [vmem:[%s2115 + $0x90] sm:$0xff]
        %v2135 = vld [vmem:[%s2115 + $0x98] sm:$0xff]
        %v2136 = vld [vmem:[%s2115 + $0xa0] sm:$0xff]
        %v2137 = vld [vmem:[%s2115 + $0xa8] sm:$0xff]
        %v2138 = vld [vmem:[%s2115 + $0xb0] sm:$0xff]
        %v2139 = vld [vmem:[%s2115 + $0xb8] sm:$0xff]
        %v2140 = vld [vmem:[%s2115 + $0xc0] sm:$0xff]
        %v2141 = vld [vmem:[%s2115 + $0xc8] sm:$0xff]
        %v2142 = vld [vmem:[%s2115 + $0xd0] sm:$0xff]
        %v2143 = vld [vmem:[%s2115 + $0xd8] sm:$0xff]
        %v2144 = vld [vmem:[%s2115 + $0xe0] sm:$0xff]
        %v2145 = vld [vmem:[%s2115 + $0xe8] sm:$0xff]
        %v2146 = vld [vmem:[%s2115 + $0xf0] sm:$0xff]
        %v2147 = vld [vmem:[%s2115 + $0xf8] sm:$0xff]
        %v2148 = vld [vmem:[%s2115 + $0x100] sm:$0xff]
        %v2149 = vld [vmem:[%s2115 + $0x108] sm:$0xff]
        %v2150 = vld [vmem:[%s2115 + $0x110] sm:$0xff]
        %v2151 = vld [vmem:[%s2115 + $0x118] sm:$0xff]
        %v2152 = vld [vmem:[%s2115 + $0x120] sm:$0xff]
        %v2153 = vld [vmem:[%s2115 + $0x128] sm:$0xff]
        %v2154 = vld [vmem:[%s2115 + $0x130] sm:$0xff]
        %v2155 = vld [vmem:[%s2115 + $0x138] sm:$0xff]
        %v2156 = vld [vmem:[%s2115 + $0x140] sm:$0xff]
        %v2157 = vld [vmem:[%s2115 + $0x148] sm:$0xff]
        %v2158 = vld [vmem:[%s2115 + $0x150] sm:$0xff]
        %v2159 = vld [vmem:[%s2115 + $0x158] sm:$0xff]
        %v2160 = vld [vmem:[%s2115 + $0x160] sm:$0xff]
        %v2161 = vld [vmem:[%s2115 + $0x168] sm:$0xff]
        %v2162 = vld [vmem:[%s2115 + $0x170] sm:$0xff]
        %v2163 = vld [vmem:[%s2115 + $0x178] sm:$0xff]
        %v2164 = vld [vmem:[%s2115 + $0x180] sm:$0xff]
        %v2165 = vld [vmem:[%s2115 + $0x188] sm:$0xff]
        %v2166 = vld [vmem:[%s2115 + $0x190] sm:$0xff]
        %v2167 = vld [vmem:[%s2115 + $0x198] sm:$0xff]
        %v2168 = vld [vmem:[%s2115 + $0x1a0] sm:$0xff]
        %v2169 = vld [vmem:[%s2115 + $0x1a8] sm:$0xff]
        %v2170 = vld [vmem:[%s2115 + $0x1b0] sm:$0xff]
        %v2171 = vld [vmem:[%s2115 + $0x1b8] sm:$0xff]
        %v2172 = vld [vmem:[%s2115 + $0x1c0] sm:$0xff]
        %v2173 = vld [vmem:[%s2115 + $0x1c8] sm:$0xff]
        %v2174 = vld [vmem:[%s2115 + $0x1d0] sm:$0xff]
        %v2175 = vld [vmem:[%s2115 + $0x1d8] sm:$0xff]
        %v2176 = vld [vmem:[%s2115 + $0x1e0] sm:$0xff]
        %v2177 = vld [vmem:[%s2115 + $0x1e8] sm:$0xff]
        %v2178 = vld [vmem:[%s2115 + $0x1f0] sm:$0xff]
        %v2179 = vld [vmem:[%s2115 + $0x1f8] sm:$0xff]
        %v2181 = vcombine.high %v2114, %v2114
        %v2183 = vunpack.c.l.s4 1983009808
        %v2184 = vunpack.c.0.s8 %v2183
        %v2185 = vlaneseq
        %v2186 = vshrl.u32 %v2185, 7
        %v2187 = vsub.s32 %v2184, %v2186
        %v2188 = vrot.slane %v2114, %v2187
        %v2190 = vunpack.c.l.s4 1983009808
        %v2191 = vunpack.c.0.s8 %v2190
        %v2192 = vlaneseq
        %v2193 = vshrl.u32 %v2192, 7
        %v2194 = vsub.s32 %v2191, %v2193
        %v2195 = vrot.slane %v2181, %v2194
        %v2196 = vcombine.high %v2188, %v2188
        %v2197 = vcombine.high %v2195, %v2195
        %2202 = vmatprep.subr.mxu0 0.0
        %2203 = vmatpush1.msra.mxu0 %v2116
        %2204 = vmatprep.subr.mxu0 0.0
        %2205 = vmatpush1.msra.mxu0 %v2117
        %2206 = vmatprep.subr.mxu0 0.0
        %2207 = vmatpush1.msra.mxu0 %v2118
        %2208 = vmatprep.subr.mxu0 0.0
        %2209 = vmatpush1.msra.mxu0 %v2119
        %2210 = vmatprep.subr.mxu0 0.0
        %2211 = vmatpush1.msra.mxu0 %v2120
        %2212 = vmatprep.subr.mxu0 0.0
        %2213 = vmatpush1.msra.mxu0 %v2121
        %2214 = vmatprep.subr.mxu0 0.0
        %2215 = vmatpush1.msra.mxu0 %v2122
        %2216 = vmatprep.subr.mxu0 0.0
        %2217 = vmatpush1.msra.mxu0 %v2123
        %2218 = vmatprep.subr.mxu0 0.0
        %2219 = vmatpush1.msra.mxu0 %v2124
        %2220 = vmatprep.subr.mxu0 0.0
        %2221 = vmatpush1.msra.mxu0 %v2125
        %2222 = vmatprep.subr.mxu0 0.0
        %2223 = vmatpush1.msra.mxu0 %v2126
        %2224 = vmatprep.subr.mxu0 0.0
        %2225 = vmatpush1.msra.mxu0 %v2127
        %2226 = vmatprep.subr.mxu0 0.0
        %2227 = vmatpush1.msra.mxu0 %v2128
        %2228 = vmatprep.subr.mxu0 0.0
        %2229 = vmatpush1.msra.mxu0 %v2129
        %2230 = vmatprep.subr.mxu0 0.0
        %2231 = vmatpush1.msra.mxu0 %v2130
        %2232 = vmatprep.subr.mxu0 0.0
        %2233 = vmatpush1.msra.mxu0 %v2131
        %2234 = vmatprep.subr.mxu0 0.0
        %2235 = vmatpush1.msra.mxu0 %v2132
        %2236 = vmatprep.subr.mxu0 0.0
        %2237 = vmatpush1.msra.mxu0 %v2133
        %2238 = vmatprep.subr.mxu0 0.0
        %2239 = vmatpush1.msra.mxu0 %v2134
        %2240 = vmatprep.subr.mxu0 0.0
        %2241 = vmatpush1.msra.mxu0 %v2135
        %2242 = vmatprep.subr.mxu0 0.0
        %2243 = vmatpush1.msra.mxu0 %v2136
        %2244 = vmatprep.subr.mxu0 0.0
        %2245 = vmatpush1.msra.mxu0 %v2137
        %2246 = vmatprep.subr.mxu0 0.0
        %2247 = vmatpush1.msra.mxu0 %v2138
        %2248 = vmatprep.subr.mxu0 0.0
        %2249 = vmatpush1.msra.mxu0 %v2139
        %2250 = vmatprep.subr.mxu0 0.0
        %2251 = vmatpush1.msra.mxu0 %v2140
        %2252 = vmatprep.subr.mxu0 0.0
        %2253 = vmatpush1.msra.mxu0 %v2141
        %2254 = vmatprep.subr.mxu0 0.0
        %2255 = vmatpush1.msra.mxu0 %v2142
        %2256 = vmatprep.subr.mxu0 0.0
        %2257 = vmatpush1.msra.mxu0 %v2143
        %2258 = vmatprep.subr.mxu0 0.0
        %2259 = vmatpush1.msra.mxu0 %v2144
        %2260 = vmatprep.subr.mxu0 0.0
        %2261 = vmatpush1.msra.mxu0 %v2145
        %2262 = vmatprep.subr.mxu0 0.0
        %2263 = vmatpush1.msra.mxu0 %v2146
        %2264 = vmatprep.subr.mxu0 0.0
        %2265 = vmatpush1.msra.mxu0 %v2147
        %2266 = vmatprep.mubr.f32.mxu0 %v2196
        %2267 = vmatmul.mubr.f32.gmra.mrb[0].mxu0 %v2188
        %v2268 = vpop.f32.mrb[0].mxu0
        %v2269 = vadd.f32 0.0, %v2268
        %v2270 = vpop.f32.mrb[0].mxu0
        %2271 = vdwg.mxu0
        %2272 = vmatprep.subr.mxu0 0.0
        %2273 = vmatpush1.msra.mxu0 %v2148
        %2274 = vmatprep.subr.mxu0 0.0
        %2275 = vmatpush1.msra.mxu0 %v2149
        %2276 = vmatprep.subr.mxu0 0.0
        %2277 = vmatpush1.msra.mxu0 %v2150
        %2278 = vmatprep.subr.mxu0 0.0
        %2279 = vmatpush1.msra.mxu0 %v2151
        %2280 = vmatprep.subr.mxu0 0.0
        %2281 = vmatpush1.msra.mxu0 %v2152
        %2282 = vmatprep.subr.mxu0 0.0
        %2283 = vmatpush1.msra.mxu0 %v2153
        %2284 = vmatprep.subr.mxu0 0.0
        %2285 = vmatpush1.msra.mxu0 %v2154
        %2286 = vmatprep.subr.mxu0 0.0
        %2287 = vmatpush1.msra.mxu0 %v2155
        %2288 = vmatprep.subr.mxu0 0.0
        %2289 = vmatpush1.msra.mxu0 %v2156
        %2290 = vmatprep.subr.mxu0 0.0
        %2291 = vmatpush1.msra.mxu0 %v2157
        %2292 = vmatprep.subr.mxu0 0.0
        %2293 = vmatpush1.msra.mxu0 %v2158
        %2294 = vmatprep.subr.mxu0 0.0
        %2295 = vmatpush1.msra.mxu0 %v2159
        %2296 = vmatprep.subr.mxu0 0.0
        %2297 = vmatpush1.msra.mxu0 %v2160
        %2298 = vmatprep.subr.mxu0 0.0
        %2299 = vmatpush1.msra.mxu0 %v2161
        %2300 = vmatprep.subr.mxu0 0.0
        %2301 = vmatpush1.msra.mxu0 %v2162
        %2302 = vmatprep.subr.mxu0 0.0
        %2303 = vmatpush1.msra.mxu0 %v2163
        %2304 = vmatprep.subr.mxu0 0.0
        %2305 = vmatpush1.msra.mxu0 %v2164
        %2306 = vmatprep.subr.mxu0 0.0
        %2307 = vmatpush1.msra.mxu0 %v2165
        %2308 = vmatprep.subr.mxu0 0.0
        %2309 = vmatpush1.msra.mxu0 %v2166
        %2310 = vmatprep.subr.mxu0 0.0
        %2311 = vmatpush1.msra.mxu0 %v2167
        %2312 = vmatprep.subr.mxu0 0.0
        %2313 = vmatpush1.msra.mxu0 %v2168
        %2314 = vmatprep.subr.mxu0 0.0
        %2315 = vmatpush1.msra.mxu0 %v2169
        %2316 = vmatprep.subr.mxu0 0.0
        %2317 = vmatpush1.msra.mxu0 %v2170
        %2318 = vmatprep.subr.mxu0 0.0
        %2319 = vmatpush1.msra.mxu0 %v2171
        %2320 = vmatprep.subr.mxu0 0.0
        %2321 = vmatpush1.msra.mxu0 %v2172
        %2322 = vmatprep.subr.mxu0 0.0
        %2323 = vmatpush1.msra.mxu0 %v2173
        %2324 = vmatprep.subr.mxu0 0.0
        %2325 = vmatpush1.msra.mxu0 %v2174
        %2326 = vmatprep.subr.mxu0 0.0
        %2327 = vmatpush1.msra.mxu0 %v2175
        %2328 = vmatprep.subr.mxu0 0.0
        %2329 = vmatpush1.msra.mxu0 %v2176
        %2330 = vmatprep.subr.mxu0 0.0
        %2331 = vmatpush1.msra.mxu0 %v2177
        %2332 = vmatprep.subr.mxu0 0.0
        %2333 = vmatpush1.msra.mxu0 %v2178
        %2334 = vmatprep.subr.mxu0 0.0
        %2335 = vmatpush1.msra.mxu0 %v2179
        %2336 = vmatprep.mubr.f32.mxu0 %v2197
        %2337 = vmatmul.mubr.f32.gmra.mrb[0].mxu0 %v2195
        %v2338 = vpop.f32.mrb[0].mxu0
        %v2339 = vadd.f32 %v2269, %v2338
        %v2340 = vpop.f32.mrb[0].mxu0
        %2341 = vdwg.mxu0
        %s2342 = scalar_lea.vmem %s337, 256
        %v2343 = vld [vmem:[%s2342] sm:$0xff]
        %v2344 = vld [vmem:[%s2342 + $0x8] sm:$0xff]
        %v2345 = vld [vmem:[%s2342 + $0x10] sm:$0xff]
        %v2346 = vld [vmem:[%s2342 + $0x18] sm:$0xff]
        %v2347 = vld [vmem:[%s2342 + $0x20] sm:$0xff]
        %v2348 = vld [vmem:[%s2342 + $0x28] sm:$0xff]
        %v2349 = vld [vmem:[%s2342 + $0x30] sm:$0xff]
        %v2350 = vld [vmem:[%s2342 + $0x38] sm:$0xff]
        %v2351 = vld [vmem:[%s2342 + $0x40] sm:$0xff]
        %v2352 = vld [vmem:[%s2342 + $0x48] sm:$0xff]
        %v2353 = vld [vmem:[%s2342 + $0x50] sm:$0xff]
        %v2354 = vld [vmem:[%s2342 + $0x58] sm:$0xff]
        %v2355 = vld [vmem:[%s2342 + $0x60] sm:$0xff]
        %v2356 = vld [vmem:[%s2342 + $0x68] sm:$0xff]
        %v2357 = vld [vmem:[%s2342 + $0x70] sm:$0xff]
        %v2358 = vld [vmem:[%s2342 + $0x78] sm:$0xff]
        %s2359 = scalar_lea.vmem %s344, 2112
        %v2360 = vld [vmem:[%s2359] sm:$0xff]
        %v2361 = vld [vmem:[%s2359 + $0x8] sm:$0xff]
        %v2362 = vld [vmem:[%s2359 + $0x10] sm:$0xff]
        %v2363 = vld [vmem:[%s2359 + $0x18] sm:$0xff]
        %v2364 = vld [vmem:[%s2359 + $0x20] sm:$0xff]
        %v2365 = vld [vmem:[%s2359 + $0x28] sm:$0xff]
        %v2366 = vld [vmem:[%s2359 + $0x30] sm:$0xff]
        %v2367 = vld [vmem:[%s2359 + $0x38] sm:$0xff]
        %v2368 = vld [vmem:[%s2359 + $0x40] sm:$0xff]
        %v2369 = vld [vmem:[%s2359 + $0x48] sm:$0xff]
        %v2370 = vld [vmem:[%s2359 + $0x50] sm:$0xff]
        %v2371 = vld [vmem:[%s2359 + $0x58] sm:$0xff]
        %v2372 = vld [vmem:[%s2359 + $0x60] sm:$0xff]
        %v2373 = vld [vmem:[%s2359 + $0x68] sm:$0xff]
        %v2374 = vld [vmem:[%s2359 + $0x70] sm:$0xff]
        %v2375 = vld [vmem:[%s2359 + $0x78] sm:$0xff]
        %v2376 = vld [vmem:[%s2359 + $0x80] sm:$0xff]
        %v2377 = vld [vmem:[%s2359 + $0x88] sm:$0xff]
        %v2378 = vld [vmem:[%s2359 + $0x90] sm:$0xff]
        %v2379 = vld [vmem:[%s2359 + $0x98] sm:$0xff]
        %v2380 = vld [vmem:[%s2359 + $0xa0] sm:$0xff]
        %v2381 = vld [vmem:[%s2359 + $0xa8] sm:$0xff]
        %v2382 = vld [vmem:[%s2359 + $0xb0] sm:$0xff]
        %v2383 = vld [vmem:[%s2359 + $0xb8] sm:$0xff]
        %v2384 = vld [vmem:[%s2359 + $0xc0] sm:$0xff]
        %v2385 = vld [vmem:[%s2359 + $0xc8] sm:$0xff]
        %v2386 = vld [vmem:[%s2359 + $0xd0] sm:$0xff]
        %v2387 = vld [vmem:[%s2359 + $0xd8] sm:$0xff]
        %v2388 = vld [vmem:[%s2359 + $0xe0] sm:$0xff]
        %v2389 = vld [vmem:[%s2359 + $0xe8] sm:$0xff]
        %v2390 = vld [vmem:[%s2359 + $0xf0] sm:$0xff]
        %v2391 = vld [vmem:[%s2359 + $0xf8] sm:$0xff]
        %v2392 = vld [vmem:[%s2359 + $0x100] sm:$0xff]
        %v2393 = vld [vmem:[%s2359 + $0x108] sm:$0xff]
        %v2394 = vld [vmem:[%s2359 + $0x110] sm:$0xff]
        %v2395 = vld [vmem:[%s2359 + $0x118] sm:$0xff]
        %v2396 = vld [vmem:[%s2359 + $0x120] sm:$0xff]
        %v2397 = vld [vmem:[%s2359 + $0x128] sm:$0xff]
        %v2398 = vld [vmem:[%s2359 + $0x130] sm:$0xff]
        %v2399 = vld [vmem:[%s2359 + $0x138] sm:$0xff]
        %v2400 = vld [vmem:[%s2359 + $0x140] sm:$0xff]
        %v2401 = vld [vmem:[%s2359 + $0x148] sm:$0xff]
        %v2402 = vld [vmem:[%s2359 + $0x150] sm:$0xff]
        %v2403 = vld [vmem:[%s2359 + $0x158] sm:$0xff]
        %v2404 = vld [vmem:[%s2359 + $0x160] sm:$0xff]
        %v2405 = vld [vmem:[%s2359 + $0x168] sm:$0xff]
        %v2406 = vld [vmem:[%s2359 + $0x170] sm:$0xff]
        %v2407 = vld [vmem:[%s2359 + $0x178] sm:$0xff]
        %v2408 = vld [vmem:[%s2359 + $0x180] sm:$0xff]
        %v2409 = vld [vmem:[%s2359 + $0x188] sm:$0xff]
        %v2410 = vld [vmem:[%s2359 + $0x190] sm:$0xff]
        %v2411 = vld [vmem:[%s2359 + $0x198] sm:$0xff]
        %v2412 = vld [vmem:[%s2359 + $0x1a0] sm:$0xff]
        %v2413 = vld [vmem:[%s2359 + $0x1a8] sm:$0xff]
        %v2414 = vld [vmem:[%s2359 + $0x1b0] sm:$0xff]
        %v2415 = vld [vmem:[%s2359 + $0x1b8] sm:$0xff]
        %v2416 = vld [vmem:[%s2359 + $0x1c0] sm:$0xff]
        %v2417 = vld [vmem:[%s2359 + $0x1c8] sm:$0xff]
        %v2418 = vld [vmem:[%s2359 + $0x1d0] sm:$0xff]
        %v2419 = vld [vmem:[%s2359 + $0x1d8] sm:$0xff]
        %v2420 = vld [vmem:[%s2359 + $0x1e0] sm:$0xff]
        %v2421 = vld [vmem:[%s2359 + $0x1e8] sm:$0xff]
        %v2422 = vld [vmem:[%s2359 + $0x1f0] sm:$0xff]
        %v2423 = vld [vmem:[%s2359 + $0x1f8] sm:$0xff]
        %v2424 = vld [vmem:[%s2359 + $0x200] sm:$0xff]
        %v2425 = vld [vmem:[%s2359 + $0x208] sm:$0xff]
        %v2426 = vld [vmem:[%s2359 + $0x210] sm:$0xff]
        %v2427 = vld [vmem:[%s2359 + $0x218] sm:$0xff]
        %v2428 = vld [vmem:[%s2359 + $0x220] sm:$0xff]
        %v2429 = vld [vmem:[%s2359 + $0x228] sm:$0xff]
        %v2430 = vld [vmem:[%s2359 + $0x230] sm:$0xff]
        %v2431 = vld [vmem:[%s2359 + $0x238] sm:$0xff]
        %v2432 = vld [vmem:[%s2359 + $0x240] sm:$0xff]
        %v2433 = vld [vmem:[%s2359 + $0x248] sm:$0xff]
        %v2434 = vld [vmem:[%s2359 + $0x250] sm:$0xff]
        %v2435 = vld [vmem:[%s2359 + $0x258] sm:$0xff]
        %v2436 = vld [vmem:[%s2359 + $0x260] sm:$0xff]
        %v2437 = vld [vmem:[%s2359 + $0x268] sm:$0xff]
        %v2438 = vld [vmem:[%s2359 + $0x270] sm:$0xff]
        %v2439 = vld [vmem:[%s2359 + $0x278] sm:$0xff]
        %v2440 = vld [vmem:[%s2359 + $0x280] sm:$0xff]
        %v2441 = vld [vmem:[%s2359 + $0x288] sm:$0xff]
        %v2442 = vld [vmem:[%s2359 + $0x290] sm:$0xff]
        %v2443 = vld [vmem:[%s2359 + $0x298] sm:$0xff]
        %v2444 = vld [vmem:[%s2359 + $0x2a0] sm:$0xff]
        %v2445 = vld [vmem:[%s2359 + $0x2a8] sm:$0xff]
        %v2446 = vld [vmem:[%s2359 + $0x2b0] sm:$0xff]
        %v2447 = vld [vmem:[%s2359 + $0x2b8] sm:$0xff]
        %v2448 = vld [vmem:[%s2359 + $0x2c0] sm:$0xff]
        %v2449 = vld [vmem:[%s2359 + $0x2c8] sm:$0xff]
        %v2450 = vld [vmem:[%s2359 + $0x2d0] sm:$0xff]
        %v2451 = vld [vmem:[%s2359 + $0x2d8] sm:$0xff]
        %v2452 = vld [vmem:[%s2359 + $0x2e0] sm:$0xff]
        %v2453 = vld [vmem:[%s2359 + $0x2e8] sm:$0xff]
        %v2454 = vld [vmem:[%s2359 + $0x2f0] sm:$0xff]
        %v2455 = vld [vmem:[%s2359 + $0x2f8] sm:$0xff]
        %v2456 = vld [vmem:[%s2359 + $0x300] sm:$0xff]
        %v2457 = vld [vmem:[%s2359 + $0x308] sm:$0xff]
        %v2458 = vld [vmem:[%s2359 + $0x310] sm:$0xff]
        %v2459 = vld [vmem:[%s2359 + $0x318] sm:$0xff]
        %v2460 = vld [vmem:[%s2359 + $0x320] sm:$0xff]
        %v2461 = vld [vmem:[%s2359 + $0x328] sm:$0xff]
        %v2462 = vld [vmem:[%s2359 + $0x330] sm:$0xff]
        %v2463 = vld [vmem:[%s2359 + $0x338] sm:$0xff]
        %v2464 = vld [vmem:[%s2359 + $0x340] sm:$0xff]
        %v2465 = vld [vmem:[%s2359 + $0x348] sm:$0xff]
        %v2466 = vld [vmem:[%s2359 + $0x350] sm:$0xff]
        %v2467 = vld [vmem:[%s2359 + $0x358] sm:$0xff]
        %v2468 = vld [vmem:[%s2359 + $0x360] sm:$0xff]
        %v2469 = vld [vmem:[%s2359 + $0x368] sm:$0xff]
        %v2470 = vld [vmem:[%s2359 + $0x370] sm:$0xff]
        %v2471 = vld [vmem:[%s2359 + $0x378] sm:$0xff]
        %v2472 = vld [vmem:[%s2359 + $0x380] sm:$0xff]
        %v2473 = vld [vmem:[%s2359 + $0x388] sm:$0xff]
        %v2474 = vld [vmem:[%s2359 + $0x390] sm:$0xff]
        %v2475 = vld [vmem:[%s2359 + $0x398] sm:$0xff]
        %v2476 = vld [vmem:[%s2359 + $0x3a0] sm:$0xff]
        %v2477 = vld [vmem:[%s2359 + $0x3a8] sm:$0xff]
        %v2478 = vld [vmem:[%s2359 + $0x3b0] sm:$0xff]
        %v2479 = vld [vmem:[%s2359 + $0x3b8] sm:$0xff]
        %v2480 = vld [vmem:[%s2359 + $0x3c0] sm:$0xff]
        %v2481 = vld [vmem:[%s2359 + $0x3c8] sm:$0xff]
        %v2482 = vld [vmem:[%s2359 + $0x3d0] sm:$0xff]
        %v2483 = vld [vmem:[%s2359 + $0x3d8] sm:$0xff]
        %v2484 = vld [vmem:[%s2359 + $0x3e0] sm:$0xff]
        %v2485 = vld [vmem:[%s2359 + $0x3e8] sm:$0xff]
        %v2486 = vld [vmem:[%s2359 + $0x3f0] sm:$0xff]
        %v2487 = vld [vmem:[%s2359 + $0x3f8] sm:$0xff]
        %v2488 = vld [vmem:[%s2359 + $0x400] sm:$0x1]
        %v2489 = vld [vmem:[%s2359 + $0x408] sm:$0x1]
        %v2490 = vld [vmem:[%s2359 + $0x410] sm:$0x1]
        %v2491 = vld [vmem:[%s2359 + $0x418] sm:$0x1]
        %v2493 = vsel %vm751, %v2488, 0
        %v2496 = vsel %vm751, %v2489, 0
        %v2499 = vsel %vm751, %v2490, 0
        %v2502 = vsel %vm751, %v2491, 0
        %2504 = vmatprep.subr.mxu0 %v2361
        %2505 = vmatpush1.msra.mxu0 %v2360
        %2506 = vmatprep.subr.mxu0 %v2365
        %2507 = vmatpush1.msra.mxu0 %v2364
        %2508 = vmatprep.subr.mxu0 %v2369
        %2509 = vmatpush1.msra.mxu0 %v2368
        %2510 = vmatprep.subr.mxu0 %v2373
        %2511 = vmatpush1.msra.mxu0 %v2372
        %2512 = vmatprep.subr.mxu0 %v2377
        %2513 = vmatpush1.msra.mxu0 %v2376
        %2514 = vmatprep.subr.mxu0 %v2381
        %2515 = vmatpush1.msra.mxu0 %v2380
        %2516 = vmatprep.subr.mxu0 %v2385
        %2517 = vmatpush1.msra.mxu0 %v2384
        %2518 = vmatprep.subr.mxu0 %v2389
        %2519 = vmatpush1.msra.mxu0 %v2388
        %2520 = vmatprep.subr.mxu0 %v2393
        %2521 = vmatpush1.msra.mxu0 %v2392
        %2522 = vmatprep.subr.mxu0 %v2397
        %2523 = vmatpush1.msra.mxu0 %v2396
        %2524 = vmatprep.subr.mxu0 %v2401
        %2525 = vmatpush1.msra.mxu0 %v2400
        %2526 = vmatprep.subr.mxu0 %v2405
        %2527 = vmatpush1.msra.mxu0 %v2404
        %2528 = vmatprep.subr.mxu0 %v2409
        %2529 = vmatpush1.msra.mxu0 %v2408
        %2530 = vmatprep.subr.mxu0 %v2413
        %2531 = vmatpush1.msra.mxu0 %v2412
        %2532 = vmatprep.subr.mxu0 %v2417
        %2533 = vmatpush1.msra.mxu0 %v2416
        %2534 = vmatprep.subr.mxu0 %v2421
        %2535 = vmatpush1.msra.mxu0 %v2420
        %2536 = vmatprep.subr.mxu0 %v2425
        %2537 = vmatpush1.msra.mxu0 %v2424
        %2538 = vmatprep.subr.mxu0 %v2429
        %2539 = vmatpush1.msra.mxu0 %v2428
        %2540 = vmatprep.subr.mxu0 %v2433
        %2541 = vmatpush1.msra.mxu0 %v2432
        %2542 = vmatprep.subr.mxu0 %v2437
        %2543 = vmatpush1.msra.mxu0 %v2436
        %2544 = vmatprep.subr.mxu0 %v2441
        %2545 = vmatpush1.msra.mxu0 %v2440
        %2546 = vmatprep.subr.mxu0 %v2445
        %2547 = vmatpush1.msra.mxu0 %v2444
        %2548 = vmatprep.subr.mxu0 %v2449
        %2549 = vmatpush1.msra.mxu0 %v2448
        %2550 = vmatprep.subr.mxu0 %v2453
        %2551 = vmatpush1.msra.mxu0 %v2452
        %2552 = vmatprep.subr.mxu0 %v2457
        %2553 = vmatpush1.msra.mxu0 %v2456
        %2554 = vmatprep.subr.mxu0 %v2461
        %2555 = vmatpush1.msra.mxu0 %v2460
        %2556 = vmatprep.subr.mxu0 %v2465
        %2557 = vmatpush1.msra.mxu0 %v2464
        %2558 = vmatprep.subr.mxu0 %v2469
        %2559 = vmatpush1.msra.mxu0 %v2468
        %2560 = vmatprep.subr.mxu0 %v2473
        %2561 = vmatpush1.msra.mxu0 %v2472
        %2562 = vmatprep.subr.mxu0 %v2477
        %2563 = vmatpush1.msra.mxu0 %v2476
        %2564 = vmatprep.subr.mxu0 %v2481
        %2565 = vmatpush1.msra.mxu0 %v2480
        %2566 = vmatprep.subr.mxu0 %v2485
        %2567 = vmatpush1.msra.mxu0 %v2484
        %2568 = vmatprep.mubr.f32.mxu0 %v745
        %2569 = vmatmul.mubr.f32.gmra.mrb[0].mxu0 %v737
        %v2570 = vpop.f32.mrb[0].mxu0
        %v2571 = vadd.f32 0.0, %v2570
        %v2572 = vpop.f32.mrb[0].mxu0
        %v2573 = vadd.f32 0.0, %v2572
        %2574 = vdwg.mxu0
        %2575 = vmatprep.subr.mxu0 %v2496
        %2576 = vmatpush1.msra.mxu0 %v2493
        %2577 = vmatprep.subr.mxu0 0.0
        %2578 = vmatpush1.msra.mxu0 0.0
        %2579 = vmatprep.subr.mxu0 0.0
        %2580 = vmatpush1.msra.mxu0 0.0
        %2581 = vmatprep.subr.mxu0 0.0
        %2582 = vmatpush1.msra.mxu0 0.0
        %2583 = vmatprep.subr.mxu0 0.0
        %2584 = vmatpush1.msra.mxu0 0.0
        %2585 = vmatprep.subr.mxu0 0.0
        %2586 = vmatpush1.msra.mxu0 0.0
        %2587 = vmatprep.subr.mxu0 0.0
        %2588 = vmatpush1.msra.mxu0 0.0
        %2589 = vmatprep.subr.mxu0 0.0
        %2590 = vmatpush1.msra.mxu0 0.0
        %2591 = vmatprep.subr.mxu0 0.0
        %2592 = vmatpush1.msra.mxu0 0.0
        %2593 = vmatprep.subr.mxu0 0.0
        %2594 = vmatpush1.msra.mxu0 0.0
        %2595 = vmatprep.subr.mxu0 0.0
        %2596 = vmatpush1.msra.mxu0 0.0
        %2597 = vmatprep.subr.mxu0 0.0
        %2598 = vmatpush1.msra.mxu0 0.0
        %2599 = vmatprep.subr.mxu0 0.0
        %2600 = vmatpush1.msra.mxu0 0.0
        %2601 = vmatprep.subr.mxu0 0.0
        %2602 = vmatpush1.msra.mxu0 0.0
        %2603 = vmatprep.subr.mxu0 0.0
        %2604 = vmatpush1.msra.mxu0 0.0
        %2605 = vmatprep.subr.mxu0 0.0
        %2606 = vmatpush1.msra.mxu0 0.0
        %2607 = vmatprep.subr.mxu0 0.0
        %2608 = vmatpush1.msra.mxu0 0.0
        %2609 = vmatprep.subr.mxu0 0.0
        %2610 = vmatpush1.msra.mxu0 0.0
        %2611 = vmatprep.subr.mxu0 0.0
        %2612 = vmatpush1.msra.mxu0 0.0
        %2613 = vmatprep.subr.mxu0 0.0
        %2614 = vmatpush1.msra.mxu0 0.0
        %2615 = vmatprep.subr.mxu0 0.0
        %2616 = vmatpush1.msra.mxu0 0.0
        %2617 = vmatprep.subr.mxu0 0.0
        %2618 = vmatpush1.msra.mxu0 0.0
        %2619 = vmatprep.subr.mxu0 0.0
        %2620 = vmatpush1.msra.mxu0 0.0
        %2621 = vmatprep.subr.mxu0 0.0
        %2622 = vmatpush1.msra.mxu0 0.0
        %2623 = vmatprep.subr.mxu0 0.0
        %2624 = vmatpush1.msra.mxu0 0.0
        %2625 = vmatprep.subr.mxu0 0.0
        %2626 = vmatpush1.msra.mxu0 0.0
        %2627 = vmatprep.subr.mxu0 0.0
        %2628 = vmatpush1.msra.mxu0 0.0
        %2629 = vmatprep.subr.mxu0 0.0
        %2630 = vmatpush1.msra.mxu0 0.0
        %2631 = vmatprep.subr.mxu0 0.0
        %2632 = vmatpush1.msra.mxu0 0.0
        %2633 = vmatprep.subr.mxu0 0.0
        %2634 = vmatpush1.msra.mxu0 0.0
        %2635 = vmatprep.subr.mxu0 0.0
        %2636 = vmatpush1.msra.mxu0 0.0
        %2637 = vmatprep.subr.mxu0 0.0
        %2638 = vmatpush1.msra.mxu0 0.0
        %2639 = vmatprep.mubr.f32.mxu0 0.0
        %2640 = vmatmul.mubr.f32.gmra.mrb[0].mxu0 %v749
        %v2641 = vpop.f32.mrb[0].mxu0
        %v2642 = vadd.f32 %v2571, %v2641
        %v2643 = vpop.f32.mrb[0].mxu0
        %v2644 = vadd.f32 %v2573, %v2643
        %2645 = vdwg.mxu0
        %2646 = vmatprep.subr.mxu0 %v2363
        %2647 = vmatpush1.msra.mxu0 %v2362
        %2648 = vmatprep.subr.mxu0 %v2367
        %2649 = vmatpush1.msra.mxu0 %v2366
        %2650 = vmatprep.subr.mxu0 %v2371
        %2651 = vmatpush1.msra.mxu0 %v2370
        %2652 = vmatprep.subr.mxu0 %v2375
        %2653 = vmatpush1.msra.mxu0 %v2374
        %2654 = vmatprep.subr.mxu0 %v2379
        %2655 = vmatpush1.msra.mxu0 %v2378
        %2656 = vmatprep.subr.mxu0 %v2383
        %2657 = vmatpush1.msra.mxu0 %v2382
        %2658 = vmatprep.subr.mxu0 %v2387
        %2659 = vmatpush1.msra.mxu0 %v2386
        %2660 = vmatprep.subr.mxu0 %v2391
        %2661 = vmatpush1.msra.mxu0 %v2390
        %2662 = vmatprep.subr.mxu0 %v2395
        %2663 = vmatpush1.msra.mxu0 %v2394
        %2664 = vmatprep.subr.mxu0 %v2399
        %2665 = vmatpush1.msra.mxu0 %v2398
        %2666 = vmatprep.subr.mxu0 %v2403
        %2667 = vmatpush1.msra.mxu0 %v2402
        %2668 = vmatprep.subr.mxu0 %v2407
        %2669 = vmatpush1.msra.mxu0 %v2406
        %2670 = vmatprep.subr.mxu0 %v2411
        %2671 = vmatpush1.msra.mxu0 %v2410
        %2672 = vmatprep.subr.mxu0 %v2415
        %2673 = vmatpush1.msra.mxu0 %v2414
        %2674 = vmatprep.subr.mxu0 %v2419
        %2675 = vmatpush1.msra.mxu0 %v2418
        %2676 = vmatprep.subr.mxu0 %v2423
        %2677 = vmatpush1.msra.mxu0 %v2422
        %2678 = vmatprep.subr.mxu0 %v2427
        %2679 = vmatpush1.msra.mxu0 %v2426
        %2680 = vmatprep.subr.mxu0 %v2431
        %2681 = vmatpush1.msra.mxu0 %v2430
        %2682 = vmatprep.subr.mxu0 %v2435
        %2683 = vmatpush1.msra.mxu0 %v2434
        %2684 = vmatprep.subr.mxu0 %v2439
        %2685 = vmatpush1.msra.mxu0 %v2438
        %2686 = vmatprep.subr.mxu0 %v2443
        %2687 = vmatpush1.msra.mxu0 %v2442
        %2688 = vmatprep.subr.mxu0 %v2447
        %2689 = vmatpush1.msra.mxu0 %v2446
        %2690 = vmatprep.subr.mxu0 %v2451
        %2691 = vmatpush1.msra.mxu0 %v2450
        %2692 = vmatprep.subr.mxu0 %v2455
        %2693 = vmatpush1.msra.mxu0 %v2454
        %2694 = vmatprep.subr.mxu0 %v2459
        %2695 = vmatpush1.msra.mxu0 %v2458
        %2696 = vmatprep.subr.mxu0 %v2463
        %2697 = vmatpush1.msra.mxu0 %v2462
        %2698 = vmatprep.subr.mxu0 %v2467
        %2699 = vmatpush1.msra.mxu0 %v2466
        %2700 = vmatprep.subr.mxu0 %v2471
        %2701 = vmatpush1.msra.mxu0 %v2470
        %2702 = vmatprep.subr.mxu0 %v2475
        %2703 = vmatpush1.msra.mxu0 %v2474
        %2704 = vmatprep.subr.mxu0 %v2479
        %2705 = vmatpush1.msra.mxu0 %v2478
        %2706 = vmatprep.subr.mxu0 %v2483
        %2707 = vmatpush1.msra.mxu0 %v2482
        %2708 = vmatprep.subr.mxu0 %v2487
        %2709 = vmatpush1.msra.mxu0 %v2486
        %2710 = vmatprep.mubr.f32.mxu0 %v745
        %2711 = vmatmul.mubr.f32.gmra.mrb[0].mxu0 %v737
        %v2712 = vpop.f32.mrb[0].mxu0
        %v2713 = vadd.f32 0.0, %v2712
        %v2714 = vpop.f32.mrb[0].mxu0
        %v2715 = vadd.f32 0.0, %v2714
        %2716 = vdwg.mxu0
        %2717 = vmatprep.subr.mxu0 %v2502
        %2718 = vmatpush1.msra.mxu0 %v2499
        %2719 = vmatprep.subr.mxu0 0.0
        %2720 = vmatpush1.msra.mxu0 0.0
        %2721 = vmatprep.subr.mxu0 0.0
        %2722 = vmatpush1.msra.mxu0 0.0
        %2723 = vmatprep.subr.mxu0 0.0
        %2724 = vmatpush1.msra.mxu0 0.0
        %2725 = vmatprep.subr.mxu0 0.0
        %2726 = vmatpush1.msra.mxu0 0.0
        %2727 = vmatprep.subr.mxu0 0.0
        %2728 = vmatpush1.msra.mxu0 0.0
        %2729 = vmatprep.subr.mxu0 0.0
        %2730 = vmatpush1.msra.mxu0 0.0
        %2731 = vmatprep.subr.mxu0 0.0
        %2732 = vmatpush1.msra.mxu0 0.0
        %2733 = vmatprep.subr.mxu0 0.0
        %2734 = vmatpush1.msra.mxu0 0.0
        %2735 = vmatprep.subr.mxu0 0.0
        %2736 = vmatpush1.msra.mxu0 0.0
        %2737 = vmatprep.subr.mxu0 0.0
        %2738 = vmatpush1.msra.mxu0 0.0
        %2739 = vmatprep.subr.mxu0 0.0
        %2740 = vmatpush1.msra.mxu0 0.0
        %2741 = vmatprep.subr.mxu0 0.0
        %2742 = vmatpush1.msra.mxu0 0.0
        %2743 = vmatprep.subr.mxu0 0.0
        %2744 = vmatpush1.msra.mxu0 0.0
        %2745 = vmatprep.subr.mxu0 0.0
        %2746 = vmatpush1.msra.mxu0 0.0
        %2747 = vmatprep.subr.mxu0 0.0
        %2748 = vmatpush1.msra.mxu0 0.0
        %2749 = vmatprep.subr.mxu0 0.0
        %2750 = vmatpush1.msra.mxu0 0.0
        %2751 = vmatprep.subr.mxu0 0.0
        %2752 = vmatpush1.msra.mxu0 0.0
        %2753 = vmatprep.subr.mxu0 0.0
        %2754 = vmatpush1.msra.mxu0 0.0
        %2755 = vmatprep.subr.mxu0 0.0
        %2756 = vmatpush1.msra.mxu0 0.0
        %2757 = vmatprep.subr.mxu0 0.0
        %2758 = vmatpush1.msra.mxu0 0.0
        %2759 = vmatprep.subr.mxu0 0.0
        %2760 = vmatpush1.msra.mxu0 0.0
        %2761 = vmatprep.subr.mxu0 0.0
        %2762 = vmatpush1.msra.mxu0 0.0
        %2763 = vmatprep.subr.mxu0 0.0
        %2764 = vmatpush1.msra.mxu0 0.0
        %2765 = vmatprep.subr.mxu0 0.0
        %2766 = vmatpush1.msra.mxu0 0.0
        %2767 = vmatprep.subr.mxu0 0.0
        %2768 = vmatpush1.msra.mxu0 0.0
        %2769 = vmatprep.subr.mxu0 0.0
        %2770 = vmatpush1.msra.mxu0 0.0
        %2771 = vmatprep.subr.mxu0 0.0
        %2772 = vmatpush1.msra.mxu0 0.0
        %2773 = vmatprep.subr.mxu0 0.0
        %2774 = vmatpush1.msra.mxu0 0.0
        %2775 = vmatprep.subr.mxu0 0.0
        %2776 = vmatpush1.msra.mxu0 0.0
        %2777 = vmatprep.subr.mxu0 0.0
        %2778 = vmatpush1.msra.mxu0 0.0
        %2779 = vmatprep.subr.mxu0 0.0
        %2780 = vmatpush1.msra.mxu0 0.0
        %2781 = vmatprep.mubr.f32.mxu0 0.0
        %2782 = vmatmul.mubr.f32.gmra.mrb[0].mxu0 %v749
        %v2783 = vpop.f32.mrb[0].mxu0
        %v2784 = vadd.f32 %v2713, %v2783
        %v2785 = vpop.f32.mrb[0].mxu0
        %v2786 = vadd.f32 %v2715, %v2785
        %2787 = vdwg.mxu0
        %v2789 = vsel %vm1048, %v2339, 0
        %2791 = vmatprep.subr.mxu0 %v2344
        %2792 = vmatpush1.msra.mxu0 %v2343
        %2793 = vmatprep.subr.mxu0 %v2348
        %2794 = vmatpush1.msra.mxu0 %v2347
        %2795 = vmatprep.subr.mxu0 %v2352
        %2796 = vmatpush1.msra.mxu0 %v2351
        %2797 = vmatprep.subr.mxu0 %v2356
        %2798 = vmatpush1.msra.mxu0 %v2355
        %2799 = vmatprep.subr.mxu0 0.0
        %2800 = vmatpush1.msra.mxu0 0.0
        %2801 = vmatprep.subr.mxu0 0.0
        %2802 = vmatpush1.msra.mxu0 0.0
        %2803 = vmatprep.subr.mxu0 0.0
        %2804 = vmatpush1.msra.mxu0 0.0
        %2805 = vmatprep.subr.mxu0 0.0
        %2806 = vmatpush1.msra.mxu0 0.0
        %2807 = vmatprep.subr.mxu0 0.0
        %2808 = vmatpush1.msra.mxu0 0.0
        %2809 = vmatprep.subr.mxu0 0.0
        %2810 = vmatpush1.msra.mxu0 0.0
        %2811 = vmatprep.subr.mxu0 0.0
        %2812 = vmatpush1.msra.mxu0 0.0
        %2813 = vmatprep.subr.mxu0 0.0
        %2814 = vmatpush1.msra.mxu0 0.0
        %2815 = vmatprep.subr.mxu0 0.0
        %2816 = vmatpush1.msra.mxu0 0.0
        %2817 = vmatprep.subr.mxu0 0.0
        %2818 = vmatpush1.msra.mxu0 0.0
        %2819 = vmatprep.subr.mxu0 0.0
        %2820 = vmatpush1.msra.mxu0 0.0
        %2821 = vmatprep.subr.mxu0 0.0
        %2822 = vmatpush1.msra.mxu0 0.0
        %2823 = vmatprep.subr.mxu0 0.0
        %2824 = vmatpush1.msra.mxu0 0.0
        %2825 = vmatprep.subr.mxu0 0.0
        %2826 = vmatpush1.msra.mxu0 0.0
        %2827 = vmatprep.subr.mxu0 0.0
        %2828 = vmatpush1.msra.mxu0 0.0
        %2829 = vmatprep.subr.mxu0 0.0
        %2830 = vmatpush1.msra.mxu0 0.0
        %2831 = vmatprep.subr.mxu0 0.0
        %2832 = vmatpush1.msra.mxu0 0.0
        %2833 = vmatprep.subr.mxu0 0.0
        %2834 = vmatpush1.msra.mxu0 0.0
        %2835 = vmatprep.subr.mxu0 0.0
        %2836 = vmatpush1.msra.mxu0 0.0
        %2837 = vmatprep.subr.mxu0 0.0
        %2838 = vmatpush1.msra.mxu0 0.0
        %2839 = vmatprep.subr.mxu0 0.0
        %2840 = vmatpush1.msra.mxu0 0.0
        %2841 = vmatprep.subr.mxu0 0.0
        %2842 = vmatpush1.msra.mxu0 0.0
        %2843 = vmatprep.subr.mxu0 0.0
        %2844 = vmatpush1.msra.mxu0 0.0
        %2845 = vmatprep.subr.mxu0 0.0
        %2846 = vmatpush1.msra.mxu0 0.0
        %2847 = vmatprep.subr.mxu0 0.0
        %2848 = vmatpush1.msra.mxu0 0.0
        %2849 = vmatprep.subr.mxu0 0.0
        %2850 = vmatpush1.msra.mxu0 0.0
        %2851 = vmatprep.subr.mxu0 0.0
        %2852 = vmatpush1.msra.mxu0 0.0
        %2853 = vmatprep.subr.mxu0 0.0
        %2854 = vmatpush1.msra.mxu0 0.0
        %2855 = vmatprep.mubr.f32.mxu0 0.0
        %2856 = vmatmul.mubr.f32.gmra.mrb[0].mxu0 %v2789
        %v2857 = vpop.f32.mrb[0].mxu0
        %v2858 = vadd.f32 %v2642, %v2857
        %v2859 = vpop.f32.mrb[0].mxu0
        %v2860 = vadd.f32 %v2644, %v2859
        %2861 = vdwg.mxu0
        %2862 = vmatprep.subr.mxu0 %v2346
        %2863 = vmatpush1.msra.mxu0 %v2345
        %2864 = vmatprep.subr.mxu0 %v2350
        %2865 = vmatpush1.msra.mxu0 %v2349
        %2866 = vmatprep.subr.mxu0 %v2354
        %2867 = vmatpush1.msra.mxu0 %v2353
        %2868 = vmatprep.subr.mxu0 %v2358
        %2869 = vmatpush1.msra.mxu0 %v2357
        %2870 = vmatprep.subr.mxu0 0.0
        %2871 = vmatpush1.msra.mxu0 0.0
        %2872 = vmatprep.subr.mxu0 0.0
        %2873 = vmatpush1.msra.mxu0 0.0
        %2874 = vmatprep.subr.mxu0 0.0
        %2875 = vmatpush1.msra.mxu0 0.0
        %2876 = vmatprep.subr.mxu0 0.0
        %2877 = vmatpush1.msra.mxu0 0.0
        %2878 = vmatprep.subr.mxu0 0.0
        %2879 = vmatpush1.msra.mxu0 0.0
        %2880 = vmatprep.subr.mxu0 0.0
        %2881 = vmatpush1.msra.mxu0 0.0
        %2882 = vmatprep.subr.mxu0 0.0
        %2883 = vmatpush1.msra.mxu0 0.0
        %2884 = vmatprep.subr.mxu0 0.0
        %2885 = vmatpush1.msra.mxu0 0.0
        %2886 = vmatprep.subr.mxu0 0.0
        %2887 = vmatpush1.msra.mxu0 0.0
        %2888 = vmatprep.subr.mxu0 0.0
        %2889 = vmatpush1.msra.mxu0 0.0
        %2890 = vmatprep.subr.mxu0 0.0
        %2891 = vmatpush1.msra.mxu0 0.0
        %2892 = vmatprep.subr.mxu0 0.0
        %2893 = vmatpush1.msra.mxu0 0.0
        %2894 = vmatprep.subr.mxu0 0.0
        %2895 = vmatpush1.msra.mxu0 0.0
        %2896 = vmatprep.subr.mxu0 0.0
        %2897 = vmatpush1.msra.mxu0 0.0
        %2898 = vmatprep.subr.mxu0 0.0
        %2899 = vmatpush1.msra.mxu0 0.0
        %2900 = vmatprep.subr.mxu0 0.0
        %2901 = vmatpush1.msra.mxu0 0.0
        %2902 = vmatprep.subr.mxu0 0.0
        %2903 = vmatpush1.msra.mxu0 0.0
        %2904 = vmatprep.subr.mxu0 0.0
        %2905 = vmatpush1.msra.mxu0 0.0
        %2906 = vmatprep.subr.mxu0 0.0
        %2907 = vmatpush1.msra.mxu0 0.0
        %2908 = vmatprep.subr.mxu0 0.0
        %2909 = vmatpush1.msra.mxu0 0.0
        %2910 = vmatprep.subr.mxu0 0.0
        %2911 = vmatpush1.msra.mxu0 0.0
        %2912 = vmatprep.subr.mxu0 0.0
        %2913 = vmatpush1.msra.mxu0 0.0
        %2914 = vmatprep.subr.mxu0 0.0
        %2915 = vmatpush1.msra.mxu0 0.0
        %2916 = vmatprep.subr.mxu0 0.0
        %2917 = vmatpush1.msra.mxu0 0.0
        %2918 = vmatprep.subr.mxu0 0.0
        %2919 = vmatpush1.msra.mxu0 0.0
        %2920 = vmatprep.subr.mxu0 0.0
        %2921 = vmatpush1.msra.mxu0 0.0
        %2922 = vmatprep.subr.mxu0 0.0
        %2923 = vmatpush1.msra.mxu0 0.0
        %2924 = vmatprep.subr.mxu0 0.0
        %2925 = vmatpush1.msra.mxu0 0.0
        %2926 = vmatprep.mubr.f32.mxu0 0.0
        %2927 = vmatmul.mubr.f32.gmra.mrb[0].mxu0 %v2789
        %v2928 = vpop.f32.mrb[0].mxu0
        %v2929 = vadd.f32 %v2784, %v2928
        %v2930 = vpop.f32.mrb[0].mxu0
        %v2931 = vadd.f32 %v2786, %v2930
        %2932 = vdwg.mxu0
        %s2933 = scalar_lea.vmem %s350, 8
        %v2934 = vld [vmem:[%s2933] sm:$0xf]
        %v2936 = vlaneseq
        %v2937 = vshrl.u32 %v2936, 7
        %v2938 = vsub.s32 0, %v2937
        %v2939 = vrot.slane %v2934, %v2938
        %v2940 = vlaneseq
        %v2941 = vshrl.u32 %v2940, 7
        %v2942 = vsub.s32 1, %v2941
        %v2943 = vrot.slane %v2934, %v2942
        %v2944 = vlaneseq
        %v2945 = vshrl.u32 %v2944, 7
        %v2946 = vsub.s32 2, %v2945
        %v2947 = vrot.slane %v2934, %v2946
        %v2948 = vlaneseq
        %v2949 = vshrl.u32 %v2948, 7
        %v2950 = vsub.s32 3, %v2949
        %v2951 = vrot.slane %v2934, %v2950
        %v2956 = vadd.f32 %v2858, %v2939
        %v2957 = vadd.f32 %v2860, %v2943
        %v2958 = vadd.f32 %v2929, %v2947
        %v2959 = vadd.f32 %v2931, %v2951
        %v2964 = vcombine.low %v2956, %v2957
        %v2965 = vcombine.low %v2958, %v2959
        %v2967 = vunpack.c.l.s4 1983009808
        %v2968 = vunpack.c.0.s8 %v2967
        %v2969 = vlaneseq
        %v2970 = vshrl.u32 %v2969, 7
        %v2971 = vsub.s32 %v2968, %v2970
        %v2972 = vrot.slane %v2964, %v2971
        %v2974 = vunpack.c.l.s4 1983009808
        %v2975 = vunpack.c.0.s8 %v2974
        %v2976 = vlaneseq
        %v2977 = vshrl.u32 %v2976, 7
        %v2978 = vsub.s32 %v2975, %v2977
        %v2979 = vrot.slane %v2965, %v2978
        %v2980 = vcombine.low %v2972, %v2979
        %2982 = vst [vmem:[%s317 + $0x10] sm:$0xff] %v2980
        %s2983 = sand.u32 %s179, 1
        %s2984 = scalar_lea.sflag [#allocation3], %s2983
        %s2985 = sand.u32 %s179, 1
        %s2986 = smul.addr %s2985, 24
        %s2987 = scalar_lea.vmem [#allocation2], %s2986
        // Predicated region
        $region45: #{rignet_forward.1} parent=43 // pred_check
          %p2988 = pneg %p189
        $region46: #{rignet_forward.1} parent=43 // pred_check_branch
          %2990 = sbr.rel (%p2988) target = $region48
        $region47: #{rignet_forward.1} parent=43 // pred_region
          %s2991 = smul.u32 12, %s20
          %s2993 = ssub.s32 384, 384
          %2994 = vsyncadd %s2984, %s2993
          %s2995 = smul.addr %s2991, 32
          %s2996 = scalar_lea.hbm %s6, %s2995
          %s2998 = sshll.u32 %s2987, 4
          %s2999 = int_to_ptr.vmem [resolvable:$true] %s2998
          %3001 = dma.vmem_to_hbm [thread:$0]  %s2999, 384, %s2996, %s2984
        $region48: #{rignet_forward.1} parent=43 // pred_fallthru
          _
      $region44: #{rignet_forward.1} parent=5 // pred_fallthru
        _
      %p3002 = scmp.le.s32.totalorder 2, %s15
      // Predicated region
      $region49: #{rignet_forward.1} parent=5 // pred_check
        %p3003 = pneg %p3002
      $region50: #{rignet_forward.1} parent=5 // pred_check_branch
        %3005 = sbr.rel (%p3003) target = $region52
      $region51: #{rignet_forward.1} parent=5 // pred_region
        %s3006 = ssub.s32 %s15, 2
        // Predicated region
        $region53: #{rignet_forward.1} parent=51 // pred_check
          %p3007 = pneg %p195
        $region54: #{rignet_forward.1} parent=51 // pred_check_branch
          %3009 = sbr.rel (%p3007) target = $region56
        $region55: #{rignet_forward.1} parent=51 // pred_region
          %s3010 = sand.u32 %s180, 1
          %s3011 = scalar_lea.sflag [#allocation3], %s3010
          %s3012 = sand.u32 %s180, 1
          %s3013 = smul.addr %s3012, 24
          %s3014 = scalar_lea.vmem [#allocation2], %s3013
          %3015 = dma.done %s3011, 384
        $region56: #{rignet_forward.1} parent=51 // pred_fallthru
          _
      $region52: #{rignet_forward.1} parent=5 // pred_fallthru
        _
    $region6: #{rignet_forward.1} parent=1 // loop_footer
      %s19 = sadd.s32 1, %s15
    $region7: #{rignet_forward.1} parent=1 // loop_footer_branch
      %14 = sbr.rel target = $region3
    $region8: #{rignet_forward.1} parent=1 // loop_exit
      _
    %3016 = vsyncpa [#allocation3], 1
    %s3017 = scalar_lea.sflag [#allocation3], 1
    %3018 = vsyncpa %s3017, 1

</llo_original>
